<compile_context>
chip_gen: v7x
topology: tpu7x:2x2x1
jax: 0.10.0
libtpu: 0.0.40
codegen_flags: <defaults>
</compile_context>

<pallas_src>
import functools

import jax
import jax.numpy as jnp
from jax import lax
from jax.experimental import pallas as pl
from jax.experimental.pallas import tpu as pltpu


_VMEM_LIMIT_BYTES = 32 * 1024 * 1024   # safe on v5e (128 MiB), v6e (128), v7x (64 physical)
_BLOCK_BUDGET_BYTES = 16 * 1024 * 1024  # budget for the 4 double-buffered in/out block buffers
_MIN_GRID_STEPS = 4                     # >=2 TCs on v7x + some pipelining


def _sublane(dtype):
    return {4: 8, 2: 16, 1: 32}.get(jnp.dtype(dtype).itemsize, 8)


def _lane_round(n):
    return ((n + 127) // 128) * 128


def _pick_tile(extent, *, sublane, row_bytes, min_steps):
    """Tile along a second-to-last block dim: multiple of `sublane`, or == extent."""
    if extent <= sublane:
        return extent
    cap_vmem = max(sublane, _BLOCK_BUDGET_BYTES // (4 * max(1, row_bytes)))
    cap_grid = max(sublane, pl.cdiv(extent, max(1, min_steps)))
    t = min(2048, cap_vmem, cap_grid, extent)
    t = max(sublane, (t // sublane) * sublane)
    return t


# ---------------------------------------------------------------------------
# channels_last: row-wise layernorm on (M, groups*C); `groups` independent
# per-C segments packed along the lane axis (groups == 1 for C >= 128).
# ---------------------------------------------------------------------------
def _ln_rows_kernel(x_ref, w_ref, b_ref, o_ref, *, eps, groups, c):
    x = x_ref[...].astype(jnp.float32)                       # (TM, groups*c)
    for g in range(groups):                                  # static unrolled lane segments
        sl = slice(g * c, (g + 1) * c)
        seg = x[:, sl]                                       # (TM, c)
        mean = jnp.mean(seg, axis=-1, keepdims=True)         # XLU reduce
        xc = seg - mean
        var = jnp.mean(xc * xc, axis=-1, keepdims=True)      # biased variance
        y = xc * lax.rsqrt(var + eps)                        # EUP rsqrt
        o_ref[:, sl] = (y * w_ref[:, sl] + b_ref[:, sl]).astype(o_ref.dtype)


def _layer_norm_rows(x2d, weight, bias, eps, *, groups):
    M, CG = x2d.shape
    c = CG // groups
    dt = x2d.dtype
    itemsize = jnp.dtype(dt).itemsize
    tm = _pick_tile(M, sublane=_sublane(dt),
                    row_bytes=_lane_round(CG) * itemsize,
                    min_steps=_MIN_GRID_STEPS)
    grid_m = pl.cdiv(M, tm)

    w2 = weight.reshape(1, CG).astype(jnp.float32)
    b2 = bias.reshape(1, CG).astype(jnp.float32)

    kernel = functools.partial(_ln_rows_kernel, eps=eps, groups=groups, c=c)
    cost = pl.CostEstimate(flops=8 * M * CG,
                           transcendentals=M * groups,
                           bytes_accessed=2 * M * CG * itemsize)

    return pl.pallas_call(
        kernel,
        out_shape=jax.ShapeDtypeStruct((M, CG), dt),
        grid_spec=pltpu.PrefetchScalarGridSpec(
            num_scalar_prefetch=0,
            grid=(grid_m,),
            in_specs=[
                pl.BlockSpec((tm, CG), lambda i: (i, 0)),    # input rows (ragged last block clamped)
                pl.BlockSpec((1, CG), lambda i: (0, 0)),     # weight (resident)
                pl.BlockSpec((1, CG), lambda i: (0, 0)),     # bias   (resident)
            ],
            out_specs=pl.BlockSpec((tm, CG), lambda i: (i, 0)),
        ),
        compiler_params=pltpu.CompilerParams(
            dimension_semantics=("parallel",),
            vmem_limit_bytes=_VMEM_LIMIT_BYTES),
        cost_estimate=cost,
    )(x2d, w2, b2)


# ---------------------------------------------------------------------------
# channels_first: native NCHW layernorm over the channel axis (no transposes).
# ---------------------------------------------------------------------------
def _ln_nchw_kernel(x_ref, w_ref, b_ref, o_ref, *, eps):
    x = x_ref[...].astype(jnp.float32)                       # (C, TH, W)
    u = jnp.mean(x, axis=0, keepdims=True)                   # (1, TH, W)  VALU adds over C planes
    xc = x - u
    var = jnp.mean(xc * xc, axis=0, keepdims=True)           # biased variance
    y = xc * lax.rsqrt(var + eps)
    # Match torch: normalized value is cast back to the input dtype *before*
    # the per-channel scale/shift (no-op for f32 inputs).
    y = y.astype(o_ref.dtype).astype(jnp.float32)
    o_ref[...] = (w_ref[...] * y + b_ref[...]).astype(o_ref.dtype)


def _layer_norm_nchw(x, weight, bias, eps):
    B, C, H, W = x.shape
    dt = x.dtype
    itemsize = jnp.dtype(dt).itemsize
    min_steps_h = max(1, -(-_MIN_GRID_STEPS // B))           # want B * grid_h >= ~4 steps
    th = _pick_tile(H, sublane=_sublane(dt),
                    row_bytes=C * _lane_round(W) * itemsize,
                    min_steps=min_steps_h)
    grid = (B, pl.cdiv(H, th))

    w3 = weight.reshape(C, 1, 1).astype(jnp.float32)
    b3 = bias.reshape(C, 1, 1).astype(jnp.float32)

    kernel = functools.partial(_ln_nchw_kernel, eps=eps)
    n = B * C * H * W
    cost = pl.CostEstimate(flops=8 * n,
                           transcendentals=B * H * W,
                           bytes_accessed=2 * n * itemsize)

    return pl.pallas_call(
        kernel,
        out_shape=jax.ShapeDtypeStruct((B, C, H, W), dt),
        grid_spec=pltpu.PrefetchScalarGridSpec(
            num_scalar_prefetch=0,
            grid=grid,
            in_specs=[
                pl.BlockSpec((None, C, th, W), lambda b, h: (b, 0, h, 0)),  # NCHW block, batch squeezed
                pl.BlockSpec((C, 1, 1), lambda b, h: (0, 0, 0)),            # weight[:,None,None]
                pl.BlockSpec((C, 1, 1), lambda b, h: (0, 0, 0)),            # bias[:,None,None]
            ],
            out_specs=pl.BlockSpec((None, C, th, W), lambda b, h: (b, 0, h, 0)),
        ),
        compiler_params=pltpu.CompilerParams(
            dimension_semantics=("parallel", "parallel"),
            vmem_limit_bytes=_VMEM_LIMIT_BYTES),
        cost_estimate=cost,
    )(x, w3, b3)


# ---------------------------------------------------------------------------
# Public wrapper (mirrors SamLayerNorm.forward)
# ---------------------------------------------------------------------------
def sam_layer_norm(x, weight, bias, *, eps=1e-6, data_format="channels_last"):
    """JAX/Pallas equivalent of SamLayerNorm.forward.

    channels_last : x (..., C), weight/bias (C,)
    channels_first: x (B, C, H, W), weight/bias (C,)
    """
    if data_format == "channels_last":
        *lead, C = x.shape
        M = 1
        for d in lead:
            M *= d
        x2 = x.reshape(M, C)
        w = weight.reshape(-1)
        b = bias.reshape(-1)
        groups = 1
        # Lane-pack small channel counts so loads/stores stay 128-lane dense.
        if C < 128 and 128 % C == 0:
            k = 128 // C
            if 1 < k <= 16 and M % k == 0:
                groups = k
                x2 = x2.reshape(M // k, k * C)
                w = jnp.tile(w, k)
                b = jnp.tile(b, k)
        out = _layer_norm_rows(x2, w, b, eps, groups=groups)
        return out.reshape(*lead, C)
    elif data_format == "channels_first":
        if x.ndim != 4:
            raise NotImplementedError("channels_first expects (B, C, H, W)")
        # TODO(synk): torch promotes bf16 x * f32 weight to f32 output here; we keep
        # the input dtype for the output (identical for the f32 case exercised below).
        return _layer_norm_nchw(x, weight.reshape(-1), bias.reshape(-1), eps)
    else:
        raise NotImplementedError(f"Unsupported data format: {data_format}")


# ---------------------------------------------------------------------------
# Pure-JAX reference mirroring the PyTorch forward.
# ---------------------------------------------------------------------------
def _reference(x, weight, bias, eps, data_format):
    if data_format == "channels_last":
        xf = x.astype(jnp.float32)
        u = jnp.mean(xf, axis=-1, keepdims=True)
        s = jnp.mean((xf - u) ** 2, axis=-1, keepdims=True)
        y = (xf - u) / jnp.sqrt(s + eps)
        return (y * weight + bias).astype(x.dtype)
    else:  # channels_first
        xf = x.astype(jnp.float32)
        u = jnp.mean(xf, axis=1, keepdims=True)
        s = jnp.mean((xf - u) ** 2, axis=1, keepdims=True)
        y = (xf - u) / jnp.sqrt(s + eps)
        y = y.astype(x.dtype)
        return (weight[:, None, None] * y + bias[:, None, None]).astype(x.dtype)


if __name__ == "__main__":
    key = jax.random.PRNGKey(0)
    ks = jax.random.split(key, 9)
    eps = 1e-6

    # --- channels_first, SAM vision-encoder-neck style: (B, C, H, W) ---
    B, C, H, W = 2, 128, 16, 16
    x_cf = jax.random.normal(ks[0], (B, C, H, W), dtype=jnp.float32)
    w_cf = 1.0 + 0.1 * jax.random.normal(ks[1], (C,), dtype=jnp.float32)
    b_cf = 0.1 * jax.random.normal(ks[2], (C,), dtype=jnp.float32)
    out_cf = jax.block_until_ready(
        sam_layer_norm(x_cf, w_cf, b_cf, eps=eps, data_format="channels_first"))
    ref_cf = _reference(x_cf, w_cf, b_cf, eps, "channels_first")
    assert out_cf.shape == x_cf.shape and out_cf.dtype == x_cf.dtype
    err = float(jnp.max(jnp.abs(out_cf - ref_cf)))
    assert jnp.allclose(out_cf, ref_cf, atol=1e-4, rtol=1e-4), err

    # --- channels_last, small non-lane-aligned C (lane-packed path): (B,H,W,C) ---
    B2, H2, W2, C2 = 2, 8, 8, 32
    x_cl = jax.random.normal(ks[3], (B2, H2, W2, C2), dtype=jnp.float32)
    w_cl = 1.0 + 0.1 * jax.random.normal(ks[4], (C2,), dtype=jnp.float32)
    b_cl = 0.1 * jax.random.normal(ks[5], (C2,), dtype=jnp.float32)
    out_cl = jax.block_until_ready(
        sam_layer_norm(x_cl, w_cl, b_cl, eps=eps, data_format="channels_last"))
    ref_cl = _reference(x_cl, w_cl, b_cl, eps, "channels_last")
    assert out_cl.shape == x_cl.shape and out_cl.dtype == x_cl.dtype
    err = float(jnp.max(jnp.abs(out_cl - ref_cl)))
    assert jnp.allclose(out_cl, ref_cl, atol=1e-4, rtol=1e-4), err

    # --- channels_last, lane-dense C (groups == 1 path): (B,H,W,C) ---
    B3, H3, W3, C3 = 2, 4, 4, 256
    x_cd = jax.random.normal(ks[6], (B3, H3, W3, C3), dtype=jnp.float32)
    w_cd = 1.0 + 0.1 * jax.random.normal(ks[7], (C3,), dtype=jnp.float32)
    b_cd = 0.1 * jax.random.normal(ks[8], (C3,), dtype=jnp.float32)
    out_cd = jax.block_until_ready(
        sam_layer_norm(x_cd, w_cd, b_cd, eps=eps, data_format="channels_last"))
    ref_cd = _reference(x_cd, w_cd, b_cd, eps, "channels_last")
    assert out_cd.shape == x_cd.shape and out_cd.dtype == x_cd.dtype
    err = float(jnp.max(jnp.abs(out_cd - ref_cd)))
    assert jnp.allclose(out_cd, ref_cd, atol=1e-4, rtol=1e-4), err

    print("KERNEL_OK")
</pallas_src>

<mosaic_0001>
module attributes {stable_mosaic.version = 11 : i64} {
  func.func @_ln_nchw_kernel(%arg0: i32, %arg1: i32, %arg2: memref<1x128x8x16xf32, #tpu.memory_space<vmem>>, %arg3: memref<128x1x1xf32, #tpu.memory_space<vmem>>, %arg4: memref<128x1x1xf32, #tpu.memory_space<vmem>>, %arg5: memref<1x128x8x16xf32, #tpu.memory_space<vmem>>) attributes {dimension_semantics = [#tpu.dimension_semantics<parallel>, #tpu.dimension_semantics<parallel>], iteration_bounds = array<i64: 2, 2>, scalar_prefetch = 0 : i64, scratch_operands = 0 : i64, tpu.core_type = #tpu.core_type<tc>, window_params = [{transform_indices = @transform_0, window_bounds = array<i64: 1, 128, 8, 16>}, {pipeline_mode = #tpu.pipeline_mode<synchronous>, transform_indices = @transform_1, window_bounds = array<i64: 128, 1, 1>}, {pipeline_mode = #tpu.pipeline_mode<synchronous>, transform_indices = @transform_2, window_bounds = array<i64: 128, 1, 1>}, {transform_indices = @transform_3, window_bounds = array<i64: 1, 128, 8, 16>}]} {
    %c0 = arith.constant 0 : index
    %c0_0 = arith.constant 0 : index
    %c0_1 = arith.constant 0 : index
    %c0_2 = arith.constant 0 : index
    %0 = vector.load %arg2[%c0, %c0_0, %c0_1, %c0_2] : memref<1x128x8x16xf32, #tpu.memory_space<vmem>>, vector<1x128x8x16xf32>
    %1 = vector.shape_cast %0 : vector<1x128x8x16xf32> to vector<128x8x16xf32>
    %cst = arith.constant dense<0.000000e+00> : vector<8x16xf32>
    %2 = vector.multi_reduction <add>, %1, %cst [0] : vector<128x8x16xf32> to vector<8x16xf32>
    %3 = vector.shape_cast %2 : vector<8x16xf32> to vector<1x8x16xf32>
    %cst_3 = arith.constant 1.280000e+02 : f32
    %4 = vector.broadcast %cst_3 : f32 to vector<1x8x16xf32>
    %5 = arith.divf %3, %4 : vector<1x8x16xf32>
    %6 = vector.broadcast %5 : vector<1x8x16xf32> to vector<128x8x16xf32>
    %7 = arith.subf %1, %6 : vector<128x8x16xf32>
    %8 = arith.mulf %7, %7 : vector<128x8x16xf32>
    %cst_4 = arith.constant dense<0.000000e+00> : vector<8x16xf32>
    %9 = vector.multi_reduction <add>, %8, %cst_4 [0] : vector<128x8x16xf32> to vector<8x16xf32>
    %10 = vector.shape_cast %9 : vector<8x16xf32> to vector<1x8x16xf32>
    %cst_5 = arith.constant 1.280000e+02 : f32
    %11 = vector.broadcast %cst_5 : f32 to vector<1x8x16xf32>
    %12 = arith.divf %10, %11 : vector<1x8x16xf32>
    %cst_6 = arith.constant 9.99999997E-7 : f32
    %13 = vector.broadcast %cst_6 : f32 to vector<1x8x16xf32>
    %14 = arith.addf %12, %13 : vector<1x8x16xf32>
    %15 = math.rsqrt %14 : vector<1x8x16xf32>
    %16 = vector.broadcast %15 : vector<1x8x16xf32> to vector<128x8x16xf32>
    %17 = arith.mulf %7, %16 : vector<128x8x16xf32>
    %c0_7 = arith.constant 0 : index
    %c0_8 = arith.constant 0 : index
    %c0_9 = arith.constant 0 : index
    %18 = vector.load %arg3[%c0_7, %c0_8, %c0_9] : memref<128x1x1xf32, #tpu.memory_space<vmem>>, vector<128x1x1xf32>
    %19 = vector.broadcast %18 : vector<128x1x1xf32> to vector<128x8x16xf32>
    %20 = arith.mulf %19, %17 : vector<128x8x16xf32>
    %c0_10 = arith.constant 0 : index
    %c0_11 = arith.constant 0 : index
    %c0_12 = arith.constant 0 : index
    %21 = vector.load %arg4[%c0_10, %c0_11, %c0_12] : memref<128x1x1xf32, #tpu.memory_space<vmem>>, vector<128x1x1xf32>
    %22 = vector.broadcast %21 : vector<128x1x1xf32> to vector<128x8x16xf32>
    %23 = arith.addf %20, %22 : vector<128x8x16xf32>
    %c0_13 = arith.constant 0 : index
    %c0_14 = arith.constant 0 : index
    %c0_15 = arith.constant 0 : index
    %c0_16 = arith.constant 0 : index
    %24 = vector.load %arg5[%c0_13, %c0_14, %c0_15, %c0_16] : memref<1x128x8x16xf32, #tpu.memory_space<vmem>>, vector<1x128x8x16xf32>
    %25 = vector.shape_cast %24 : vector<1x128x8x16xf32> to vector<128x8x16xf32>
    %26 = vector.shape_cast %23 : vector<128x8x16xf32> to vector<1x128x8x16xf32>
    tpu.vector_store %arg5[%c0_13, %c0_14, %c0_15, %c0_16], %26 {strides = array<i32>} : memref<1x128x8x16xf32, #tpu.memory_space<vmem>>, vector<1x128x8x16xf32>,
    return
  }
  func.func @transform_0(%arg0: i32, %arg1: i32) -> (i32, i32, i32, i32) {
    %c0_i32 = arith.constant 0 : i32
    %c0_i32_0 = arith.constant 0 : i32
    %c0_i32_1 = arith.constant 0 : i32
    return %arg0, %c0_i32, %arg1, %c0_i32_0 : i32, i32, i32, i32
  }
  func.func @transform_1(%arg0: i32, %arg1: i32) -> (i32, i32, i32) {
    %c0_i32 = arith.constant 0 : i32
    %c0_i32_0 = arith.constant 0 : i32
    %c0_i32_1 = arith.constant 0 : i32
    %c0_i32_2 = arith.constant 0 : i32
    return %c0_i32, %c0_i32_0, %c0_i32_1 : i32, i32, i32
  }
  func.func @transform_2(%arg0: i32, %arg1: i32) -> (i32, i32, i32) {
    %c0_i32 = arith.constant 0 : i32
    %c0_i32_0 = arith.constant 0 : i32
    %c0_i32_1 = arith.constant 0 : i32
    %c0_i32_2 = arith.constant 0 : i32
    return %c0_i32, %c0_i32_0, %c0_i32_1 : i32, i32, i32
  }
  func.func @transform_3(%arg0: i32, %arg1: i32) -> (i32, i32, i32, i32) {
    %c0_i32 = arith.constant 0 : i32
    %c0_i32_0 = arith.constant 0 : i32
    %c0_i32_1 = arith.constant 0 : i32
    return %arg0, %c0_i32, %arg1, %c0_i32_0 : i32, i32, i32, i32
  }
}

</mosaic_0001>

<llo_original>
// kernel: tpu_custom_call.1
$region0: #{tpu_custom_call.1}
  #allocation0 [shape = 'u32[]', space=smem, size = 0x4, offset = 0x4, fixed_abs, tag = 'smem constant byte address 0x4 - core index']
  #allocation1 [shape = 'u32[144,128]{1,0:T(1,128)}', space=vmem, size = 0x12000, scoped, tag = 'internal scratch']
  %s0 = inlined_call_operand.vmem [shape: f32[2,128,16,16], index: 0, kind: input, shape index: {}]
  %s1 = inlined_call_operand.vmem [shape: f32[128,1,1], index: 1, kind: input, shape index: {}]
  %s2 = inlined_call_operand.vmem [shape: f32[128,1,1], index: 2, kind: input, shape index: {}]
  %s3 = inlined_call_operand.vmem [shape: f32[2,128,16,16], index: 3, kind: output, shape index: {}]
  %s4 = sld [smem:[#allocation0]]
  $region117: #{tpu_custom_call.1} parent=0
    _
  %s6 = ssub.s32 1, %s4
  %s7 = scalar_select 0, %s6, %s4
  $region1: #{tpu_custom_call.1} parent=0
    #allocation2 [shape = 'u8[1048576]{0}', space=vmem, size = 0x100000, scoped, tag = 'input window, operand 0']
    #allocation3 [shape = 'u8[1048576]{0}', space=vmem, size = 0x100000, scoped, tag = 'output window, operand 0']
    loop: start=0, step=1, limit=6
    $region2: #{tpu_custom_call.1} parent=1 // loop_pre_header
      _
    $region3: #{tpu_custom_call.1} parent=1 // loop_header
      %s9 = sphi 0, %s13
      %p10 = scmp.ge.s32.totalorder %s9, 6
      %s16 = sphi 0, %s28
      %s17 = sphi 0, %s24
      %s18 = sphi 0, %s16
      %s19 = sphi 0, %s17
      %s20 = sphi 0, %s18
      %s21 = sphi 0, %s19
      %s33 = sphi 0, %s35
      %s36 = sphi 0, %s33
      %s37 = sphi 0, %s36
      %s53 = sphi 0, %s37
      %s57 = sphi 0, %s57
      %s59 = sphi 0, %s57
      %s60 = sphi 0, %s59
      %s74 = sphi 0, %s60
      %s78 = sphi 0, %s78
      %s80 = sphi 0, %s78
      %s81 = sphi 0, %s80
      %s95 = sphi 0, %s81
      %s103 = sphi 0, %s105
      %s106 = sphi 0, %s103
      %s107 = sphi 0, %s106
      %s123 = sphi 0, %s107
    $region4: #{tpu_custom_call.1} parent=1 // loop_header_branch
      %12 = sbr.rel (%p10) target = $region8
    $region5: #{tpu_custom_call.1} parent=1 // loop_body
      %s14 = ssub.s32 %s9, 1
      %s15 = ssub.s32 %s9, 2
      %s22 = sadd.s32 1, %s17
      %p23 = scmp.ge.s32.totalorder %s22, 2
      %s24 = scalar_select %p23, 0, %s22
      %s25 = sadd.s32 1, %s16
      %s26 = scalar_select %p23, %s25, %s16
      %p27 = scmp.ge.s32.totalorder %s26, 2
      %s28 = scalar_select %p27, 0, %s26
      %s29 = ssub.s32 %s16, %s28
      %s30 = ssub.s32 %s17, %s24
      %s31 = sor.u32 %s29, %s30
      %p32 = scmp.eq.s32.totalorder %s31, 0
      %s34 = sadd.s32 %s33, 1
      %s35 = scalar_select %p32, %s33, %s34
      %p38 = pneg %p32
      %p39 = scmp.eq.s32.totalorder %s9, 3
      %p40 = por %p38, %p39
      %p41 = scmp.ne.s32.totalorder %s33, %s36
      %p42 = scmp.eq.s32.totalorder %s9, 0
      %p43 = por %p41, %p42
      %p44 = scmp.ne.s32.totalorder %s33, %s36
      %p45 = scmp.eq.s32.totalorder %s14, 3
      %p46 = por %p44, %p45
      %p47 = scmp.ne.s32.totalorder %s36, %s37
      %p48 = scmp.eq.s32.totalorder %s14, 0
      %p49 = por %p47, %p48
      %p50 = scmp.ne.s32.totalorder %s36, %s37
      %p51 = scmp.eq.s32.totalorder %s15, 3
      %p52 = por %p50, %p51
      %p54 = scmp.ne.s32.totalorder %s37, %s53
      %p55 = scmp.eq.s32.totalorder %s15, 0
      %p56 = por %p54, %p55
      %s58 = sadd.s32 %s57, 1
      %p61 = scmp.eq.s32.totalorder %s9, 3
      %p62 = scmp.ne.s32.totalorder %s57, %s59
      %p63 = scmp.eq.s32.totalorder %s9, 0
      %p64 = por %p62, %p63
      %p65 = scmp.ne.s32.totalorder %s57, %s59
      %p66 = scmp.eq.s32.totalorder %s14, 3
      %p67 = por %p65, %p66
      %p68 = scmp.ne.s32.totalorder %s59, %s60
      %p69 = scmp.eq.s32.totalorder %s14, 0
      %p70 = por %p68, %p69
      %p71 = scmp.ne.s32.totalorder %s59, %s60
      %p72 = scmp.eq.s32.totalorder %s15, 3
      %p73 = por %p71, %p72
      %p75 = scmp.ne.s32.totalorder %s60, %s74
      %p76 = scmp.eq.s32.totalorder %s15, 0
      %p77 = por %p75, %p76
      %s79 = sadd.s32 %s78, 1
      %p82 = scmp.eq.s32.totalorder %s9, 3
      %p83 = scmp.ne.s32.totalorder %s78, %s80
      %p84 = scmp.eq.s32.totalorder %s9, 0
      %p85 = por %p83, %p84
      %p86 = scmp.ne.s32.totalorder %s78, %s80
      %p87 = scmp.eq.s32.totalorder %s14, 3
      %p88 = por %p86, %p87
      %p89 = scmp.ne.s32.totalorder %s80, %s81
      %p90 = scmp.eq.s32.totalorder %s14, 0
      %p91 = por %p89, %p90
      %p92 = scmp.ne.s32.totalorder %s80, %s81
      %p93 = scmp.eq.s32.totalorder %s15, 3
      %p94 = por %p92, %p93
      %p96 = scmp.ne.s32.totalorder %s81, %s95
      %p97 = scmp.eq.s32.totalorder %s15, 0
      %p98 = por %p96, %p97
      %s99 = ssub.s32 %s16, %s28
      %s100 = ssub.s32 %s17, %s24
      %s101 = sor.u32 %s99, %s100
      %p102 = scmp.eq.s32.totalorder %s101, 0
      %s104 = sadd.s32 %s103, 1
      %s105 = scalar_select %p102, %s103, %s104
      %p108 = pneg %p102
      %p109 = scmp.eq.s32.totalorder %s9, 3
      %p110 = por %p108, %p109
      %p111 = scmp.ne.s32.totalorder %s103, %s106
      %p112 = scmp.eq.s32.totalorder %s9, 0
      %p113 = por %p111, %p112
      %p114 = scmp.ne.s32.totalorder %s103, %s106
      %p115 = scmp.eq.s32.totalorder %s14, 3
      %p116 = por %p114, %p115
      %p117 = scmp.ne.s32.totalorder %s106, %s107
      %p118 = scmp.eq.s32.totalorder %s14, 0
      %p119 = por %p117, %p118
      %p120 = scmp.ne.s32.totalorder %s106, %s107
      %p121 = scmp.eq.s32.totalorder %s15, 3
      %p122 = por %p120, %p121
      %p124 = scmp.ne.s32.totalorder %s107, %s123
      %p125 = scmp.eq.s32.totalorder %s15, 0
      %p126 = por %p124, %p125
      %p127 = scmp.le.s32.totalorder 1, %s9
      %p128 = scmp.lt.s32.totalorder %s9, 5
      %p129 = pnand %p127, %p128
      %p130 = pneg %p129
      // Predicated region
      $region9: #{tpu_custom_call.1} parent=5 // pred_check
        _
      $region10: #{tpu_custom_call.1} parent=5 // pred_check_branch
        %132 = sbr.rel (%p129) target = $region12
      $region11: #{tpu_custom_call.1} parent=5 // pred_region
        %s133 = ssub.s32 %s9, 1
        // Predicated region
        $region13: #{tpu_custom_call.1} parent=11 // pred_check
          %p134 = pneg %p70
        $region14: #{tpu_custom_call.1} parent=11 // pred_check_branch
          %136 = sbr.rel (%p134) target = $region16
        $region15: #{tpu_custom_call.1} parent=11 // pred_region
          _
        $region16: #{tpu_custom_call.1} parent=11 // pred_fallthru
          _
        // Predicated region
        $region17: #{tpu_custom_call.1} parent=11 // pred_check
          %p137 = pneg %p91
        $region18: #{tpu_custom_call.1} parent=11 // pred_check_branch
          %139 = sbr.rel (%p137) target = $region20
        $region19: #{tpu_custom_call.1} parent=11 // pred_region
          _
        $region20: #{tpu_custom_call.1} parent=11 // pred_fallthru
          _
      $region12: #{tpu_custom_call.1} parent=5 // pred_fallthru
        _
      %p140 = scmp.lt.s32.totalorder %s9, 4
      // Predicated region
      $region21: #{tpu_custom_call.1} parent=5 // pred_check
        %p141 = pneg %p140
      $region22: #{tpu_custom_call.1} parent=5 // pred_check_branch
        %143 = sbr.rel (%p141) target = $region24
      $region23: #{tpu_custom_call.1} parent=5 // pred_region
        // Predicated region
        $region25: #{tpu_custom_call.1} parent=23 // pred_check
          %p144 = pneg %p43
        $region26: #{tpu_custom_call.1} parent=23 // pred_check_branch
          %146 = sbr.rel (%p144) target = $region28
        $region27: #{tpu_custom_call.1} parent=23 // pred_region
          %s147 = sand.u32 %s33, 1
          %s148 = sand.u32 %s33, 1
          %s149 = smul.addr %s148, 1024
          %s150 = scalar_lea.vmem [#allocation2], %s149
          %s151 = smul.addr %s16, 256
          %s152 = sadd.s32 %s17, %s151
          %s153 = smul.addr %s152, 8
          %s154 = scalar_lea.vmem %s0, %s153
          // Predicated region
          $region29: #{tpu_custom_call.1} parent=27 // pred_check
            _
          $region30: #{tpu_custom_call.1} parent=27 // pred_check_branch
            %156 = sbr.rel (0) target = $region32
          $region31: #{tpu_custom_call.1} parent=27 // pred_region
            // Predicated region
            $region33: #{tpu_custom_call.1} parent=31 // pred_check
              _
            $region34: #{tpu_custom_call.1} parent=31 // pred_check_branch
              %158 = sbr.rel (0) target = $region36
            $region35: #{tpu_custom_call.1} parent=31 // pred_region
              // Predicated region
              $region48: #{tpu_custom_call.1} parent=35 // pred_check
                _
              $region49: #{tpu_custom_call.1} parent=35 // pred_check_branch
                %427 = sbr.rel (0) target = $region51
              $region50: #{tpu_custom_call.1} parent=35 // pred_region
                loop: start=0, step=1, limit=1
                $region52: #{tpu_custom_call.1} parent=50 // loop_pre_header
                  _
                $region53: #{tpu_custom_call.1} parent=50 // loop_header
                  %s429 = sphi 0, %s433
                  %p430 = scmp.ge.s32.totalorder %s429, 1
                  %s434 = sphi %s154, %s154
                  %s435 = sphi %s150, %s150
                $region54: #{tpu_custom_call.1} parent=50 // loop_header_branch
                  %432 = sbr.rel (%p430) target = $region58
                $region55: #{tpu_custom_call.1} parent=50 // loop_body
                  %v436 = vld [vmem:[%s434] sm:$0xff]
                  %437 = vst [vmem:[%s435] sm:$0xff] %v436
                  %v438 = vld [vmem:[%s434 + $0x10] sm:$0xff]
                  %439 = vst [vmem:[%s435 + $0x8] sm:$0xff] %v438
                  %v440 = vld [vmem:[%s434 + $0x20] sm:$0xff]
                  %441 = vst [vmem:[%s435 + $0x10] sm:$0xff] %v440
                  %v442 = vld [vmem:[%s434 + $0x30] sm:$0xff]
                  %443 = vst [vmem:[%s435 + $0x18] sm:$0xff] %v442
                  %v444 = vld [vmem:[%s434 + $0x40] sm:$0xff]
                  %445 = vst [vmem:[%s435 + $0x20] sm:$0xff] %v444
                  %v446 = vld [vmem:[%s434 + $0x50] sm:$0xff]
                  %447 = vst [vmem:[%s435 + $0x28] sm:$0xff] %v446
                  %v448 = vld [vmem:[%s434 + $0x60] sm:$0xff]
                  %449 = vst [vmem:[%s435 + $0x30] sm:$0xff] %v448
                  %v450 = vld [vmem:[%s434 + $0x70] sm:$0xff]
                  %451 = vst [vmem:[%s435 + $0x38] sm:$0xff] %v450
                  %v452 = vld [vmem:[%s434 + $0x80] sm:$0xff]
                  %453 = vst [vmem:[%s435 + $0x40] sm:$0xff] %v452
                  %v454 = vld [vmem:[%s434 + $0x90] sm:$0xff]
                  %455 = vst [vmem:[%s435 + $0x48] sm:$0xff] %v454
                  %v456 = vld [vmem:[%s434 + $0xa0] sm:$0xff]
                  %457 = vst [vmem:[%s435 + $0x50] sm:$0xff] %v456
                  %v458 = vld [vmem:[%s434 + $0xb0] sm:$0xff]
                  %459 = vst [vmem:[%s435 + $0x58] sm:$0xff] %v458
                  %v460 = vld [vmem:[%s434 + $0xc0] sm:$0xff]
                  %461 = vst [vmem:[%s435 + $0x60] sm:$0xff] %v460
                  %v462 = vld [vmem:[%s434 + $0xd0] sm:$0xff]
                  %463 = vst [vmem:[%s435 + $0x68] sm:$0xff] %v462
                  %v464 = vld [vmem:[%s434 + $0xe0] sm:$0xff]
                  %465 = vst [vmem:[%s435 + $0x70] sm:$0xff] %v464
                  %v466 = vld [vmem:[%s434 + $0xf0] sm:$0xff]
                  %467 = vst [vmem:[%s435 + $0x78] sm:$0xff] %v466
                  %v468 = vld [vmem:[%s434 + $0x100] sm:$0xff]
                  %469 = vst [vmem:[%s435 + $0x80] sm:$0xff] %v468
                  %v470 = vld [vmem:[%s434 + $0x110] sm:$0xff]
                  %471 = vst [vmem:[%s435 + $0x88] sm:$0xff] %v470
                  %v472 = vld [vmem:[%s434 + $0x120] sm:$0xff]
                  %473 = vst [vmem:[%s435 + $0x90] sm:$0xff] %v472
                  %v474 = vld [vmem:[%s434 + $0x130] sm:$0xff]
                  %475 = vst [vmem:[%s435 + $0x98] sm:$0xff] %v474
                  %v476 = vld [vmem:[%s434 + $0x140] sm:$0xff]
                  %477 = vst [vmem:[%s435 + $0xa0] sm:$0xff] %v476
                  %v478 = vld [vmem:[%s434 + $0x150] sm:$0xff]
                  %479 = vst [vmem:[%s435 + $0xa8] sm:$0xff] %v478
                  %v480 = vld [vmem:[%s434 + $0x160] sm:$0xff]
                  %481 = vst [vmem:[%s435 + $0xb0] sm:$0xff] %v480
                  %v482 = vld [vmem:[%s434 + $0x170] sm:$0xff]
                  %483 = vst [vmem:[%s435 + $0xb8] sm:$0xff] %v482
                  %v484 = vld [vmem:[%s434 + $0x180] sm:$0xff]
                  %485 = vst [vmem:[%s435 + $0xc0] sm:$0xff] %v484
                  %v486 = vld [vmem:[%s434 + $0x190] sm:$0xff]
                  %487 = vst [vmem:[%s435 + $0xc8] sm:$0xff] %v486
                  %v488 = vld [vmem:[%s434 + $0x1a0] sm:$0xff]
                  %489 = vst [vmem:[%s435 + $0xd0] sm:$0xff] %v488
                  %v490 = vld [vmem:[%s434 + $0x1b0] sm:$0xff]
                  %491 = vst [vmem:[%s435 + $0xd8] sm:$0xff] %v490
                  %v492 = vld [vmem:[%s434 + $0x1c0] sm:$0xff]
                  %493 = vst [vmem:[%s435 + $0xe0] sm:$0xff] %v492
                  %v494 = vld [vmem:[%s434 + $0x1d0] sm:$0xff]
                  %495 = vst [vmem:[%s435 + $0xe8] sm:$0xff] %v494
                  %v496 = vld [vmem:[%s434 + $0x1e0] sm:$0xff]
                  %497 = vst [vmem:[%s435 + $0xf0] sm:$0xff] %v496
                  %v498 = vld [vmem:[%s434 + $0x1f0] sm:$0xff]
                  %499 = vst [vmem:[%s435 + $0xf8] sm:$0xff] %v498
                  %v500 = vld [vmem:[%s434 + $0x200] sm:$0xff]
                  %501 = vst [vmem:[%s435 + $0x100] sm:$0xff] %v500
                  %v502 = vld [vmem:[%s434 + $0x210] sm:$0xff]
                  %503 = vst [vmem:[%s435 + $0x108] sm:$0xff] %v502
                  %v504 = vld [vmem:[%s434 + $0x220] sm:$0xff]
                  %505 = vst [vmem:[%s435 + $0x110] sm:$0xff] %v504
                  %v506 = vld [vmem:[%s434 + $0x230] sm:$0xff]
                  %507 = vst [vmem:[%s435 + $0x118] sm:$0xff] %v506
                  %v508 = vld [vmem:[%s434 + $0x240] sm:$0xff]
                  %509 = vst [vmem:[%s435 + $0x120] sm:$0xff] %v508
                  %v510 = vld [vmem:[%s434 + $0x250] sm:$0xff]
                  %511 = vst [vmem:[%s435 + $0x128] sm:$0xff] %v510
                  %v512 = vld [vmem:[%s434 + $0x260] sm:$0xff]
                  %513 = vst [vmem:[%s435 + $0x130] sm:$0xff] %v512
                  %v514 = vld [vmem:[%s434 + $0x270] sm:$0xff]
                  %515 = vst [vmem:[%s435 + $0x138] sm:$0xff] %v514
                  %v516 = vld [vmem:[%s434 + $0x280] sm:$0xff]
                  %517 = vst [vmem:[%s435 + $0x140] sm:$0xff] %v516
                  %v518 = vld [vmem:[%s434 + $0x290] sm:$0xff]
                  %519 = vst [vmem:[%s435 + $0x148] sm:$0xff] %v518
                  %v520 = vld [vmem:[%s434 + $0x2a0] sm:$0xff]
                  %521 = vst [vmem:[%s435 + $0x150] sm:$0xff] %v520
                  %v522 = vld [vmem:[%s434 + $0x2b0] sm:$0xff]
                  %523 = vst [vmem:[%s435 + $0x158] sm:$0xff] %v522
                  %v524 = vld [vmem:[%s434 + $0x2c0] sm:$0xff]
                  %525 = vst [vmem:[%s435 + $0x160] sm:$0xff] %v524
                  %v526 = vld [vmem:[%s434 + $0x2d0] sm:$0xff]
                  %527 = vst [vmem:[%s435 + $0x168] sm:$0xff] %v526
                  %v528 = vld [vmem:[%s434 + $0x2e0] sm:$0xff]
                  %529 = vst [vmem:[%s435 + $0x170] sm:$0xff] %v528
                  %v530 = vld [vmem:[%s434 + $0x2f0] sm:$0xff]
                  %531 = vst [vmem:[%s435 + $0x178] sm:$0xff] %v530
                  %v532 = vld [vmem:[%s434 + $0x300] sm:$0xff]
                  %533 = vst [vmem:[%s435 + $0x180] sm:$0xff] %v532
                  %v534 = vld [vmem:[%s434 + $0x310] sm:$0xff]
                  %535 = vst [vmem:[%s435 + $0x188] sm:$0xff] %v534
                  %v536 = vld [vmem:[%s434 + $0x320] sm:$0xff]
                  %537 = vst [vmem:[%s435 + $0x190] sm:$0xff] %v536
                  %v538 = vld [vmem:[%s434 + $0x330] sm:$0xff]
                  %539 = vst [vmem:[%s435 + $0x198] sm:$0xff] %v538
                  %v540 = vld [vmem:[%s434 + $0x340] sm:$0xff]
                  %541 = vst [vmem:[%s435 + $0x1a0] sm:$0xff] %v540
                  %v542 = vld [vmem:[%s434 + $0x350] sm:$0xff]
                  %543 = vst [vmem:[%s435 + $0x1a8] sm:$0xff] %v542
                  %v544 = vld [vmem:[%s434 + $0x360] sm:$0xff]
                  %545 = vst [vmem:[%s435 + $0x1b0] sm:$0xff] %v544
                  %v546 = vld [vmem:[%s434 + $0x370] sm:$0xff]
                  %547 = vst [vmem:[%s435 + $0x1b8] sm:$0xff] %v546
                  %v548 = vld [vmem:[%s434 + $0x380] sm:$0xff]
                  %549 = vst [vmem:[%s435 + $0x1c0] sm:$0xff] %v548
                  %v550 = vld [vmem:[%s434 + $0x390] sm:$0xff]
                  %551 = vst [vmem:[%s435 + $0x1c8] sm:$0xff] %v550
                  %v552 = vld [vmem:[%s434 + $0x3a0] sm:$0xff]
                  %553 = vst [vmem:[%s435 + $0x1d0] sm:$0xff] %v552
                  %v554 = vld [vmem:[%s434 + $0x3b0] sm:$0xff]
                  %555 = vst [vmem:[%s435 + $0x1d8] sm:$0xff] %v554
                  %v556 = vld [vmem:[%s434 + $0x3c0] sm:$0xff]
                  %557 = vst [vmem:[%s435 + $0x1e0] sm:$0xff] %v556
                  %v558 = vld [vmem:[%s434 + $0x3d0] sm:$0xff]
                  %559 = vst [vmem:[%s435 + $0x1e8] sm:$0xff] %v558
                  %v560 = vld [vmem:[%s434 + $0x3e0] sm:$0xff]
                  %561 = vst [vmem:[%s435 + $0x1f0] sm:$0xff] %v560
                  %v562 = vld [vmem:[%s434 + $0x3f0] sm:$0xff]
                  %563 = vst [vmem:[%s435 + $0x1f8] sm:$0xff] %v562
                  %v564 = vld [vmem:[%s434 + $0x400] sm:$0xff]
                  %565 = vst [vmem:[%s435 + $0x200] sm:$0xff] %v564
                  %v566 = vld [vmem:[%s434 + $0x410] sm:$0xff]
                  %567 = vst [vmem:[%s435 + $0x208] sm:$0xff] %v566
                  %v568 = vld [vmem:[%s434 + $0x420] sm:$0xff]
                  %569 = vst [vmem:[%s435 + $0x210] sm:$0xff] %v568
                  %v570 = vld [vmem:[%s434 + $0x430] sm:$0xff]
                  %571 = vst [vmem:[%s435 + $0x218] sm:$0xff] %v570
                  %v572 = vld [vmem:[%s434 + $0x440] sm:$0xff]
                  %573 = vst [vmem:[%s435 + $0x220] sm:$0xff] %v572
                  %v574 = vld [vmem:[%s434 + $0x450] sm:$0xff]
                  %575 = vst [vmem:[%s435 + $0x228] sm:$0xff] %v574
                  %v576 = vld [vmem:[%s434 + $0x460] sm:$0xff]
                  %577 = vst [vmem:[%s435 + $0x230] sm:$0xff] %v576
                  %v578 = vld [vmem:[%s434 + $0x470] sm:$0xff]
                  %579 = vst [vmem:[%s435 + $0x238] sm:$0xff] %v578
                  %v580 = vld [vmem:[%s434 + $0x480] sm:$0xff]
                  %581 = vst [vmem:[%s435 + $0x240] sm:$0xff] %v580
                  %v582 = vld [vmem:[%s434 + $0x490] sm:$0xff]
                  %583 = vst [vmem:[%s435 + $0x248] sm:$0xff] %v582
                  %v584 = vld [vmem:[%s434 + $0x4a0] sm:$0xff]
                  %585 = vst [vmem:[%s435 + $0x250] sm:$0xff] %v584
                  %v586 = vld [vmem:[%s434 + $0x4b0] sm:$0xff]
                  %587 = vst [vmem:[%s435 + $0x258] sm:$0xff] %v586
                  %v588 = vld [vmem:[%s434 + $0x4c0] sm:$0xff]
                  %589 = vst [vmem:[%s435 + $0x260] sm:$0xff] %v588
                  %v590 = vld [vmem:[%s434 + $0x4d0] sm:$0xff]
                  %591 = vst [vmem:[%s435 + $0x268] sm:$0xff] %v590
                  %v592 = vld [vmem:[%s434 + $0x4e0] sm:$0xff]
                  %593 = vst [vmem:[%s435 + $0x270] sm:$0xff] %v592
                  %v594 = vld [vmem:[%s434 + $0x4f0] sm:$0xff]
                  %595 = vst [vmem:[%s435 + $0x278] sm:$0xff] %v594
                  %v596 = vld [vmem:[%s434 + $0x500] sm:$0xff]
                  %597 = vst [vmem:[%s435 + $0x280] sm:$0xff] %v596
                  %v598 = vld [vmem:[%s434 + $0x510] sm:$0xff]
                  %599 = vst [vmem:[%s435 + $0x288] sm:$0xff] %v598
                  %v600 = vld [vmem:[%s434 + $0x520] sm:$0xff]
                  %601 = vst [vmem:[%s435 + $0x290] sm:$0xff] %v600
                  %v602 = vld [vmem:[%s434 + $0x530] sm:$0xff]
                  %603 = vst [vmem:[%s435 + $0x298] sm:$0xff] %v602
                  %v604 = vld [vmem:[%s434 + $0x540] sm:$0xff]
                  %605 = vst [vmem:[%s435 + $0x2a0] sm:$0xff] %v604
                  %v606 = vld [vmem:[%s434 + $0x550] sm:$0xff]
                  %607 = vst [vmem:[%s435 + $0x2a8] sm:$0xff] %v606
                  %v608 = vld [vmem:[%s434 + $0x560] sm:$0xff]
                  %609 = vst [vmem:[%s435 + $0x2b0] sm:$0xff] %v608
                  %v610 = vld [vmem:[%s434 + $0x570] sm:$0xff]
                  %611 = vst [vmem:[%s435 + $0x2b8] sm:$0xff] %v610
                  %v612 = vld [vmem:[%s434 + $0x580] sm:$0xff]
                  %613 = vst [vmem:[%s435 + $0x2c0] sm:$0xff] %v612
                  %v614 = vld [vmem:[%s434 + $0x590] sm:$0xff]
                  %615 = vst [vmem:[%s435 + $0x2c8] sm:$0xff] %v614
                  %v616 = vld [vmem:[%s434 + $0x5a0] sm:$0xff]
                  %617 = vst [vmem:[%s435 + $0x2d0] sm:$0xff] %v616
                  %v618 = vld [vmem:[%s434 + $0x5b0] sm:$0xff]
                  %619 = vst [vmem:[%s435 + $0x2d8] sm:$0xff] %v618
                  %v620 = vld [vmem:[%s434 + $0x5c0] sm:$0xff]
                  %621 = vst [vmem:[%s435 + $0x2e0] sm:$0xff] %v620
                  %v622 = vld [vmem:[%s434 + $0x5d0] sm:$0xff]
                  %623 = vst [vmem:[%s435 + $0x2e8] sm:$0xff] %v622
                  %v624 = vld [vmem:[%s434 + $0x5e0] sm:$0xff]
                  %625 = vst [vmem:[%s435 + $0x2f0] sm:$0xff] %v624
                  %v626 = vld [vmem:[%s434 + $0x5f0] sm:$0xff]
                  %627 = vst [vmem:[%s435 + $0x2f8] sm:$0xff] %v626
                  %v628 = vld [vmem:[%s434 + $0x600] sm:$0xff]
                  %629 = vst [vmem:[%s435 + $0x300] sm:$0xff] %v628
                  %v630 = vld [vmem:[%s434 + $0x610] sm:$0xff]
                  %631 = vst [vmem:[%s435 + $0x308] sm:$0xff] %v630
                  %v632 = vld [vmem:[%s434 + $0x620] sm:$0xff]
                  %633 = vst [vmem:[%s435 + $0x310] sm:$0xff] %v632
                  %v634 = vld [vmem:[%s434 + $0x630] sm:$0xff]
                  %635 = vst [vmem:[%s435 + $0x318] sm:$0xff] %v634
                  %v636 = vld [vmem:[%s434 + $0x640] sm:$0xff]
                  %637 = vst [vmem:[%s435 + $0x320] sm:$0xff] %v636
                  %v638 = vld [vmem:[%s434 + $0x650] sm:$0xff]
                  %639 = vst [vmem:[%s435 + $0x328] sm:$0xff] %v638
                  %v640 = vld [vmem:[%s434 + $0x660] sm:$0xff]
                  %641 = vst [vmem:[%s435 + $0x330] sm:$0xff] %v640
                  %v642 = vld [vmem:[%s434 + $0x670] sm:$0xff]
                  %643 = vst [vmem:[%s435 + $0x338] sm:$0xff] %v642
                  %v644 = vld [vmem:[%s434 + $0x680] sm:$0xff]
                  %645 = vst [vmem:[%s435 + $0x340] sm:$0xff] %v644
                  %v646 = vld [vmem:[%s434 + $0x690] sm:$0xff]
                  %647 = vst [vmem:[%s435 + $0x348] sm:$0xff] %v646
                  %v648 = vld [vmem:[%s434 + $0x6a0] sm:$0xff]
                  %649 = vst [vmem:[%s435 + $0x350] sm:$0xff] %v648
                  %v650 = vld [vmem:[%s434 + $0x6b0] sm:$0xff]
                  %651 = vst [vmem:[%s435 + $0x358] sm:$0xff] %v650
                  %v652 = vld [vmem:[%s434 + $0x6c0] sm:$0xff]
                  %653 = vst [vmem:[%s435 + $0x360] sm:$0xff] %v652
                  %v654 = vld [vmem:[%s434 + $0x6d0] sm:$0xff]
                  %655 = vst [vmem:[%s435 + $0x368] sm:$0xff] %v654
                  %v656 = vld [vmem:[%s434 + $0x6e0] sm:$0xff]
                  %657 = vst [vmem:[%s435 + $0x370] sm:$0xff] %v656
                  %v658 = vld [vmem:[%s434 + $0x6f0] sm:$0xff]
                  %659 = vst [vmem:[%s435 + $0x378] sm:$0xff] %v658
                  %v660 = vld [vmem:[%s434 + $0x700] sm:$0xff]
                  %661 = vst [vmem:[%s435 + $0x380] sm:$0xff] %v660
                  %v662 = vld [vmem:[%s434 + $0x710] sm:$0xff]
                  %663 = vst [vmem:[%s435 + $0x388] sm:$0xff] %v662
                  %v664 = vld [vmem:[%s434 + $0x720] sm:$0xff]
                  %665 = vst [vmem:[%s435 + $0x390] sm:$0xff] %v664
                  %v666 = vld [vmem:[%s434 + $0x730] sm:$0xff]
                  %667 = vst [vmem:[%s435 + $0x398] sm:$0xff] %v666
                  %v668 = vld [vmem:[%s434 + $0x740] sm:$0xff]
                  %669 = vst [vmem:[%s435 + $0x3a0] sm:$0xff] %v668
                  %v670 = vld [vmem:[%s434 + $0x750] sm:$0xff]
                  %671 = vst [vmem:[%s435 + $0x3a8] sm:$0xff] %v670
                  %v672 = vld [vmem:[%s434 + $0x760] sm:$0xff]
                  %673 = vst [vmem:[%s435 + $0x3b0] sm:$0xff] %v672
                  %v674 = vld [vmem:[%s434 + $0x770] sm:$0xff]
                  %675 = vst [vmem:[%s435 + $0x3b8] sm:$0xff] %v674
                  %v676 = vld [vmem:[%s434 + $0x780] sm:$0xff]
                  %677 = vst [vmem:[%s435 + $0x3c0] sm:$0xff] %v676
                  %v678 = vld [vmem:[%s434 + $0x790] sm:$0xff]
                  %679 = vst [vmem:[%s435 + $0x3c8] sm:$0xff] %v678
                  %v680 = vld [vmem:[%s434 + $0x7a0] sm:$0xff]
                  %681 = vst [vmem:[%s435 + $0x3d0] sm:$0xff] %v680
                  %v682 = vld [vmem:[%s434 + $0x7b0] sm:$0xff]
                  %683 = vst [vmem:[%s435 + $0x3d8] sm:$0xff] %v682
                  %v684 = vld [vmem:[%s434 + $0x7c0] sm:$0xff]
                  %685 = vst [vmem:[%s435 + $0x3e0] sm:$0xff] %v684
                  %v686 = vld [vmem:[%s434 + $0x7d0] sm:$0xff]
                  %687 = vst [vmem:[%s435 + $0x3e8] sm:$0xff] %v686
                  %v688 = vld [vmem:[%s434 + $0x7e0] sm:$0xff]
                  %689 = vst [vmem:[%s435 + $0x3f0] sm:$0xff] %v688
                  %v690 = vld [vmem:[%s434 + $0x7f0] sm:$0xff]
                  %691 = vst [vmem:[%s435 + $0x3f8] sm:$0xff] %v690
                $region56: #{tpu_custom_call.1} parent=50 // loop_footer
                  %s433 = sadd.s32 1, %s429
                $region57: #{tpu_custom_call.1} parent=50 // loop_footer_branch
                  %428 = sbr.rel target = $region53
                $region58: #{tpu_custom_call.1} parent=50 // loop_exit
                  _
              $region51: #{tpu_custom_call.1} parent=35 // pred_fallthru
                _
              // Predicated region
              $region59: #{tpu_custom_call.1} parent=35 // pred_check
                _
              $region60: #{tpu_custom_call.1} parent=35 // pred_check_branch
                %693 = sbr.rel target = $region62
              $region61: #{tpu_custom_call.1} parent=35 // pred_region
                _
              $region62: #{tpu_custom_call.1} parent=35 // pred_fallthru
                _
            $region36: #{tpu_custom_call.1} parent=31 // pred_fallthru
              _
            // Predicated region
            $region37: #{tpu_custom_call.1} parent=31 // pred_check
              _
            $region38: #{tpu_custom_call.1} parent=31 // pred_check_branch
              %160 = sbr.rel target = $region40
            $region39: #{tpu_custom_call.1} parent=31 // pred_region
              loop: start=0, step=1, limit=1
              $region41: #{tpu_custom_call.1} parent=39 // loop_pre_header
                _
              $region42: #{tpu_custom_call.1} parent=39 // loop_header
                %s163 = sphi 0, %s167
                %p164 = scmp.ge.s32.totalorder %s163, 1
                %s168 = sphi %s154, %s154
                %s169 = sphi %s150, %s150
              $region43: #{tpu_custom_call.1} parent=39 // loop_header_branch
                %166 = sbr.rel (%p164) target = $region47
              $region44: #{tpu_custom_call.1} parent=39 // loop_body
                %v170 = vld [vmem:[%s168] sm:$0xff]
                %171 = vst [vmem:[%s169] sm:$0xff] %v170
                %v172 = vld [vmem:[%s168 + $0x10] sm:$0xff]
                %173 = vst [vmem:[%s169 + $0x8] sm:$0xff] %v172
                %v174 = vld [vmem:[%s168 + $0x20] sm:$0xff]
                %175 = vst [vmem:[%s169 + $0x10] sm:$0xff] %v174
                %v176 = vld [vmem:[%s168 + $0x30] sm:$0xff]
                %177 = vst [vmem:[%s169 + $0x18] sm:$0xff] %v176
                %v178 = vld [vmem:[%s168 + $0x40] sm:$0xff]
                %179 = vst [vmem:[%s169 + $0x20] sm:$0xff] %v178
                %v180 = vld [vmem:[%s168 + $0x50] sm:$0xff]
                %181 = vst [vmem:[%s169 + $0x28] sm:$0xff] %v180
                %v182 = vld [vmem:[%s168 + $0x60] sm:$0xff]
                %183 = vst [vmem:[%s169 + $0x30] sm:$0xff] %v182
                %v184 = vld [vmem:[%s168 + $0x70] sm:$0xff]
                %185 = vst [vmem:[%s169 + $0x38] sm:$0xff] %v184
                %v186 = vld [vmem:[%s168 + $0x80] sm:$0xff]
                %187 = vst [vmem:[%s169 + $0x40] sm:$0xff] %v186
                %v188 = vld [vmem:[%s168 + $0x90] sm:$0xff]
                %189 = vst [vmem:[%s169 + $0x48] sm:$0xff] %v188
                %v190 = vld [vmem:[%s168 + $0xa0] sm:$0xff]
                %191 = vst [vmem:[%s169 + $0x50] sm:$0xff] %v190
                %v192 = vld [vmem:[%s168 + $0xb0] sm:$0xff]
                %193 = vst [vmem:[%s169 + $0x58] sm:$0xff] %v192
                %v194 = vld [vmem:[%s168 + $0xc0] sm:$0xff]
                %195 = vst [vmem:[%s169 + $0x60] sm:$0xff] %v194
                %v196 = vld [vmem:[%s168 + $0xd0] sm:$0xff]
                %197 = vst [vmem:[%s169 + $0x68] sm:$0xff] %v196
                %v198 = vld [vmem:[%s168 + $0xe0] sm:$0xff]
                %199 = vst [vmem:[%s169 + $0x70] sm:$0xff] %v198
                %v200 = vld [vmem:[%s168 + $0xf0] sm:$0xff]
                %201 = vst [vmem:[%s169 + $0x78] sm:$0xff] %v200
                %v202 = vld [vmem:[%s168 + $0x100] sm:$0xff]
                %203 = vst [vmem:[%s169 + $0x80] sm:$0xff] %v202
                %v204 = vld [vmem:[%s168 + $0x110] sm:$0xff]
                %205 = vst [vmem:[%s169 + $0x88] sm:$0xff] %v204
                %v206 = vld [vmem:[%s168 + $0x120] sm:$0xff]
                %207 = vst [vmem:[%s169 + $0x90] sm:$0xff] %v206
                %v208 = vld [vmem:[%s168 + $0x130] sm:$0xff]
                %209 = vst [vmem:[%s169 + $0x98] sm:$0xff] %v208
                %v210 = vld [vmem:[%s168 + $0x140] sm:$0xff]
                %211 = vst [vmem:[%s169 + $0xa0] sm:$0xff] %v210
                %v212 = vld [vmem:[%s168 + $0x150] sm:$0xff]
                %213 = vst [vmem:[%s169 + $0xa8] sm:$0xff] %v212
                %v214 = vld [vmem:[%s168 + $0x160] sm:$0xff]
                %215 = vst [vmem:[%s169 + $0xb0] sm:$0xff] %v214
                %v216 = vld [vmem:[%s168 + $0x170] sm:$0xff]
                %217 = vst [vmem:[%s169 + $0xb8] sm:$0xff] %v216
                %v218 = vld [vmem:[%s168 + $0x180] sm:$0xff]
                %219 = vst [vmem:[%s169 + $0xc0] sm:$0xff] %v218
                %v220 = vld [vmem:[%s168 + $0x190] sm:$0xff]
                %221 = vst [vmem:[%s169 + $0xc8] sm:$0xff] %v220
                %v222 = vld [vmem:[%s168 + $0x1a0] sm:$0xff]
                %223 = vst [vmem:[%s169 + $0xd0] sm:$0xff] %v222
                %v224 = vld [vmem:[%s168 + $0x1b0] sm:$0xff]
                %225 = vst [vmem:[%s169 + $0xd8] sm:$0xff] %v224
                %v226 = vld [vmem:[%s168 + $0x1c0] sm:$0xff]
                %227 = vst [vmem:[%s169 + $0xe0] sm:$0xff] %v226
                %v228 = vld [vmem:[%s168 + $0x1d0] sm:$0xff]
                %229 = vst [vmem:[%s169 + $0xe8] sm:$0xff] %v228
                %v230 = vld [vmem:[%s168 + $0x1e0] sm:$0xff]
                %231 = vst [vmem:[%s169 + $0xf0] sm:$0xff] %v230
                %v232 = vld [vmem:[%s168 + $0x1f0] sm:$0xff]
                %233 = vst [vmem:[%s169 + $0xf8] sm:$0xff] %v232
                %v234 = vld [vmem:[%s168 + $0x200] sm:$0xff]
                %235 = vst [vmem:[%s169 + $0x100] sm:$0xff] %v234
                %v236 = vld [vmem:[%s168 + $0x210] sm:$0xff]
                %237 = vst [vmem:[%s169 + $0x108] sm:$0xff] %v236
                %v238 = vld [vmem:[%s168 + $0x220] sm:$0xff]
                %239 = vst [vmem:[%s169 + $0x110] sm:$0xff] %v238
                %v240 = vld [vmem:[%s168 + $0x230] sm:$0xff]
                %241 = vst [vmem:[%s169 + $0x118] sm:$0xff] %v240
                %v242 = vld [vmem:[%s168 + $0x240] sm:$0xff]
                %243 = vst [vmem:[%s169 + $0x120] sm:$0xff] %v242
                %v244 = vld [vmem:[%s168 + $0x250] sm:$0xff]
                %245 = vst [vmem:[%s169 + $0x128] sm:$0xff] %v244
                %v246 = vld [vmem:[%s168 + $0x260] sm:$0xff]
                %247 = vst [vmem:[%s169 + $0x130] sm:$0xff] %v246
                %v248 = vld [vmem:[%s168 + $0x270] sm:$0xff]
                %249 = vst [vmem:[%s169 + $0x138] sm:$0xff] %v248
                %v250 = vld [vmem:[%s168 + $0x280] sm:$0xff]
                %251 = vst [vmem:[%s169 + $0x140] sm:$0xff] %v250
                %v252 = vld [vmem:[%s168 + $0x290] sm:$0xff]
                %253 = vst [vmem:[%s169 + $0x148] sm:$0xff] %v252
                %v254 = vld [vmem:[%s168 + $0x2a0] sm:$0xff]
                %255 = vst [vmem:[%s169 + $0x150] sm:$0xff] %v254
                %v256 = vld [vmem:[%s168 + $0x2b0] sm:$0xff]
                %257 = vst [vmem:[%s169 + $0x158] sm:$0xff] %v256
                %v258 = vld [vmem:[%s168 + $0x2c0] sm:$0xff]
                %259 = vst [vmem:[%s169 + $0x160] sm:$0xff] %v258
                %v260 = vld [vmem:[%s168 + $0x2d0] sm:$0xff]
                %261 = vst [vmem:[%s169 + $0x168] sm:$0xff] %v260
                %v262 = vld [vmem:[%s168 + $0x2e0] sm:$0xff]
                %263 = vst [vmem:[%s169 + $0x170] sm:$0xff] %v262
                %v264 = vld [vmem:[%s168 + $0x2f0] sm:$0xff]
                %265 = vst [vmem:[%s169 + $0x178] sm:$0xff] %v264
                %v266 = vld [vmem:[%s168 + $0x300] sm:$0xff]
                %267 = vst [vmem:[%s169 + $0x180] sm:$0xff] %v266
                %v268 = vld [vmem:[%s168 + $0x310] sm:$0xff]
                %269 = vst [vmem:[%s169 + $0x188] sm:$0xff] %v268
                %v270 = vld [vmem:[%s168 + $0x320] sm:$0xff]
                %271 = vst [vmem:[%s169 + $0x190] sm:$0xff] %v270
                %v272 = vld [vmem:[%s168 + $0x330] sm:$0xff]
                %273 = vst [vmem:[%s169 + $0x198] sm:$0xff] %v272
                %v274 = vld [vmem:[%s168 + $0x340] sm:$0xff]
                %275 = vst [vmem:[%s169 + $0x1a0] sm:$0xff] %v274
                %v276 = vld [vmem:[%s168 + $0x350] sm:$0xff]
                %277 = vst [vmem:[%s169 + $0x1a8] sm:$0xff] %v276
                %v278 = vld [vmem:[%s168 + $0x360] sm:$0xff]
                %279 = vst [vmem:[%s169 + $0x1b0] sm:$0xff] %v278
                %v280 = vld [vmem:[%s168 + $0x370] sm:$0xff]
                %281 = vst [vmem:[%s169 + $0x1b8] sm:$0xff] %v280
                %v282 = vld [vmem:[%s168 + $0x380] sm:$0xff]
                %283 = vst [vmem:[%s169 + $0x1c0] sm:$0xff] %v282
                %v284 = vld [vmem:[%s168 + $0x390] sm:$0xff]
                %285 = vst [vmem:[%s169 + $0x1c8] sm:$0xff] %v284
                %v286 = vld [vmem:[%s168 + $0x3a0] sm:$0xff]
                %287 = vst [vmem:[%s169 + $0x1d0] sm:$0xff] %v286
                %v288 = vld [vmem:[%s168 + $0x3b0] sm:$0xff]
                %289 = vst [vmem:[%s169 + $0x1d8] sm:$0xff] %v288
                %v290 = vld [vmem:[%s168 + $0x3c0] sm:$0xff]
                %291 = vst [vmem:[%s169 + $0x1e0] sm:$0xff] %v290
                %v292 = vld [vmem:[%s168 + $0x3d0] sm:$0xff]
                %293 = vst [vmem:[%s169 + $0x1e8] sm:$0xff] %v292
                %v294 = vld [vmem:[%s168 + $0x3e0] sm:$0xff]
                %295 = vst [vmem:[%s169 + $0x1f0] sm:$0xff] %v294
                %v296 = vld [vmem:[%s168 + $0x3f0] sm:$0xff]
                %297 = vst [vmem:[%s169 + $0x1f8] sm:$0xff] %v296
                %v298 = vld [vmem:[%s168 + $0x400] sm:$0xff]
                %299 = vst [vmem:[%s169 + $0x200] sm:$0xff] %v298
                %v300 = vld [vmem:[%s168 + $0x410] sm:$0xff]
                %301 = vst [vmem:[%s169 + $0x208] sm:$0xff] %v300
                %v302 = vld [vmem:[%s168 + $0x420] sm:$0xff]
                %303 = vst [vmem:[%s169 + $0x210] sm:$0xff] %v302
                %v304 = vld [vmem:[%s168 + $0x430] sm:$0xff]
                %305 = vst [vmem:[%s169 + $0x218] sm:$0xff] %v304
                %v306 = vld [vmem:[%s168 + $0x440] sm:$0xff]
                %307 = vst [vmem:[%s169 + $0x220] sm:$0xff] %v306
                %v308 = vld [vmem:[%s168 + $0x450] sm:$0xff]
                %309 = vst [vmem:[%s169 + $0x228] sm:$0xff] %v308
                %v310 = vld [vmem:[%s168 + $0x460] sm:$0xff]
                %311 = vst [vmem:[%s169 + $0x230] sm:$0xff] %v310
                %v312 = vld [vmem:[%s168 + $0x470] sm:$0xff]
                %313 = vst [vmem:[%s169 + $0x238] sm:$0xff] %v312
                %v314 = vld [vmem:[%s168 + $0x480] sm:$0xff]
                %315 = vst [vmem:[%s169 + $0x240] sm:$0xff] %v314
                %v316 = vld [vmem:[%s168 + $0x490] sm:$0xff]
                %317 = vst [vmem:[%s169 + $0x248] sm:$0xff] %v316
                %v318 = vld [vmem:[%s168 + $0x4a0] sm:$0xff]
                %319 = vst [vmem:[%s169 + $0x250] sm:$0xff] %v318
                %v320 = vld [vmem:[%s168 + $0x4b0] sm:$0xff]
                %321 = vst [vmem:[%s169 + $0x258] sm:$0xff] %v320
                %v322 = vld [vmem:[%s168 + $0x4c0] sm:$0xff]
                %323 = vst [vmem:[%s169 + $0x260] sm:$0xff] %v322
                %v324 = vld [vmem:[%s168 + $0x4d0] sm:$0xff]
                %325 = vst [vmem:[%s169 + $0x268] sm:$0xff] %v324
                %v326 = vld [vmem:[%s168 + $0x4e0] sm:$0xff]
                %327 = vst [vmem:[%s169 + $0x270] sm:$0xff] %v326
                %v328 = vld [vmem:[%s168 + $0x4f0] sm:$0xff]
                %329 = vst [vmem:[%s169 + $0x278] sm:$0xff] %v328
                %v330 = vld [vmem:[%s168 + $0x500] sm:$0xff]
                %331 = vst [vmem:[%s169 + $0x280] sm:$0xff] %v330
                %v332 = vld [vmem:[%s168 + $0x510] sm:$0xff]
                %333 = vst [vmem:[%s169 + $0x288] sm:$0xff] %v332
                %v334 = vld [vmem:[%s168 + $0x520] sm:$0xff]
                %335 = vst [vmem:[%s169 + $0x290] sm:$0xff] %v334
                %v336 = vld [vmem:[%s168 + $0x530] sm:$0xff]
                %337 = vst [vmem:[%s169 + $0x298] sm:$0xff] %v336
                %v338 = vld [vmem:[%s168 + $0x540] sm:$0xff]
                %339 = vst [vmem:[%s169 + $0x2a0] sm:$0xff] %v338
                %v340 = vld [vmem:[%s168 + $0x550] sm:$0xff]
                %341 = vst [vmem:[%s169 + $0x2a8] sm:$0xff] %v340
                %v342 = vld [vmem:[%s168 + $0x560] sm:$0xff]
                %343 = vst [vmem:[%s169 + $0x2b0] sm:$0xff] %v342
                %v344 = vld [vmem:[%s168 + $0x570] sm:$0xff]
                %345 = vst [vmem:[%s169 + $0x2b8] sm:$0xff] %v344
                %v346 = vld [vmem:[%s168 + $0x580] sm:$0xff]
                %347 = vst [vmem:[%s169 + $0x2c0] sm:$0xff] %v346
                %v348 = vld [vmem:[%s168 + $0x590] sm:$0xff]
                %349 = vst [vmem:[%s169 + $0x2c8] sm:$0xff] %v348
                %v350 = vld [vmem:[%s168 + $0x5a0] sm:$0xff]
                %351 = vst [vmem:[%s169 + $0x2d0] sm:$0xff] %v350
                %v352 = vld [vmem:[%s168 + $0x5b0] sm:$0xff]
                %353 = vst [vmem:[%s169 + $0x2d8] sm:$0xff] %v352
                %v354 = vld [vmem:[%s168 + $0x5c0] sm:$0xff]
                %355 = vst [vmem:[%s169 + $0x2e0] sm:$0xff] %v354
                %v356 = vld [vmem:[%s168 + $0x5d0] sm:$0xff]
                %357 = vst [vmem:[%s169 + $0x2e8] sm:$0xff] %v356
                %v358 = vld [vmem:[%s168 + $0x5e0] sm:$0xff]
                %359 = vst [vmem:[%s169 + $0x2f0] sm:$0xff] %v358
                %v360 = vld [vmem:[%s168 + $0x5f0] sm:$0xff]
                %361 = vst [vmem:[%s169 + $0x2f8] sm:$0xff] %v360
                %v362 = vld [vmem:[%s168 + $0x600] sm:$0xff]
                %363 = vst [vmem:[%s169 + $0x300] sm:$0xff] %v362
                %v364 = vld [vmem:[%s168 + $0x610] sm:$0xff]
                %365 = vst [vmem:[%s169 + $0x308] sm:$0xff] %v364
                %v366 = vld [vmem:[%s168 + $0x620] sm:$0xff]
                %367 = vst [vmem:[%s169 + $0x310] sm:$0xff] %v366
                %v368 = vld [vmem:[%s168 + $0x630] sm:$0xff]
                %369 = vst [vmem:[%s169 + $0x318] sm:$0xff] %v368
                %v370 = vld [vmem:[%s168 + $0x640] sm:$0xff]
                %371 = vst [vmem:[%s169 + $0x320] sm:$0xff] %v370
                %v372 = vld [vmem:[%s168 + $0x650] sm:$0xff]
                %373 = vst [vmem:[%s169 + $0x328] sm:$0xff] %v372
                %v374 = vld [vmem:[%s168 + $0x660] sm:$0xff]
                %375 = vst [vmem:[%s169 + $0x330] sm:$0xff] %v374
                %v376 = vld [vmem:[%s168 + $0x670] sm:$0xff]
                %377 = vst [vmem:[%s169 + $0x338] sm:$0xff] %v376
                %v378 = vld [vmem:[%s168 + $0x680] sm:$0xff]
                %379 = vst [vmem:[%s169 + $0x340] sm:$0xff] %v378
                %v380 = vld [vmem:[%s168 + $0x690] sm:$0xff]
                %381 = vst [vmem:[%s169 + $0x348] sm:$0xff] %v380
                %v382 = vld [vmem:[%s168 + $0x6a0] sm:$0xff]
                %383 = vst [vmem:[%s169 + $0x350] sm:$0xff] %v382
                %v384 = vld [vmem:[%s168 + $0x6b0] sm:$0xff]
                %385 = vst [vmem:[%s169 + $0x358] sm:$0xff] %v384
                %v386 = vld [vmem:[%s168 + $0x6c0] sm:$0xff]
                %387 = vst [vmem:[%s169 + $0x360] sm:$0xff] %v386
                %v388 = vld [vmem:[%s168 + $0x6d0] sm:$0xff]
                %389 = vst [vmem:[%s169 + $0x368] sm:$0xff] %v388
                %v390 = vld [vmem:[%s168 + $0x6e0] sm:$0xff]
                %391 = vst [vmem:[%s169 + $0x370] sm:$0xff] %v390
                %v392 = vld [vmem:[%s168 + $0x6f0] sm:$0xff]
                %393 = vst [vmem:[%s169 + $0x378] sm:$0xff] %v392
                %v394 = vld [vmem:[%s168 + $0x700] sm:$0xff]
                %395 = vst [vmem:[%s169 + $0x380] sm:$0xff] %v394
                %v396 = vld [vmem:[%s168 + $0x710] sm:$0xff]
                %397 = vst [vmem:[%s169 + $0x388] sm:$0xff] %v396
                %v398 = vld [vmem:[%s168 + $0x720] sm:$0xff]
                %399 = vst [vmem:[%s169 + $0x390] sm:$0xff] %v398
                %v400 = vld [vmem:[%s168 + $0x730] sm:$0xff]
                %401 = vst [vmem:[%s169 + $0x398] sm:$0xff] %v400
                %v402 = vld [vmem:[%s168 + $0x740] sm:$0xff]
                %403 = vst [vmem:[%s169 + $0x3a0] sm:$0xff] %v402
                %v404 = vld [vmem:[%s168 + $0x750] sm:$0xff]
                %405 = vst [vmem:[%s169 + $0x3a8] sm:$0xff] %v404
                %v406 = vld [vmem:[%s168 + $0x760] sm:$0xff]
                %407 = vst [vmem:[%s169 + $0x3b0] sm:$0xff] %v406
                %v408 = vld [vmem:[%s168 + $0x770] sm:$0xff]
                %409 = vst [vmem:[%s169 + $0x3b8] sm:$0xff] %v408
                %v410 = vld [vmem:[%s168 + $0x780] sm:$0xff]
                %411 = vst [vmem:[%s169 + $0x3c0] sm:$0xff] %v410
                %v412 = vld [vmem:[%s168 + $0x790] sm:$0xff]
                %413 = vst [vmem:[%s169 + $0x3c8] sm:$0xff] %v412
                %v414 = vld [vmem:[%s168 + $0x7a0] sm:$0xff]
                %415 = vst [vmem:[%s169 + $0x3d0] sm:$0xff] %v414
                %v416 = vld [vmem:[%s168 + $0x7b0] sm:$0xff]
                %417 = vst [vmem:[%s169 + $0x3d8] sm:$0xff] %v416
                %v418 = vld [vmem:[%s168 + $0x7c0] sm:$0xff]
                %419 = vst [vmem:[%s169 + $0x3e0] sm:$0xff] %v418
                %v420 = vld [vmem:[%s168 + $0x7d0] sm:$0xff]
                %421 = vst [vmem:[%s169 + $0x3e8] sm:$0xff] %v420
                %v422 = vld [vmem:[%s168 + $0x7e0] sm:$0xff]
                %423 = vst [vmem:[%s169 + $0x3f0] sm:$0xff] %v422
                %v424 = vld [vmem:[%s168 + $0x7f0] sm:$0xff]
                %425 = vst [vmem:[%s169 + $0x3f8] sm:$0xff] %v424
              $region45: #{tpu_custom_call.1} parent=39 // loop_footer
                %s167 = sadd.s32 1, %s163
              $region46: #{tpu_custom_call.1} parent=39 // loop_footer_branch
                %162 = sbr.rel target = $region42
              $region47: #{tpu_custom_call.1} parent=39 // loop_exit
                _
            $region40: #{tpu_custom_call.1} parent=31 // pred_fallthru
              _
          $region32: #{tpu_custom_call.1} parent=27 // pred_fallthru
            _
          %694 = vnop
        $region28: #{tpu_custom_call.1} parent=23 // pred_fallthru
          _
      $region24: #{tpu_custom_call.1} parent=5 // pred_fallthru
        _
      %p695 = scmp.le.s32.totalorder 1, %s9
      %p696 = scmp.lt.s32.totalorder %s9, 5
      %p697 = pnand %p695, %p696
      %p698 = pneg %p697
      // Predicated region
      $region63: #{tpu_custom_call.1} parent=5 // pred_check
        _
      $region64: #{tpu_custom_call.1} parent=5 // pred_check_branch
        %700 = sbr.rel (%p697) target = $region66
      $region65: #{tpu_custom_call.1} parent=5 // pred_region
        %s701 = ssub.s32 %s9, 1
        %s702 = sand.u32 %s36, 1
        %s703 = sand.u32 %s36, 1
        %s704 = smul.addr %s703, 1024
        %s705 = scalar_lea.vmem [#allocation2], %s704
        // Predicated region
        $region67: #{tpu_custom_call.1} parent=65 // pred_check
          %p706 = pneg %p49
        $region68: #{tpu_custom_call.1} parent=65 // pred_check_branch
          %708 = sbr.rel (%p706) target = $region70
        $region69: #{tpu_custom_call.1} parent=65 // pred_region
          _
        $region70: #{tpu_custom_call.1} parent=65 // pred_fallthru
          _
        %s709 = sand.u32 %s36, 1
        %s710 = sand.u32 %s36, 1
        %s711 = smul.addr %s710, 1024
        %s712 = scalar_lea.vmem [#allocation2], %s711
        %p713 = pneg %p49
        %p714 = pneg %p46
        %p715 = pneg %p70
        %p716 = pneg %p67
        %p717 = pneg %p91
        %p718 = pneg %p88
        %p719 = pneg %p119
        %p720 = pneg %p116
        %s721 = sand.u32 %s106, 1
        %s722 = sand.u32 %s106, 1
        %s723 = smul.addr %s722, 1024
        %s724 = scalar_lea.vmem [#allocation3], %s723
        %v725 = vld [vmem:[%s705] sm:$0xff]
        %v726 = vld [vmem:[%s705 + $0x8] sm:$0xff]
        %v727 = vld [vmem:[%s705 + $0x10] sm:$0xff]
        %v728 = vld [vmem:[%s705 + $0x18] sm:$0xff]
        %v729 = vld [vmem:[%s705 + $0x20] sm:$0xff]
        %v730 = vld [vmem:[%s705 + $0x28] sm:$0xff]
        %v731 = vld [vmem:[%s705 + $0x30] sm:$0xff]
        %v732 = vld [vmem:[%s705 + $0x38] sm:$0xff]
        %v733 = vld [vmem:[%s705 + $0x40] sm:$0xff]
        %v734 = vld [vmem:[%s705 + $0x48] sm:$0xff]
        %v735 = vld [vmem:[%s705 + $0x50] sm:$0xff]
        %v736 = vld [vmem:[%s705 + $0x58] sm:$0xff]
        %v737 = vld [vmem:[%s705 + $0x60] sm:$0xff]
        %v738 = vld [vmem:[%s705 + $0x68] sm:$0xff]
        %v739 = vld [vmem:[%s705 + $0x70] sm:$0xff]
        %v740 = vld [vmem:[%s705 + $0x78] sm:$0xff]
        %v741 = vld [vmem:[%s705 + $0x80] sm:$0xff]
        %v742 = vld [vmem:[%s705 + $0x88] sm:$0xff]
        %v743 = vld [vmem:[%s705 + $0x90] sm:$0xff]
        %v744 = vld [vmem:[%s705 + $0x98] sm:$0xff]
        %v745 = vld [vmem:[%s705 + $0xa0] sm:$0xff]
        %v746 = vld [vmem:[%s705 + $0xa8] sm:$0xff]
        %v747 = vld [vmem:[%s705 + $0xb0] sm:$0xff]
        %v748 = vld [vmem:[%s705 + $0xb8] sm:$0xff]
        %v749 = vld [vmem:[%s705 + $0xc0] sm:$0xff]
        %v750 = vld [vmem:[%s705 + $0xc8] sm:$0xff]
        %v751 = vld [vmem:[%s705 + $0xd0] sm:$0xff]
        %v752 = vld [vmem:[%s705 + $0xd8] sm:$0xff]
        %v753 = vld [vmem:[%s705 + $0xe0] sm:$0xff]
        %v754 = vld [vmem:[%s705 + $0xe8] sm:$0xff]
        %v755 = vld [vmem:[%s705 + $0xf0] sm:$0xff]
        %v756 = vld [vmem:[%s705 + $0xf8] sm:$0xff]
        %v757 = vld [vmem:[%s705 + $0x100] sm:$0xff]
        %v758 = vld [vmem:[%s705 + $0x108] sm:$0xff]
        %v759 = vld [vmem:[%s705 + $0x110] sm:$0xff]
        %v760 = vld [vmem:[%s705 + $0x118] sm:$0xff]
        %v761 = vld [vmem:[%s705 + $0x120] sm:$0xff]
        %v762 = vld [vmem:[%s705 + $0x128] sm:$0xff]
        %v763 = vld [vmem:[%s705 + $0x130] sm:$0xff]
        %v764 = vld [vmem:[%s705 + $0x138] sm:$0xff]
        %v765 = vld [vmem:[%s705 + $0x140] sm:$0xff]
        %v766 = vld [vmem:[%s705 + $0x148] sm:$0xff]
        %v767 = vld [vmem:[%s705 + $0x150] sm:$0xff]
        %v768 = vld [vmem:[%s705 + $0x158] sm:$0xff]
        %v769 = vld [vmem:[%s705 + $0x160] sm:$0xff]
        %v770 = vld [vmem:[%s705 + $0x168] sm:$0xff]
        %v771 = vld [vmem:[%s705 + $0x170] sm:$0xff]
        %v772 = vld [vmem:[%s705 + $0x178] sm:$0xff]
        %v773 = vld [vmem:[%s705 + $0x180] sm:$0xff]
        %v774 = vld [vmem:[%s705 + $0x188] sm:$0xff]
        %v775 = vld [vmem:[%s705 + $0x190] sm:$0xff]
        %v776 = vld [vmem:[%s705 + $0x198] sm:$0xff]
        %v777 = vld [vmem:[%s705 + $0x1a0] sm:$0xff]
        %v778 = vld [vmem:[%s705 + $0x1a8] sm:$0xff]
        %v779 = vld [vmem:[%s705 + $0x1b0] sm:$0xff]
        %v780 = vld [vmem:[%s705 + $0x1b8] sm:$0xff]
        %v781 = vld [vmem:[%s705 + $0x1c0] sm:$0xff]
        %v782 = vld [vmem:[%s705 + $0x1c8] sm:$0xff]
        %v783 = vld [vmem:[%s705 + $0x1d0] sm:$0xff]
        %v784 = vld [vmem:[%s705 + $0x1d8] sm:$0xff]
        %v785 = vld [vmem:[%s705 + $0x1e0] sm:$0xff]
        %v786 = vld [vmem:[%s705 + $0x1e8] sm:$0xff]
        %v787 = vld [vmem:[%s705 + $0x1f0] sm:$0xff]
        %v788 = vld [vmem:[%s705 + $0x1f8] sm:$0xff]
        %v789 = vld [vmem:[%s705 + $0x200] sm:$0xff]
        %v790 = vld [vmem:[%s705 + $0x208] sm:$0xff]
        %v791 = vld [vmem:[%s705 + $0x210] sm:$0xff]
        %v792 = vld [vmem:[%s705 + $0x218] sm:$0xff]
        %v793 = vld [vmem:[%s705 + $0x220] sm:$0xff]
        %v794 = vld [vmem:[%s705 + $0x228] sm:$0xff]
        %v795 = vld [vmem:[%s705 + $0x230] sm:$0xff]
        %v796 = vld [vmem:[%s705 + $0x238] sm:$0xff]
        %v797 = vld [vmem:[%s705 + $0x240] sm:$0xff]
        %v798 = vld [vmem:[%s705 + $0x248] sm:$0xff]
        %v799 = vld [vmem:[%s705 + $0x250] sm:$0xff]
        %v800 = vld [vmem:[%s705 + $0x258] sm:$0xff]
        %v801 = vld [vmem:[%s705 + $0x260] sm:$0xff]
        %v802 = vld [vmem:[%s705 + $0x268] sm:$0xff]
        %v803 = vld [vmem:[%s705 + $0x270] sm:$0xff]
        %v804 = vld [vmem:[%s705 + $0x278] sm:$0xff]
        %v805 = vld [vmem:[%s705 + $0x280] sm:$0xff]
        %v806 = vld [vmem:[%s705 + $0x288] sm:$0xff]
        %v807 = vld [vmem:[%s705 + $0x290] sm:$0xff]
        %v808 = vld [vmem:[%s705 + $0x298] sm:$0xff]
        %v809 = vld [vmem:[%s705 + $0x2a0] sm:$0xff]
        %v810 = vld [vmem:[%s705 + $0x2a8] sm:$0xff]
        %v811 = vld [vmem:[%s705 + $0x2b0] sm:$0xff]
        %v812 = vld [vmem:[%s705 + $0x2b8] sm:$0xff]
        %v813 = vld [vmem:[%s705 + $0x2c0] sm:$0xff]
        %v814 = vld [vmem:[%s705 + $0x2c8] sm:$0xff]
        %v815 = vld [vmem:[%s705 + $0x2d0] sm:$0xff]
        %v816 = vld [vmem:[%s705 + $0x2d8] sm:$0xff]
        %v817 = vld [vmem:[%s705 + $0x2e0] sm:$0xff]
        %v818 = vld [vmem:[%s705 + $0x2e8] sm:$0xff]
        %v819 = vld [vmem:[%s705 + $0x2f0] sm:$0xff]
        %v820 = vld [vmem:[%s705 + $0x2f8] sm:$0xff]
        %v821 = vld [vmem:[%s705 + $0x300] sm:$0xff]
        %v822 = vld [vmem:[%s705 + $0x308] sm:$0xff]
        %v823 = vld [vmem:[%s705 + $0x310] sm:$0xff]
        %v824 = vld [vmem:[%s705 + $0x318] sm:$0xff]
        %v825 = vld [vmem:[%s705 + $0x320] sm:$0xff]
        %v826 = vld [vmem:[%s705 + $0x328] sm:$0xff]
        %v827 = vld [vmem:[%s705 + $0x330] sm:$0xff]
        %v828 = vld [vmem:[%s705 + $0x338] sm:$0xff]
        %v829 = vld [vmem:[%s705 + $0x340] sm:$0xff]
        %v830 = vld [vmem:[%s705 + $0x348] sm:$0xff]
        %v831 = vld [vmem:[%s705 + $0x350] sm:$0xff]
        %v832 = vld [vmem:[%s705 + $0x358] sm:$0xff]
        %v833 = vld [vmem:[%s705 + $0x360] sm:$0xff]
        %v834 = vld [vmem:[%s705 + $0x368] sm:$0xff]
        %v835 = vld [vmem:[%s705 + $0x370] sm:$0xff]
        %v836 = vld [vmem:[%s705 + $0x378] sm:$0xff]
        %v837 = vld [vmem:[%s705 + $0x380] sm:$0xff]
        %v838 = vld [vmem:[%s705 + $0x388] sm:$0xff]
        %v839 = vld [vmem:[%s705 + $0x390] sm:$0xff]
        %v840 = vld [vmem:[%s705 + $0x398] sm:$0xff]
        %v841 = vld [vmem:[%s705 + $0x3a0] sm:$0xff]
        %v842 = vld [vmem:[%s705 + $0x3a8] sm:$0xff]
        %v843 = vld [vmem:[%s705 + $0x3b0] sm:$0xff]
        %v844 = vld [vmem:[%s705 + $0x3b8] sm:$0xff]
        %v845 = vld [vmem:[%s705 + $0x3c0] sm:$0xff]
        %v846 = vld [vmem:[%s705 + $0x3c8] sm:$0xff]
        %v847 = vld [vmem:[%s705 + $0x3d0] sm:$0xff]
        %v848 = vld [vmem:[%s705 + $0x3d8] sm:$0xff]
        %v849 = vld [vmem:[%s705 + $0x3e0] sm:$0xff]
        %v850 = vld [vmem:[%s705 + $0x3e8] sm:$0xff]
        %v851 = vld [vmem:[%s705 + $0x3f0] sm:$0xff]
        %v852 = vld [vmem:[%s705 + $0x3f8] sm:$0xff]
        %vm853 = vcmask 130048
        %v854 = vsel %vm853, %v725, 0.0
        %v855 = vsel %vm853, %v726, 0.0
        %v856 = vadd.f32 %v854, %v855
        %v857 = vsel %vm853, %v727, 0.0
        %v858 = vadd.f32 %v856, %v857
        %v859 = vsel %vm853, %v728, 0.0
        %v860 = vadd.f32 %v858, %v859
        %v861 = vsel %vm853, %v729, 0.0
        %v862 = vadd.f32 %v860, %v861
        %v863 = vsel %vm853, %v730, 0.0
        %v864 = vadd.f32 %v862, %v863
        %v865 = vsel %vm853, %v731, 0.0
        %v866 = vadd.f32 %v864, %v865
        %v867 = vsel %vm853, %v732, 0.0
        %v868 = vadd.f32 %v866, %v867
        %v869 = vsel %vm853, %v733, 0.0
        %v870 = vadd.f32 %v868, %v869
        %v871 = vsel %vm853, %v734, 0.0
        %v872 = vadd.f32 %v870, %v871
        %v873 = vsel %vm853, %v735, 0.0
        %v874 = vadd.f32 %v872, %v873
        %v875 = vsel %vm853, %v736, 0.0
        %v876 = vadd.f32 %v874, %v875
        %v877 = vsel %vm853, %v737, 0.0
        %v878 = vadd.f32 %v876, %v877
        %v879 = vsel %vm853, %v738, 0.0
        %v880 = vadd.f32 %v878, %v879
        %v881 = vsel %vm853, %v739, 0.0
        %v882 = vadd.f32 %v880, %v881
        %v883 = vsel %vm853, %v740, 0.0
        %v884 = vadd.f32 %v882, %v883
        %v885 = vsel %vm853, %v741, 0.0
        %v886 = vadd.f32 %v884, %v885
        %v887 = vsel %vm853, %v742, 0.0
        %v888 = vadd.f32 %v886, %v887
        %v889 = vsel %vm853, %v743, 0.0
        %v890 = vadd.f32 %v888, %v889
        %v891 = vsel %vm853, %v744, 0.0
        %v892 = vadd.f32 %v890, %v891
        %v893 = vsel %vm853, %v745, 0.0
        %v894 = vadd.f32 %v892, %v893
        %v895 = vsel %vm853, %v746, 0.0
        %v896 = vadd.f32 %v894, %v895
        %v897 = vsel %vm853, %v747, 0.0
        %v898 = vadd.f32 %v896, %v897
        %v899 = vsel %vm853, %v748, 0.0
        %v900 = vadd.f32 %v898, %v899
        %v901 = vsel %vm853, %v749, 0.0
        %v902 = vadd.f32 %v900, %v901
        %v903 = vsel %vm853, %v750, 0.0
        %v904 = vadd.f32 %v902, %v903
        %v905 = vsel %vm853, %v751, 0.0
        %v906 = vadd.f32 %v904, %v905
        %v907 = vsel %vm853, %v752, 0.0
        %v908 = vadd.f32 %v906, %v907
        %v909 = vsel %vm853, %v753, 0.0
        %v910 = vadd.f32 %v908, %v909
        %v911 = vsel %vm853, %v754, 0.0
        %v912 = vadd.f32 %v910, %v911
        %v913 = vsel %vm853, %v755, 0.0
        %v914 = vadd.f32 %v912, %v913
        %v915 = vsel %vm853, %v756, 0.0
        %v916 = vadd.f32 %v914, %v915
        %v917 = vsel %vm853, %v757, 0.0
        %v918 = vadd.f32 %v916, %v917
        %v919 = vsel %vm853, %v758, 0.0
        %v920 = vadd.f32 %v918, %v919
        %v921 = vsel %vm853, %v759, 0.0
        %v922 = vadd.f32 %v920, %v921
        %v923 = vsel %vm853, %v760, 0.0
        %v924 = vadd.f32 %v922, %v923
        %v925 = vsel %vm853, %v761, 0.0
        %v926 = vadd.f32 %v924, %v925
        %v927 = vsel %vm853, %v762, 0.0
        %v928 = vadd.f32 %v926, %v927
        %v929 = vsel %vm853, %v763, 0.0
        %v930 = vadd.f32 %v928, %v929
        %v931 = vsel %vm853, %v764, 0.0
        %v932 = vadd.f32 %v930, %v931
        %v933 = vsel %vm853, %v765, 0.0
        %v934 = vadd.f32 %v932, %v933
        %v935 = vsel %vm853, %v766, 0.0
        %v936 = vadd.f32 %v934, %v935
        %v937 = vsel %vm853, %v767, 0.0
        %v938 = vadd.f32 %v936, %v937
        %v939 = vsel %vm853, %v768, 0.0
        %v940 = vadd.f32 %v938, %v939
        %v941 = vsel %vm853, %v769, 0.0
        %v942 = vadd.f32 %v940, %v941
        %v943 = vsel %vm853, %v770, 0.0
        %v944 = vadd.f32 %v942, %v943
        %v945 = vsel %vm853, %v771, 0.0
        %v946 = vadd.f32 %v944, %v945
        %v947 = vsel %vm853, %v772, 0.0
        %v948 = vadd.f32 %v946, %v947
        %v949 = vsel %vm853, %v773, 0.0
        %v950 = vadd.f32 %v948, %v949
        %v951 = vsel %vm853, %v774, 0.0
        %v952 = vadd.f32 %v950, %v951
        %v953 = vsel %vm853, %v775, 0.0
        %v954 = vadd.f32 %v952, %v953
        %v955 = vsel %vm853, %v776, 0.0
        %v956 = vadd.f32 %v954, %v955
        %v957 = vsel %vm853, %v777, 0.0
        %v958 = vadd.f32 %v956, %v957
        %v959 = vsel %vm853, %v778, 0.0
        %v960 = vadd.f32 %v958, %v959
        %v961 = vsel %vm853, %v779, 0.0
        %v962 = vadd.f32 %v960, %v961
        %v963 = vsel %vm853, %v780, 0.0
        %v964 = vadd.f32 %v962, %v963
        %v965 = vsel %vm853, %v781, 0.0
        %v966 = vadd.f32 %v964, %v965
        %v967 = vsel %vm853, %v782, 0.0
        %v968 = vadd.f32 %v966, %v967
        %v969 = vsel %vm853, %v783, 0.0
        %v970 = vadd.f32 %v968, %v969
        %v971 = vsel %vm853, %v784, 0.0
        %v972 = vadd.f32 %v970, %v971
        %v973 = vsel %vm853, %v785, 0.0
        %v974 = vadd.f32 %v972, %v973
        %v975 = vsel %vm853, %v786, 0.0
        %v976 = vadd.f32 %v974, %v975
        %v977 = vsel %vm853, %v787, 0.0
        %v978 = vadd.f32 %v976, %v977
        %v979 = vsel %vm853, %v788, 0.0
        %v980 = vadd.f32 %v978, %v979
        %v981 = vsel %vm853, %v789, 0.0
        %v982 = vadd.f32 %v980, %v981
        %v983 = vsel %vm853, %v790, 0.0
        %v984 = vadd.f32 %v982, %v983
        %v985 = vsel %vm853, %v791, 0.0
        %v986 = vadd.f32 %v984, %v985
        %v987 = vsel %vm853, %v792, 0.0
        %v988 = vadd.f32 %v986, %v987
        %v989 = vsel %vm853, %v793, 0.0
        %v990 = vadd.f32 %v988, %v989
        %v991 = vsel %vm853, %v794, 0.0
        %v992 = vadd.f32 %v990, %v991
        %v993 = vsel %vm853, %v795, 0.0
        %v994 = vadd.f32 %v992, %v993
        %v995 = vsel %vm853, %v796, 0.0
        %v996 = vadd.f32 %v994, %v995
        %v997 = vsel %vm853, %v797, 0.0
        %v998 = vadd.f32 %v996, %v997
        %v999 = vsel %vm853, %v798, 0.0
        %v1000 = vadd.f32 %v998, %v999
        %v1001 = vsel %vm853, %v799, 0.0
        %v1002 = vadd.f32 %v1000, %v1001
        %v1003 = vsel %vm853, %v800, 0.0
        %v1004 = vadd.f32 %v1002, %v1003
        %v1005 = vsel %vm853, %v801, 0.0
        %v1006 = vadd.f32 %v1004, %v1005
        %v1007 = vsel %vm853, %v802, 0.0
        %v1008 = vadd.f32 %v1006, %v1007
        %v1009 = vsel %vm853, %v803, 0.0
        %v1010 = vadd.f32 %v1008, %v1009
        %v1011 = vsel %vm853, %v804, 0.0
        %v1012 = vadd.f32 %v1010, %v1011
        %v1013 = vsel %vm853, %v805, 0.0
        %v1014 = vadd.f32 %v1012, %v1013
        %v1015 = vsel %vm853, %v806, 0.0
        %v1016 = vadd.f32 %v1014, %v1015
        %v1017 = vsel %vm853, %v807, 0.0
        %v1018 = vadd.f32 %v1016, %v1017
        %v1019 = vsel %vm853, %v808, 0.0
        %v1020 = vadd.f32 %v1018, %v1019
        %v1021 = vsel %vm853, %v809, 0.0
        %v1022 = vadd.f32 %v1020, %v1021
        %v1023 = vsel %vm853, %v810, 0.0
        %v1024 = vadd.f32 %v1022, %v1023
        %v1025 = vsel %vm853, %v811, 0.0
        %v1026 = vadd.f32 %v1024, %v1025
        %v1027 = vsel %vm853, %v812, 0.0
        %v1028 = vadd.f32 %v1026, %v1027
        %v1029 = vsel %vm853, %v813, 0.0
        %v1030 = vadd.f32 %v1028, %v1029
        %v1031 = vsel %vm853, %v814, 0.0
        %v1032 = vadd.f32 %v1030, %v1031
        %v1033 = vsel %vm853, %v815, 0.0
        %v1034 = vadd.f32 %v1032, %v1033
        %v1035 = vsel %vm853, %v816, 0.0
        %v1036 = vadd.f32 %v1034, %v1035
        %v1037 = vsel %vm853, %v817, 0.0
        %v1038 = vadd.f32 %v1036, %v1037
        %v1039 = vsel %vm853, %v818, 0.0
        %v1040 = vadd.f32 %v1038, %v1039
        %v1041 = vsel %vm853, %v819, 0.0
        %v1042 = vadd.f32 %v1040, %v1041
        %v1043 = vsel %vm853, %v820, 0.0
        %v1044 = vadd.f32 %v1042, %v1043
        %v1045 = vsel %vm853, %v821, 0.0
        %v1046 = vadd.f32 %v1044, %v1045
        %v1047 = vsel %vm853, %v822, 0.0
        %v1048 = vadd.f32 %v1046, %v1047
        %v1049 = vsel %vm853, %v823, 0.0
        %v1050 = vadd.f32 %v1048, %v1049
        %v1051 = vsel %vm853, %v824, 0.0
        %v1052 = vadd.f32 %v1050, %v1051
        %v1053 = vsel %vm853, %v825, 0.0
        %v1054 = vadd.f32 %v1052, %v1053
        %v1055 = vsel %vm853, %v826, 0.0
        %v1056 = vadd.f32 %v1054, %v1055
        %v1057 = vsel %vm853, %v827, 0.0
        %v1058 = vadd.f32 %v1056, %v1057
        %v1059 = vsel %vm853, %v828, 0.0
        %v1060 = vadd.f32 %v1058, %v1059
        %v1061 = vsel %vm853, %v829, 0.0
        %v1062 = vadd.f32 %v1060, %v1061
        %v1063 = vsel %vm853, %v830, 0.0
        %v1064 = vadd.f32 %v1062, %v1063
        %v1065 = vsel %vm853, %v831, 0.0
        %v1066 = vadd.f32 %v1064, %v1065
        %v1067 = vsel %vm853, %v832, 0.0
        %v1068 = vadd.f32 %v1066, %v1067
        %v1069 = vsel %vm853, %v833, 0.0
        %v1070 = vadd.f32 %v1068, %v1069
        %v1071 = vsel %vm853, %v834, 0.0
        %v1072 = vadd.f32 %v1070, %v1071
        %v1073 = vsel %vm853, %v835, 0.0
        %v1074 = vadd.f32 %v1072, %v1073
        %v1075 = vsel %vm853, %v836, 0.0
        %v1076 = vadd.f32 %v1074, %v1075
        %v1077 = vsel %vm853, %v837, 0.0
        %v1078 = vadd.f32 %v1076, %v1077
        %v1079 = vsel %vm853, %v838, 0.0
        %v1080 = vadd.f32 %v1078, %v1079
        %v1081 = vsel %vm853, %v839, 0.0
        %v1082 = vadd.f32 %v1080, %v1081
        %v1083 = vsel %vm853, %v840, 0.0
        %v1084 = vadd.f32 %v1082, %v1083
        %v1085 = vsel %vm853, %v841, 0.0
        %v1086 = vadd.f32 %v1084, %v1085
        %v1087 = vsel %vm853, %v842, 0.0
        %v1088 = vadd.f32 %v1086, %v1087
        %v1089 = vsel %vm853, %v843, 0.0
        %v1090 = vadd.f32 %v1088, %v1089
        %v1091 = vsel %vm853, %v844, 0.0
        %v1092 = vadd.f32 %v1090, %v1091
        %v1093 = vsel %vm853, %v845, 0.0
        %v1094 = vadd.f32 %v1092, %v1093
        %v1095 = vsel %vm853, %v846, 0.0
        %v1096 = vadd.f32 %v1094, %v1095
        %v1097 = vsel %vm853, %v847, 0.0
        %v1098 = vadd.f32 %v1096, %v1097
        %v1099 = vsel %vm853, %v848, 0.0
        %v1100 = vadd.f32 %v1098, %v1099
        %v1101 = vsel %vm853, %v849, 0.0
        %v1102 = vadd.f32 %v1100, %v1101
        %v1103 = vsel %vm853, %v850, 0.0
        %v1104 = vadd.f32 %v1102, %v1103
        %v1105 = vsel %vm853, %v851, 0.0
        %v1106 = vadd.f32 %v1104, %v1105
        %v1107 = vsel %vm853, %v852, 0.0
        %v1108 = vadd.f32 %v1106, %v1107
        %v1109 = vrcp.pop 128.0
        %v1110 = vmul.f32 %v1108, %v1109
        %v1111 = vsub.f32 %v725, %v1110
        %v1112 = vsub.f32 %v726, %v1110
        %v1113 = vsub.f32 %v727, %v1110
        %v1114 = vsub.f32 %v728, %v1110
        %v1115 = vsub.f32 %v729, %v1110
        %v1116 = vsub.f32 %v730, %v1110
        %v1117 = vsub.f32 %v731, %v1110
        %v1118 = vsub.f32 %v732, %v1110
        %v1119 = vsub.f32 %v733, %v1110
        %v1120 = vsub.f32 %v734, %v1110
        %v1121 = vsub.f32 %v735, %v1110
        %v1122 = vsub.f32 %v736, %v1110
        %v1123 = vsub.f32 %v737, %v1110
        %v1124 = vsub.f32 %v738, %v1110
        %v1125 = vsub.f32 %v739, %v1110
        %v1126 = vsub.f32 %v740, %v1110
        %v1127 = vsub.f32 %v741, %v1110
        %v1128 = vsub.f32 %v742, %v1110
        %v1129 = vsub.f32 %v743, %v1110
        %v1130 = vsub.f32 %v744, %v1110
        %v1131 = vsub.f32 %v745, %v1110
        %v1132 = vsub.f32 %v746, %v1110
        %v1133 = vsub.f32 %v747, %v1110
        %v1134 = vsub.f32 %v748, %v1110
        %v1135 = vsub.f32 %v749, %v1110
        %v1136 = vsub.f32 %v750, %v1110
        %v1137 = vsub.f32 %v751, %v1110
        %v1138 = vsub.f32 %v752, %v1110
        %v1139 = vsub.f32 %v753, %v1110
        %v1140 = vsub.f32 %v754, %v1110
        %v1141 = vsub.f32 %v755, %v1110
        %v1142 = vsub.f32 %v756, %v1110
        %v1143 = vsub.f32 %v757, %v1110
        %v1144 = vsub.f32 %v758, %v1110
        %v1145 = vsub.f32 %v759, %v1110
        %v1146 = vsub.f32 %v760, %v1110
        %v1147 = vsub.f32 %v761, %v1110
        %v1148 = vsub.f32 %v762, %v1110
        %v1149 = vsub.f32 %v763, %v1110
        %v1150 = vsub.f32 %v764, %v1110
        %v1151 = vsub.f32 %v765, %v1110
        %v1152 = vsub.f32 %v766, %v1110
        %v1153 = vsub.f32 %v767, %v1110
        %v1154 = vsub.f32 %v768, %v1110
        %v1155 = vsub.f32 %v769, %v1110
        %v1156 = vsub.f32 %v770, %v1110
        %v1157 = vsub.f32 %v771, %v1110
        %v1158 = vsub.f32 %v772, %v1110
        %v1159 = vsub.f32 %v773, %v1110
        %v1160 = vsub.f32 %v774, %v1110
        %v1161 = vsub.f32 %v775, %v1110
        %v1162 = vsub.f32 %v776, %v1110
        %v1163 = vsub.f32 %v777, %v1110
        %v1164 = vsub.f32 %v778, %v1110
        %v1165 = vsub.f32 %v779, %v1110
        %v1166 = vsub.f32 %v780, %v1110
        %v1167 = vsub.f32 %v781, %v1110
        %v1168 = vsub.f32 %v782, %v1110
        %v1169 = vsub.f32 %v783, %v1110
        %v1170 = vsub.f32 %v784, %v1110
        %v1171 = vsub.f32 %v785, %v1110
        %v1172 = vsub.f32 %v786, %v1110
        %v1173 = vsub.f32 %v787, %v1110
        %v1174 = vsub.f32 %v788, %v1110
        %v1175 = vsub.f32 %v789, %v1110
        %v1176 = vsub.f32 %v790, %v1110
        %v1177 = vsub.f32 %v791, %v1110
        %v1178 = vsub.f32 %v792, %v1110
        %v1179 = vsub.f32 %v793, %v1110
        %v1180 = vsub.f32 %v794, %v1110
        %v1181 = vsub.f32 %v795, %v1110
        %v1182 = vsub.f32 %v796, %v1110
        %v1183 = vsub.f32 %v797, %v1110
        %v1184 = vsub.f32 %v798, %v1110
        %v1185 = vsub.f32 %v799, %v1110
        %v1186 = vsub.f32 %v800, %v1110
        %v1187 = vsub.f32 %v801, %v1110
        %v1188 = vsub.f32 %v802, %v1110
        %v1189 = vsub.f32 %v803, %v1110
        %v1190 = vsub.f32 %v804, %v1110
        %v1191 = vsub.f32 %v805, %v1110
        %v1192 = vsub.f32 %v806, %v1110
        %v1193 = vsub.f32 %v807, %v1110
        %v1194 = vsub.f32 %v808, %v1110
        %v1195 = vsub.f32 %v809, %v1110
        %v1196 = vsub.f32 %v810, %v1110
        %v1197 = vsub.f32 %v811, %v1110
        %v1198 = vsub.f32 %v812, %v1110
        %v1199 = vsub.f32 %v813, %v1110
        %v1200 = vsub.f32 %v814, %v1110
        %v1201 = vsub.f32 %v815, %v1110
        %v1202 = vsub.f32 %v816, %v1110
        %v1203 = vsub.f32 %v817, %v1110
        %v1204 = vsub.f32 %v818, %v1110
        %v1205 = vsub.f32 %v819, %v1110
        %v1206 = vsub.f32 %v820, %v1110
        %v1207 = vsub.f32 %v821, %v1110
        %v1208 = vsub.f32 %v822, %v1110
        %v1209 = vsub.f32 %v823, %v1110
        %v1210 = vsub.f32 %v824, %v1110
        %v1211 = vsub.f32 %v825, %v1110
        %v1212 = vsub.f32 %v826, %v1110
        %v1213 = vsub.f32 %v827, %v1110
        %v1214 = vsub.f32 %v828, %v1110
        %v1215 = vsub.f32 %v829, %v1110
        %v1216 = vsub.f32 %v830, %v1110
        %v1217 = vsub.f32 %v831, %v1110
        %v1218 = vsub.f32 %v832, %v1110
        %v1219 = vsub.f32 %v833, %v1110
        %v1220 = vsub.f32 %v834, %v1110
        %v1221 = vsub.f32 %v835, %v1110
        %v1222 = vsub.f32 %v836, %v1110
        %v1223 = vsub.f32 %v837, %v1110
        %v1224 = vsub.f32 %v838, %v1110
        %v1225 = vsub.f32 %v839, %v1110
        %v1226 = vsub.f32 %v840, %v1110
        %v1227 = vsub.f32 %v841, %v1110
        %v1228 = vsub.f32 %v842, %v1110
        %v1229 = vsub.f32 %v843, %v1110
        %v1230 = vsub.f32 %v844, %v1110
        %v1231 = vsub.f32 %v845, %v1110
        %v1232 = vsub.f32 %v846, %v1110
        %v1233 = vsub.f32 %v847, %v1110
        %v1234 = vsub.f32 %v848, %v1110
        %v1235 = vsub.f32 %v849, %v1110
        %v1236 = vsub.f32 %v850, %v1110
        %v1237 = vsub.f32 %v851, %v1110
        %v1238 = vsub.f32 %v852, %v1110
        %v1239 = vmul.f32 %v1111, %v1111
        %v1240 = vmul.f32 %v1112, %v1112
        %v1241 = vmul.f32 %v1113, %v1113
        %v1242 = vmul.f32 %v1114, %v1114
        %v1243 = vmul.f32 %v1115, %v1115
        %v1244 = vmul.f32 %v1116, %v1116
        %v1245 = vmul.f32 %v1117, %v1117
        %v1246 = vmul.f32 %v1118, %v1118
        %v1247 = vmul.f32 %v1119, %v1119
        %v1248 = vmul.f32 %v1120, %v1120
        %v1249 = vmul.f32 %v1121, %v1121
        %v1250 = vmul.f32 %v1122, %v1122
        %v1251 = vmul.f32 %v1123, %v1123
        %v1252 = vmul.f32 %v1124, %v1124
        %v1253 = vmul.f32 %v1125, %v1125
        %v1254 = vmul.f32 %v1126, %v1126
        %v1255 = vmul.f32 %v1127, %v1127
        %v1256 = vmul.f32 %v1128, %v1128
        %v1257 = vmul.f32 %v1129, %v1129
        %v1258 = vmul.f32 %v1130, %v1130
        %v1259 = vmul.f32 %v1131, %v1131
        %v1260 = vmul.f32 %v1132, %v1132
        %v1261 = vmul.f32 %v1133, %v1133
        %v1262 = vmul.f32 %v1134, %v1134
        %v1263 = vmul.f32 %v1135, %v1135
        %v1264 = vmul.f32 %v1136, %v1136
        %v1265 = vmul.f32 %v1137, %v1137
        %v1266 = vmul.f32 %v1138, %v1138
        %v1267 = vmul.f32 %v1139, %v1139
        %v1268 = vmul.f32 %v1140, %v1140
        %v1269 = vmul.f32 %v1141, %v1141
        %v1270 = vmul.f32 %v1142, %v1142
        %v1271 = vmul.f32 %v1143, %v1143
        %v1272 = vmul.f32 %v1144, %v1144
        %v1273 = vmul.f32 %v1145, %v1145
        %v1274 = vmul.f32 %v1146, %v1146
        %v1275 = vmul.f32 %v1147, %v1147
        %v1276 = vmul.f32 %v1148, %v1148
        %v1277 = vmul.f32 %v1149, %v1149
        %v1278 = vmul.f32 %v1150, %v1150
        %v1279 = vmul.f32 %v1151, %v1151
        %v1280 = vmul.f32 %v1152, %v1152
        %v1281 = vmul.f32 %v1153, %v1153
        %v1282 = vmul.f32 %v1154, %v1154
        %v1283 = vmul.f32 %v1155, %v1155
        %v1284 = vmul.f32 %v1156, %v1156
        %v1285 = vmul.f32 %v1157, %v1157
        %v1286 = vmul.f32 %v1158, %v1158
        %v1287 = vmul.f32 %v1159, %v1159
        %v1288 = vmul.f32 %v1160, %v1160
        %v1289 = vmul.f32 %v1161, %v1161
        %v1290 = vmul.f32 %v1162, %v1162
        %v1291 = vmul.f32 %v1163, %v1163
        %v1292 = vmul.f32 %v1164, %v1164
        %v1293 = vmul.f32 %v1165, %v1165
        %v1294 = vmul.f32 %v1166, %v1166
        %v1295 = vmul.f32 %v1167, %v1167
        %v1296 = vmul.f32 %v1168, %v1168
        %v1297 = vmul.f32 %v1169, %v1169
        %v1298 = vmul.f32 %v1170, %v1170
        %v1299 = vmul.f32 %v1171, %v1171
        %v1300 = vmul.f32 %v1172, %v1172
        %v1301 = vmul.f32 %v1173, %v1173
        %v1302 = vmul.f32 %v1174, %v1174
        %v1303 = vmul.f32 %v1175, %v1175
        %v1304 = vmul.f32 %v1176, %v1176
        %v1305 = vmul.f32 %v1177, %v1177
        %v1306 = vmul.f32 %v1178, %v1178
        %v1307 = vmul.f32 %v1179, %v1179
        %v1308 = vmul.f32 %v1180, %v1180
        %v1309 = vmul.f32 %v1181, %v1181
        %v1310 = vmul.f32 %v1182, %v1182
        %v1311 = vmul.f32 %v1183, %v1183
        %v1312 = vmul.f32 %v1184, %v1184
        %v1313 = vmul.f32 %v1185, %v1185
        %v1314 = vmul.f32 %v1186, %v1186
        %v1315 = vmul.f32 %v1187, %v1187
        %v1316 = vmul.f32 %v1188, %v1188
        %v1317 = vmul.f32 %v1189, %v1189
        %v1318 = vmul.f32 %v1190, %v1190
        %v1319 = vmul.f32 %v1191, %v1191
        %v1320 = vmul.f32 %v1192, %v1192
        %v1321 = vmul.f32 %v1193, %v1193
        %v1322 = vmul.f32 %v1194, %v1194
        %v1323 = vmul.f32 %v1195, %v1195
        %v1324 = vmul.f32 %v1196, %v1196
        %v1325 = vmul.f32 %v1197, %v1197
        %v1326 = vmul.f32 %v1198, %v1198
        %v1327 = vmul.f32 %v1199, %v1199
        %v1328 = vmul.f32 %v1200, %v1200
        %v1329 = vmul.f32 %v1201, %v1201
        %v1330 = vmul.f32 %v1202, %v1202
        %v1331 = vmul.f32 %v1203, %v1203
        %v1332 = vmul.f32 %v1204, %v1204
        %v1333 = vmul.f32 %v1205, %v1205
        %v1334 = vmul.f32 %v1206, %v1206
        %v1335 = vmul.f32 %v1207, %v1207
        %v1336 = vmul.f32 %v1208, %v1208
        %v1337 = vmul.f32 %v1209, %v1209
        %v1338 = vmul.f32 %v1210, %v1210
        %v1339 = vmul.f32 %v1211, %v1211
        %v1340 = vmul.f32 %v1212, %v1212
        %v1341 = vmul.f32 %v1213, %v1213
        %v1342 = vmul.f32 %v1214, %v1214
        %v1343 = vmul.f32 %v1215, %v1215
        %v1344 = vmul.f32 %v1216, %v1216
        %v1345 = vmul.f32 %v1217, %v1217
        %v1346 = vmul.f32 %v1218, %v1218
        %v1347 = vmul.f32 %v1219, %v1219
        %v1348 = vmul.f32 %v1220, %v1220
        %v1349 = vmul.f32 %v1221, %v1221
        %v1350 = vmul.f32 %v1222, %v1222
        %v1351 = vmul.f32 %v1223, %v1223
        %v1352 = vmul.f32 %v1224, %v1224
        %v1353 = vmul.f32 %v1225, %v1225
        %v1354 = vmul.f32 %v1226, %v1226
        %v1355 = vmul.f32 %v1227, %v1227
        %v1356 = vmul.f32 %v1228, %v1228
        %v1357 = vmul.f32 %v1229, %v1229
        %v1358 = vmul.f32 %v1230, %v1230
        %v1359 = vmul.f32 %v1231, %v1231
        %v1360 = vmul.f32 %v1232, %v1232
        %v1361 = vmul.f32 %v1233, %v1233
        %v1362 = vmul.f32 %v1234, %v1234
        %v1363 = vmul.f32 %v1235, %v1235
        %v1364 = vmul.f32 %v1236, %v1236
        %v1365 = vmul.f32 %v1237, %v1237
        %v1366 = vmul.f32 %v1238, %v1238
        %v1367 = vsel %vm853, %v1239, 0.0
        %v1368 = vsel %vm853, %v1240, 0.0
        %v1369 = vadd.f32 %v1367, %v1368
        %v1370 = vsel %vm853, %v1241, 0.0
        %v1371 = vadd.f32 %v1369, %v1370
        %v1372 = vsel %vm853, %v1242, 0.0
        %v1373 = vadd.f32 %v1371, %v1372
        %v1374 = vsel %vm853, %v1243, 0.0
        %v1375 = vadd.f32 %v1373, %v1374
        %v1376 = vsel %vm853, %v1244, 0.0
        %v1377 = vadd.f32 %v1375, %v1376
        %v1378 = vsel %vm853, %v1245, 0.0
        %v1379 = vadd.f32 %v1377, %v1378
        %v1380 = vsel %vm853, %v1246, 0.0
        %v1381 = vadd.f32 %v1379, %v1380
        %v1382 = vsel %vm853, %v1247, 0.0
        %v1383 = vadd.f32 %v1381, %v1382
        %v1384 = vsel %vm853, %v1248, 0.0
        %v1385 = vadd.f32 %v1383, %v1384
        %v1386 = vsel %vm853, %v1249, 0.0
        %v1387 = vadd.f32 %v1385, %v1386
        %v1388 = vsel %vm853, %v1250, 0.0
        %v1389 = vadd.f32 %v1387, %v1388
        %v1390 = vsel %vm853, %v1251, 0.0
        %v1391 = vadd.f32 %v1389, %v1390
        %v1392 = vsel %vm853, %v1252, 0.0
        %v1393 = vadd.f32 %v1391, %v1392
        %v1394 = vsel %vm853, %v1253, 0.0
        %v1395 = vadd.f32 %v1393, %v1394
        %v1396 = vsel %vm853, %v1254, 0.0
        %v1397 = vadd.f32 %v1395, %v1396
        %v1398 = vsel %vm853, %v1255, 0.0
        %v1399 = vadd.f32 %v1397, %v1398
        %v1400 = vsel %vm853, %v1256, 0.0
        %v1401 = vadd.f32 %v1399, %v1400
        %v1402 = vsel %vm853, %v1257, 0.0
        %v1403 = vadd.f32 %v1401, %v1402
        %v1404 = vsel %vm853, %v1258, 0.0
        %v1405 = vadd.f32 %v1403, %v1404
        %v1406 = vsel %vm853, %v1259, 0.0
        %v1407 = vadd.f32 %v1405, %v1406
        %v1408 = vsel %vm853, %v1260, 0.0
        %v1409 = vadd.f32 %v1407, %v1408
        %v1410 = vsel %vm853, %v1261, 0.0
        %v1411 = vadd.f32 %v1409, %v1410
        %v1412 = vsel %vm853, %v1262, 0.0
        %v1413 = vadd.f32 %v1411, %v1412
        %v1414 = vsel %vm853, %v1263, 0.0
        %v1415 = vadd.f32 %v1413, %v1414
        %v1416 = vsel %vm853, %v1264, 0.0
        %v1417 = vadd.f32 %v1415, %v1416
        %v1418 = vsel %vm853, %v1265, 0.0
        %v1419 = vadd.f32 %v1417, %v1418
        %v1420 = vsel %vm853, %v1266, 0.0
        %v1421 = vadd.f32 %v1419, %v1420
        %v1422 = vsel %vm853, %v1267, 0.0
        %v1423 = vadd.f32 %v1421, %v1422
        %v1424 = vsel %vm853, %v1268, 0.0
        %v1425 = vadd.f32 %v1423, %v1424
        %v1426 = vsel %vm853, %v1269, 0.0
        %v1427 = vadd.f32 %v1425, %v1426
        %v1428 = vsel %vm853, %v1270, 0.0
        %v1429 = vadd.f32 %v1427, %v1428
        %v1430 = vsel %vm853, %v1271, 0.0
        %v1431 = vadd.f32 %v1429, %v1430
        %v1432 = vsel %vm853, %v1272, 0.0
        %v1433 = vadd.f32 %v1431, %v1432
        %v1434 = vsel %vm853, %v1273, 0.0
        %v1435 = vadd.f32 %v1433, %v1434
        %v1436 = vsel %vm853, %v1274, 0.0
        %v1437 = vadd.f32 %v1435, %v1436
        %v1438 = vsel %vm853, %v1275, 0.0
        %v1439 = vadd.f32 %v1437, %v1438
        %v1440 = vsel %vm853, %v1276, 0.0
        %v1441 = vadd.f32 %v1439, %v1440
        %v1442 = vsel %vm853, %v1277, 0.0
        %v1443 = vadd.f32 %v1441, %v1442
        %v1444 = vsel %vm853, %v1278, 0.0
        %v1445 = vadd.f32 %v1443, %v1444
        %v1446 = vsel %vm853, %v1279, 0.0
        %v1447 = vadd.f32 %v1445, %v1446
        %v1448 = vsel %vm853, %v1280, 0.0
        %v1449 = vadd.f32 %v1447, %v1448
        %v1450 = vsel %vm853, %v1281, 0.0
        %v1451 = vadd.f32 %v1449, %v1450
        %v1452 = vsel %vm853, %v1282, 0.0
        %v1453 = vadd.f32 %v1451, %v1452
        %v1454 = vsel %vm853, %v1283, 0.0
        %v1455 = vadd.f32 %v1453, %v1454
        %v1456 = vsel %vm853, %v1284, 0.0
        %v1457 = vadd.f32 %v1455, %v1456
        %v1458 = vsel %vm853, %v1285, 0.0
        %v1459 = vadd.f32 %v1457, %v1458
        %v1460 = vsel %vm853, %v1286, 0.0
        %v1461 = vadd.f32 %v1459, %v1460
        %v1462 = vsel %vm853, %v1287, 0.0
        %v1463 = vadd.f32 %v1461, %v1462
        %v1464 = vsel %vm853, %v1288, 0.0
        %v1465 = vadd.f32 %v1463, %v1464
        %v1466 = vsel %vm853, %v1289, 0.0
        %v1467 = vadd.f32 %v1465, %v1466
        %v1468 = vsel %vm853, %v1290, 0.0
        %v1469 = vadd.f32 %v1467, %v1468
        %v1470 = vsel %vm853, %v1291, 0.0
        %v1471 = vadd.f32 %v1469, %v1470
        %v1472 = vsel %vm853, %v1292, 0.0
        %v1473 = vadd.f32 %v1471, %v1472
        %v1474 = vsel %vm853, %v1293, 0.0
        %v1475 = vadd.f32 %v1473, %v1474
        %v1476 = vsel %vm853, %v1294, 0.0
        %v1477 = vadd.f32 %v1475, %v1476
        %v1478 = vsel %vm853, %v1295, 0.0
        %v1479 = vadd.f32 %v1477, %v1478
        %v1480 = vsel %vm853, %v1296, 0.0
        %v1481 = vadd.f32 %v1479, %v1480
        %v1482 = vsel %vm853, %v1297, 0.0
        %v1483 = vadd.f32 %v1481, %v1482
        %v1484 = vsel %vm853, %v1298, 0.0
        %v1485 = vadd.f32 %v1483, %v1484
        %v1486 = vsel %vm853, %v1299, 0.0
        %v1487 = vadd.f32 %v1485, %v1486
        %v1488 = vsel %vm853, %v1300, 0.0
        %v1489 = vadd.f32 %v1487, %v1488
        %v1490 = vsel %vm853, %v1301, 0.0
        %v1491 = vadd.f32 %v1489, %v1490
        %v1492 = vsel %vm853, %v1302, 0.0
        %v1493 = vadd.f32 %v1491, %v1492
        %v1494 = vsel %vm853, %v1303, 0.0
        %v1495 = vadd.f32 %v1493, %v1494
        %v1496 = vsel %vm853, %v1304, 0.0
        %v1497 = vadd.f32 %v1495, %v1496
        %v1498 = vsel %vm853, %v1305, 0.0
        %v1499 = vadd.f32 %v1497, %v1498
        %v1500 = vsel %vm853, %v1306, 0.0
        %v1501 = vadd.f32 %v1499, %v1500
        %v1502 = vsel %vm853, %v1307, 0.0
        %v1503 = vadd.f32 %v1501, %v1502
        %v1504 = vsel %vm853, %v1308, 0.0
        %v1505 = vadd.f32 %v1503, %v1504
        %v1506 = vsel %vm853, %v1309, 0.0
        %v1507 = vadd.f32 %v1505, %v1506
        %v1508 = vsel %vm853, %v1310, 0.0
        %v1509 = vadd.f32 %v1507, %v1508
        %v1510 = vsel %vm853, %v1311, 0.0
        %v1511 = vadd.f32 %v1509, %v1510
        %v1512 = vsel %vm853, %v1312, 0.0
        %v1513 = vadd.f32 %v1511, %v1512
        %v1514 = vsel %vm853, %v1313, 0.0
        %v1515 = vadd.f32 %v1513, %v1514
        %v1516 = vsel %vm853, %v1314, 0.0
        %v1517 = vadd.f32 %v1515, %v1516
        %v1518 = vsel %vm853, %v1315, 0.0
        %v1519 = vadd.f32 %v1517, %v1518
        %v1520 = vsel %vm853, %v1316, 0.0
        %v1521 = vadd.f32 %v1519, %v1520
        %v1522 = vsel %vm853, %v1317, 0.0
        %v1523 = vadd.f32 %v1521, %v1522
        %v1524 = vsel %vm853, %v1318, 0.0
        %v1525 = vadd.f32 %v1523, %v1524
        %v1526 = vsel %vm853, %v1319, 0.0
        %v1527 = vadd.f32 %v1525, %v1526
        %v1528 = vsel %vm853, %v1320, 0.0
        %v1529 = vadd.f32 %v1527, %v1528
        %v1530 = vsel %vm853, %v1321, 0.0
        %v1531 = vadd.f32 %v1529, %v1530
        %v1532 = vsel %vm853, %v1322, 0.0
        %v1533 = vadd.f32 %v1531, %v1532
        %v1534 = vsel %vm853, %v1323, 0.0
        %v1535 = vadd.f32 %v1533, %v1534
        %v1536 = vsel %vm853, %v1324, 0.0
        %v1537 = vadd.f32 %v1535, %v1536
        %v1538 = vsel %vm853, %v1325, 0.0
        %v1539 = vadd.f32 %v1537, %v1538
        %v1540 = vsel %vm853, %v1326, 0.0
        %v1541 = vadd.f32 %v1539, %v1540
        %v1542 = vsel %vm853, %v1327, 0.0
        %v1543 = vadd.f32 %v1541, %v1542
        %v1544 = vsel %vm853, %v1328, 0.0
        %v1545 = vadd.f32 %v1543, %v1544
        %v1546 = vsel %vm853, %v1329, 0.0
        %v1547 = vadd.f32 %v1545, %v1546
        %v1548 = vsel %vm853, %v1330, 0.0
        %v1549 = vadd.f32 %v1547, %v1548
        %v1550 = vsel %vm853, %v1331, 0.0
        %v1551 = vadd.f32 %v1549, %v1550
        %v1552 = vsel %vm853, %v1332, 0.0
        %v1553 = vadd.f32 %v1551, %v1552
        %v1554 = vsel %vm853, %v1333, 0.0
        %v1555 = vadd.f32 %v1553, %v1554
        %v1556 = vsel %vm853, %v1334, 0.0
        %v1557 = vadd.f32 %v1555, %v1556
        %v1558 = vsel %vm853, %v1335, 0.0
        %v1559 = vadd.f32 %v1557, %v1558
        %v1560 = vsel %vm853, %v1336, 0.0
        %v1561 = vadd.f32 %v1559, %v1560
        %v1562 = vsel %vm853, %v1337, 0.0
        %v1563 = vadd.f32 %v1561, %v1562
        %v1564 = vsel %vm853, %v1338, 0.0
        %v1565 = vadd.f32 %v1563, %v1564
        %v1566 = vsel %vm853, %v1339, 0.0
        %v1567 = vadd.f32 %v1565, %v1566
        %v1568 = vsel %vm853, %v1340, 0.0
        %v1569 = vadd.f32 %v1567, %v1568
        %v1570 = vsel %vm853, %v1341, 0.0
        %v1571 = vadd.f32 %v1569, %v1570
        %v1572 = vsel %vm853, %v1342, 0.0
        %v1573 = vadd.f32 %v1571, %v1572
        %v1574 = vsel %vm853, %v1343, 0.0
        %v1575 = vadd.f32 %v1573, %v1574
        %v1576 = vsel %vm853, %v1344, 0.0
        %v1577 = vadd.f32 %v1575, %v1576
        %v1578 = vsel %vm853, %v1345, 0.0
        %v1579 = vadd.f32 %v1577, %v1578
        %v1580 = vsel %vm853, %v1346, 0.0
        %v1581 = vadd.f32 %v1579, %v1580
        %v1582 = vsel %vm853, %v1347, 0.0
        %v1583 = vadd.f32 %v1581, %v1582
        %v1584 = vsel %vm853, %v1348, 0.0
        %v1585 = vadd.f32 %v1583, %v1584
        %v1586 = vsel %vm853, %v1349, 0.0
        %v1587 = vadd.f32 %v1585, %v1586
        %v1588 = vsel %vm853, %v1350, 0.0
        %v1589 = vadd.f32 %v1587, %v1588
        %v1590 = vsel %vm853, %v1351, 0.0
        %v1591 = vadd.f32 %v1589, %v1590
        %v1592 = vsel %vm853, %v1352, 0.0
        %v1593 = vadd.f32 %v1591, %v1592
        %v1594 = vsel %vm853, %v1353, 0.0
        %v1595 = vadd.f32 %v1593, %v1594
        %v1596 = vsel %vm853, %v1354, 0.0
        %v1597 = vadd.f32 %v1595, %v1596
        %v1598 = vsel %vm853, %v1355, 0.0
        %v1599 = vadd.f32 %v1597, %v1598
        %v1600 = vsel %vm853, %v1356, 0.0
        %v1601 = vadd.f32 %v1599, %v1600
        %v1602 = vsel %vm853, %v1357, 0.0
        %v1603 = vadd.f32 %v1601, %v1602
        %v1604 = vsel %vm853, %v1358, 0.0
        %v1605 = vadd.f32 %v1603, %v1604
        %v1606 = vsel %vm853, %v1359, 0.0
        %v1607 = vadd.f32 %v1605, %v1606
        %v1608 = vsel %vm853, %v1360, 0.0
        %v1609 = vadd.f32 %v1607, %v1608
        %v1610 = vsel %vm853, %v1361, 0.0
        %v1611 = vadd.f32 %v1609, %v1610
        %v1612 = vsel %vm853, %v1362, 0.0
        %v1613 = vadd.f32 %v1611, %v1612
        %v1614 = vsel %vm853, %v1363, 0.0
        %v1615 = vadd.f32 %v1613, %v1614
        %v1616 = vsel %vm853, %v1364, 0.0
        %v1617 = vadd.f32 %v1615, %v1616
        %v1618 = vsel %vm853, %v1365, 0.0
        %v1619 = vadd.f32 %v1617, %v1618
        %v1620 = vsel %vm853, %v1366, 0.0
        %v1621 = vadd.f32 %v1619, %v1620
        %v1622 = vmul.f32 %v1621, %v1109
        %v1623 = vadd.f32 %v1622, 1e-06
        %v1624 = vrsqrt.pop %v1623
        %v1625 = vmul.f32 %v1111, %v1624
        %v1626 = vmul.f32 %v1112, %v1624
        %v1627 = vmul.f32 %v1113, %v1624
        %v1628 = vmul.f32 %v1114, %v1624
        %v1629 = vmul.f32 %v1115, %v1624
        %v1630 = vmul.f32 %v1116, %v1624
        %v1631 = vmul.f32 %v1117, %v1624
        %v1632 = vmul.f32 %v1118, %v1624
        %v1633 = vmul.f32 %v1119, %v1624
        %v1634 = vmul.f32 %v1120, %v1624
        %v1635 = vmul.f32 %v1121, %v1624
        %v1636 = vmul.f32 %v1122, %v1624
        %v1637 = vmul.f32 %v1123, %v1624
        %v1638 = vmul.f32 %v1124, %v1624
        %v1639 = vmul.f32 %v1125, %v1624
        %v1640 = vmul.f32 %v1126, %v1624
        %v1641 = vmul.f32 %v1127, %v1624
        %v1642 = vmul.f32 %v1128, %v1624
        %v1643 = vmul.f32 %v1129, %v1624
        %v1644 = vmul.f32 %v1130, %v1624
        %v1645 = vmul.f32 %v1131, %v1624
        %v1646 = vmul.f32 %v1132, %v1624
        %v1647 = vmul.f32 %v1133, %v1624
        %v1648 = vmul.f32 %v1134, %v1624
        %v1649 = vmul.f32 %v1135, %v1624
        %v1650 = vmul.f32 %v1136, %v1624
        %v1651 = vmul.f32 %v1137, %v1624
        %v1652 = vmul.f32 %v1138, %v1624
        %v1653 = vmul.f32 %v1139, %v1624
        %v1654 = vmul.f32 %v1140, %v1624
        %v1655 = vmul.f32 %v1141, %v1624
        %v1656 = vmul.f32 %v1142, %v1624
        %v1657 = vmul.f32 %v1143, %v1624
        %v1658 = vmul.f32 %v1144, %v1624
        %v1659 = vmul.f32 %v1145, %v1624
        %v1660 = vmul.f32 %v1146, %v1624
        %v1661 = vmul.f32 %v1147, %v1624
        %v1662 = vmul.f32 %v1148, %v1624
        %v1663 = vmul.f32 %v1149, %v1624
        %v1664 = vmul.f32 %v1150, %v1624
        %v1665 = vmul.f32 %v1151, %v1624
        %v1666 = vmul.f32 %v1152, %v1624
        %v1667 = vmul.f32 %v1153, %v1624
        %v1668 = vmul.f32 %v1154, %v1624
        %v1669 = vmul.f32 %v1155, %v1624
        %v1670 = vmul.f32 %v1156, %v1624
        %v1671 = vmul.f32 %v1157, %v1624
        %v1672 = vmul.f32 %v1158, %v1624
        %v1673 = vmul.f32 %v1159, %v1624
        %v1674 = vmul.f32 %v1160, %v1624
        %v1675 = vmul.f32 %v1161, %v1624
        %v1676 = vmul.f32 %v1162, %v1624
        %v1677 = vmul.f32 %v1163, %v1624
        %v1678 = vmul.f32 %v1164, %v1624
        %v1679 = vmul.f32 %v1165, %v1624
        %v1680 = vmul.f32 %v1166, %v1624
        %v1681 = vmul.f32 %v1167, %v1624
        %v1682 = vmul.f32 %v1168, %v1624
        %v1683 = vmul.f32 %v1169, %v1624
        %v1684 = vmul.f32 %v1170, %v1624
        %v1685 = vmul.f32 %v1171, %v1624
        %v1686 = vmul.f32 %v1172, %v1624
        %v1687 = vmul.f32 %v1173, %v1624
        %v1688 = vmul.f32 %v1174, %v1624
        %v1689 = vmul.f32 %v1175, %v1624
        %v1690 = vmul.f32 %v1176, %v1624
        %v1691 = vmul.f32 %v1177, %v1624
        %v1692 = vmul.f32 %v1178, %v1624
        %v1693 = vmul.f32 %v1179, %v1624
        %v1694 = vmul.f32 %v1180, %v1624
        %v1695 = vmul.f32 %v1181, %v1624
        %v1696 = vmul.f32 %v1182, %v1624
        %v1697 = vmul.f32 %v1183, %v1624
        %v1698 = vmul.f32 %v1184, %v1624
        %v1699 = vmul.f32 %v1185, %v1624
        %v1700 = vmul.f32 %v1186, %v1624
        %v1701 = vmul.f32 %v1187, %v1624
        %v1702 = vmul.f32 %v1188, %v1624
        %v1703 = vmul.f32 %v1189, %v1624
        %v1704 = vmul.f32 %v1190, %v1624
        %v1705 = vmul.f32 %v1191, %v1624
        %v1706 = vmul.f32 %v1192, %v1624
        %v1707 = vmul.f32 %v1193, %v1624
        %v1708 = vmul.f32 %v1194, %v1624
        %v1709 = vmul.f32 %v1195, %v1624
        %v1710 = vmul.f32 %v1196, %v1624
        %v1711 = vmul.f32 %v1197, %v1624
        %v1712 = vmul.f32 %v1198, %v1624
        %v1713 = vmul.f32 %v1199, %v1624
        %v1714 = vmul.f32 %v1200, %v1624
        %v1715 = vmul.f32 %v1201, %v1624
        %v1716 = vmul.f32 %v1202, %v1624
        %v1717 = vmul.f32 %v1203, %v1624
        %v1718 = vmul.f32 %v1204, %v1624
        %v1719 = vmul.f32 %v1205, %v1624
        %v1720 = vmul.f32 %v1206, %v1624
        %v1721 = vmul.f32 %v1207, %v1624
        %v1722 = vmul.f32 %v1208, %v1624
        %v1723 = vmul.f32 %v1209, %v1624
        %v1724 = vmul.f32 %v1210, %v1624
        %v1725 = vmul.f32 %v1211, %v1624
        %v1726 = vmul.f32 %v1212, %v1624
        %v1727 = vmul.f32 %v1213, %v1624
        %v1728 = vmul.f32 %v1214, %v1624
        %v1729 = vmul.f32 %v1215, %v1624
        %v1730 = vmul.f32 %v1216, %v1624
        %v1731 = vmul.f32 %v1217, %v1624
        %v1732 = vmul.f32 %v1218, %v1624
        %v1733 = vmul.f32 %v1219, %v1624
        %v1734 = vmul.f32 %v1220, %v1624
        %v1735 = vmul.f32 %v1221, %v1624
        %v1736 = vmul.f32 %v1222, %v1624
        %v1737 = vmul.f32 %v1223, %v1624
        %v1738 = vmul.f32 %v1224, %v1624
        %v1739 = vmul.f32 %v1225, %v1624
        %v1740 = vmul.f32 %v1226, %v1624
        %v1741 = vmul.f32 %v1227, %v1624
        %v1742 = vmul.f32 %v1228, %v1624
        %v1743 = vmul.f32 %v1229, %v1624
        %v1744 = vmul.f32 %v1230, %v1624
        %v1745 = vmul.f32 %v1231, %v1624
        %v1746 = vmul.f32 %v1232, %v1624
        %v1747 = vmul.f32 %v1233, %v1624
        %v1748 = vmul.f32 %v1234, %v1624
        %v1749 = vmul.f32 %v1235, %v1624
        %v1750 = vmul.f32 %v1236, %v1624
        %v1751 = vmul.f32 %v1237, %v1624
        %v1752 = vmul.f32 %v1238, %v1624
        %v1753 = vld [vmem:[%s1] sm:$0x1]
        %v1754 = vld [vmem:[%s1 + $0x1] sm:$0x1]
        %v1755 = vld [vmem:[%s1 + $0x2] sm:$0x1]
        %v1756 = vld [vmem:[%s1 + $0x3] sm:$0x1]
        %v1757 = vld [vmem:[%s1 + $0x4] sm:$0x1]
        %v1758 = vld [vmem:[%s1 + $0x5] sm:$0x1]
        %v1759 = vld [vmem:[%s1 + $0x6] sm:$0x1]
        %v1760 = vld [vmem:[%s1 + $0x7] sm:$0x1]
        %v1761 = vld [vmem:[%s1 + $0x8] sm:$0x1]
        %v1762 = vld [vmem:[%s1 + $0x9] sm:$0x1]
        %v1763 = vld [vmem:[%s1 + $0xa] sm:$0x1]
        %v1764 = vld [vmem:[%s1 + $0xb] sm:$0x1]
        %v1765 = vld [vmem:[%s1 + $0xc] sm:$0x1]
        %v1766 = vld [vmem:[%s1 + $0xd] sm:$0x1]
        %v1767 = vld [vmem:[%s1 + $0xe] sm:$0x1]
        %v1768 = vld [vmem:[%s1 + $0xf] sm:$0x1]
        %v1769 = vld [vmem:[%s1 + $0x10] sm:$0x1]
        %v1770 = vld [vmem:[%s1 + $0x11] sm:$0x1]
        %v1771 = vld [vmem:[%s1 + $0x12] sm:$0x1]
        %v1772 = vld [vmem:[%s1 + $0x13] sm:$0x1]
        %v1773 = vld [vmem:[%s1 + $0x14] sm:$0x1]
        %v1774 = vld [vmem:[%s1 + $0x15] sm:$0x1]
        %v1775 = vld [vmem:[%s1 + $0x16] sm:$0x1]
        %v1776 = vld [vmem:[%s1 + $0x17] sm:$0x1]
        %v1777 = vld [vmem:[%s1 + $0x18] sm:$0x1]
        %v1778 = vld [vmem:[%s1 + $0x19] sm:$0x1]
        %v1779 = vld [vmem:[%s1 + $0x1a] sm:$0x1]
        %v1780 = vld [vmem:[%s1 + $0x1b] sm:$0x1]
        %v1781 = vld [vmem:[%s1 + $0x1c] sm:$0x1]
        %v1782 = vld [vmem:[%s1 + $0x1d] sm:$0x1]
        %v1783 = vld [vmem:[%s1 + $0x1e] sm:$0x1]
        %v1784 = vld [vmem:[%s1 + $0x1f] sm:$0x1]
        %v1785 = vld [vmem:[%s1 + $0x20] sm:$0x1]
        %v1786 = vld [vmem:[%s1 + $0x21] sm:$0x1]
        %v1787 = vld [vmem:[%s1 + $0x22] sm:$0x1]
        %v1788 = vld [vmem:[%s1 + $0x23] sm:$0x1]
        %v1789 = vld [vmem:[%s1 + $0x24] sm:$0x1]
        %v1790 = vld [vmem:[%s1 + $0x25] sm:$0x1]
        %v1791 = vld [vmem:[%s1 + $0x26] sm:$0x1]
        %v1792 = vld [vmem:[%s1 + $0x27] sm:$0x1]
        %v1793 = vld [vmem:[%s1 + $0x28] sm:$0x1]
        %v1794 = vld [vmem:[%s1 + $0x29] sm:$0x1]
        %v1795 = vld [vmem:[%s1 + $0x2a] sm:$0x1]
        %v1796 = vld [vmem:[%s1 + $0x2b] sm:$0x1]
        %v1797 = vld [vmem:[%s1 + $0x2c] sm:$0x1]
        %v1798 = vld [vmem:[%s1 + $0x2d] sm:$0x1]
        %v1799 = vld [vmem:[%s1 + $0x2e] sm:$0x1]
        %v1800 = vld [vmem:[%s1 + $0x2f] sm:$0x1]
        %v1801 = vld [vmem:[%s1 + $0x30] sm:$0x1]
        %v1802 = vld [vmem:[%s1 + $0x31] sm:$0x1]
        %v1803 = vld [vmem:[%s1 + $0x32] sm:$0x1]
        %v1804 = vld [vmem:[%s1 + $0x33] sm:$0x1]
        %v1805 = vld [vmem:[%s1 + $0x34] sm:$0x1]
        %v1806 = vld [vmem:[%s1 + $0x35] sm:$0x1]
        %v1807 = vld [vmem:[%s1 + $0x36] sm:$0x1]
        %v1808 = vld [vmem:[%s1 + $0x37] sm:$0x1]
        %v1809 = vld [vmem:[%s1 + $0x38] sm:$0x1]
        %v1810 = vld [vmem:[%s1 + $0x39] sm:$0x1]
        %v1811 = vld [vmem:[%s1 + $0x3a] sm:$0x1]
        %v1812 = vld [vmem:[%s1 + $0x3b] sm:$0x1]
        %v1813 = vld [vmem:[%s1 + $0x3c] sm:$0x1]
        %v1814 = vld [vmem:[%s1 + $0x3d] sm:$0x1]
        %v1815 = vld [vmem:[%s1 + $0x3e] sm:$0x1]
        %v1816 = vld [vmem:[%s1 + $0x3f] sm:$0x1]
        %v1817 = vld [vmem:[%s1 + $0x40] sm:$0x1]
        %v1818 = vld [vmem:[%s1 + $0x41] sm:$0x1]
        %v1819 = vld [vmem:[%s1 + $0x42] sm:$0x1]
        %v1820 = vld [vmem:[%s1 + $0x43] sm:$0x1]
        %v1821 = vld [vmem:[%s1 + $0x44] sm:$0x1]
        %v1822 = vld [vmem:[%s1 + $0x45] sm:$0x1]
        %v1823 = vld [vmem:[%s1 + $0x46] sm:$0x1]
        %v1824 = vld [vmem:[%s1 + $0x47] sm:$0x1]
        %v1825 = vld [vmem:[%s1 + $0x48] sm:$0x1]
        %v1826 = vld [vmem:[%s1 + $0x49] sm:$0x1]
        %v1827 = vld [vmem:[%s1 + $0x4a] sm:$0x1]
        %v1828 = vld [vmem:[%s1 + $0x4b] sm:$0x1]
        %v1829 = vld [vmem:[%s1 + $0x4c] sm:$0x1]
        %v1830 = vld [vmem:[%s1 + $0x4d] sm:$0x1]
        %v1831 = vld [vmem:[%s1 + $0x4e] sm:$0x1]
        %v1832 = vld [vmem:[%s1 + $0x4f] sm:$0x1]
        %v1833 = vld [vmem:[%s1 + $0x50] sm:$0x1]
        %v1834 = vld [vmem:[%s1 + $0x51] sm:$0x1]
        %v1835 = vld [vmem:[%s1 + $0x52] sm:$0x1]
        %v1836 = vld [vmem:[%s1 + $0x53] sm:$0x1]
        %v1837 = vld [vmem:[%s1 + $0x54] sm:$0x1]
        %v1838 = vld [vmem:[%s1 + $0x55] sm:$0x1]
        %v1839 = vld [vmem:[%s1 + $0x56] sm:$0x1]
        %v1840 = vld [vmem:[%s1 + $0x57] sm:$0x1]
        %v1841 = vld [vmem:[%s1 + $0x58] sm:$0x1]
        %v1842 = vld [vmem:[%s1 + $0x59] sm:$0x1]
        %v1843 = vld [vmem:[%s1 + $0x5a] sm:$0x1]
        %v1844 = vld [vmem:[%s1 + $0x5b] sm:$0x1]
        %v1845 = vld [vmem:[%s1 + $0x5c] sm:$0x1]
        %v1846 = vld [vmem:[%s1 + $0x5d] sm:$0x1]
        %v1847 = vld [vmem:[%s1 + $0x5e] sm:$0x1]
        %v1848 = vld [vmem:[%s1 + $0x5f] sm:$0x1]
        %v1849 = vld [vmem:[%s1 + $0x60] sm:$0x1]
        %v1850 = vld [vmem:[%s1 + $0x61] sm:$0x1]
        %v1851 = vld [vmem:[%s1 + $0x62] sm:$0x1]
        %v1852 = vld [vmem:[%s1 + $0x63] sm:$0x1]
        %v1853 = vld [vmem:[%s1 + $0x64] sm:$0x1]
        %v1854 = vld [vmem:[%s1 + $0x65] sm:$0x1]
        %v1855 = vld [vmem:[%s1 + $0x66] sm:$0x1]
        %v1856 = vld [vmem:[%s1 + $0x67] sm:$0x1]
        %v1857 = vld [vmem:[%s1 + $0x68] sm:$0x1]
        %v1858 = vld [vmem:[%s1 + $0x69] sm:$0x1]
        %v1859 = vld [vmem:[%s1 + $0x6a] sm:$0x1]
        %v1860 = vld [vmem:[%s1 + $0x6b] sm:$0x1]
        %v1861 = vld [vmem:[%s1 + $0x6c] sm:$0x1]
        %v1862 = vld [vmem:[%s1 + $0x6d] sm:$0x1]
        %v1863 = vld [vmem:[%s1 + $0x6e] sm:$0x1]
        %v1864 = vld [vmem:[%s1 + $0x6f] sm:$0x1]
        %v1865 = vld [vmem:[%s1 + $0x70] sm:$0x1]
        %v1866 = vld [vmem:[%s1 + $0x71] sm:$0x1]
        %v1867 = vld [vmem:[%s1 + $0x72] sm:$0x1]
        %v1868 = vld [vmem:[%s1 + $0x73] sm:$0x1]
        %v1869 = vld [vmem:[%s1 + $0x74] sm:$0x1]
        %v1870 = vld [vmem:[%s1 + $0x75] sm:$0x1]
        %v1871 = vld [vmem:[%s1 + $0x76] sm:$0x1]
        %v1872 = vld [vmem:[%s1 + $0x77] sm:$0x1]
        %v1873 = vld [vmem:[%s1 + $0x78] sm:$0x1]
        %v1874 = vld [vmem:[%s1 + $0x79] sm:$0x1]
        %v1875 = vld [vmem:[%s1 + $0x7a] sm:$0x1]
        %v1876 = vld [vmem:[%s1 + $0x7b] sm:$0x1]
        %v1877 = vld [vmem:[%s1 + $0x7c] sm:$0x1]
        %v1878 = vld [vmem:[%s1 + $0x7d] sm:$0x1]
        %v1879 = vld [vmem:[%s1 + $0x7e] sm:$0x1]
        %v1880 = vld [vmem:[%s1 + $0x7f] sm:$0x1]
        %v2009 = vlaneseq
        %v2010 = vshrl.u32 %v2009, 7
        %v2011 = vsub.s32 0, %v2010
        %v2012 = vrot.slane %v1753, %v2011
        %v2013 = vlaneseq
        %v2014 = vshrl.u32 %v2013, 7
        %v2015 = vsub.s32 0, %v2014
        %v2016 = vrot.slane %v1754, %v2015
        %v2017 = vlaneseq
        %v2018 = vshrl.u32 %v2017, 7
        %v2019 = vsub.s32 0, %v2018
        %v2020 = vrot.slane %v1755, %v2019
        %v2021 = vlaneseq
        %v2022 = vshrl.u32 %v2021, 7
        %v2023 = vsub.s32 0, %v2022
        %v2024 = vrot.slane %v1756, %v2023
        %v2025 = vlaneseq
        %v2026 = vshrl.u32 %v2025, 7
        %v2027 = vsub.s32 0, %v2026
        %v2028 = vrot.slane %v1757, %v2027
        %v2029 = vlaneseq
        %v2030 = vshrl.u32 %v2029, 7
        %v2031 = vsub.s32 0, %v2030
        %v2032 = vrot.slane %v1758, %v2031
        %v2033 = vlaneseq
        %v2034 = vshrl.u32 %v2033, 7
        %v2035 = vsub.s32 0, %v2034
        %v2036 = vrot.slane %v1759, %v2035
        %v2037 = vlaneseq
        %v2038 = vshrl.u32 %v2037, 7
        %v2039 = vsub.s32 0, %v2038
        %v2040 = vrot.slane %v1760, %v2039
        %v2041 = vlaneseq
        %v2042 = vshrl.u32 %v2041, 7
        %v2043 = vsub.s32 0, %v2042
        %v2044 = vrot.slane %v1761, %v2043
        %v2045 = vlaneseq
        %v2046 = vshrl.u32 %v2045, 7
        %v2047 = vsub.s32 0, %v2046
        %v2048 = vrot.slane %v1762, %v2047
        %v2049 = vlaneseq
        %v2050 = vshrl.u32 %v2049, 7
        %v2051 = vsub.s32 0, %v2050
        %v2052 = vrot.slane %v1763, %v2051
        %v2053 = vlaneseq
        %v2054 = vshrl.u32 %v2053, 7
        %v2055 = vsub.s32 0, %v2054
        %v2056 = vrot.slane %v1764, %v2055
        %v2057 = vlaneseq
        %v2058 = vshrl.u32 %v2057, 7
        %v2059 = vsub.s32 0, %v2058
        %v2060 = vrot.slane %v1765, %v2059
        %v2061 = vlaneseq
        %v2062 = vshrl.u32 %v2061, 7
        %v2063 = vsub.s32 0, %v2062
        %v2064 = vrot.slane %v1766, %v2063
        %v2065 = vlaneseq
        %v2066 = vshrl.u32 %v2065, 7
        %v2067 = vsub.s32 0, %v2066
        %v2068 = vrot.slane %v1767, %v2067
        %v2069 = vlaneseq
        %v2070 = vshrl.u32 %v2069, 7
        %v2071 = vsub.s32 0, %v2070
        %v2072 = vrot.slane %v1768, %v2071
        %v2073 = vlaneseq
        %v2074 = vshrl.u32 %v2073, 7
        %v2075 = vsub.s32 0, %v2074
        %v2076 = vrot.slane %v1769, %v2075
        %v2077 = vlaneseq
        %v2078 = vshrl.u32 %v2077, 7
        %v2079 = vsub.s32 0, %v2078
        %v2080 = vrot.slane %v1770, %v2079
        %v2081 = vlaneseq
        %v2082 = vshrl.u32 %v2081, 7
        %v2083 = vsub.s32 0, %v2082
        %v2084 = vrot.slane %v1771, %v2083
        %v2085 = vlaneseq
        %v2086 = vshrl.u32 %v2085, 7
        %v2087 = vsub.s32 0, %v2086
        %v2088 = vrot.slane %v1772, %v2087
        %v2089 = vlaneseq
        %v2090 = vshrl.u32 %v2089, 7
        %v2091 = vsub.s32 0, %v2090
        %v2092 = vrot.slane %v1773, %v2091
        %v2093 = vlaneseq
        %v2094 = vshrl.u32 %v2093, 7
        %v2095 = vsub.s32 0, %v2094
        %v2096 = vrot.slane %v1774, %v2095
        %v2097 = vlaneseq
        %v2098 = vshrl.u32 %v2097, 7
        %v2099 = vsub.s32 0, %v2098
        %v2100 = vrot.slane %v1775, %v2099
        %v2101 = vlaneseq
        %v2102 = vshrl.u32 %v2101, 7
        %v2103 = vsub.s32 0, %v2102
        %v2104 = vrot.slane %v1776, %v2103
        %v2105 = vlaneseq
        %v2106 = vshrl.u32 %v2105, 7
        %v2107 = vsub.s32 0, %v2106
        %v2108 = vrot.slane %v1777, %v2107
        %v2109 = vlaneseq
        %v2110 = vshrl.u32 %v2109, 7
        %v2111 = vsub.s32 0, %v2110
        %v2112 = vrot.slane %v1778, %v2111
        %v2113 = vlaneseq
        %v2114 = vshrl.u32 %v2113, 7
        %v2115 = vsub.s32 0, %v2114
        %v2116 = vrot.slane %v1779, %v2115
        %v2117 = vlaneseq
        %v2118 = vshrl.u32 %v2117, 7
        %v2119 = vsub.s32 0, %v2118
        %v2120 = vrot.slane %v1780, %v2119
        %v2121 = vlaneseq
        %v2122 = vshrl.u32 %v2121, 7
        %v2123 = vsub.s32 0, %v2122
        %v2124 = vrot.slane %v1781, %v2123
        %v2125 = vlaneseq
        %v2126 = vshrl.u32 %v2125, 7
        %v2127 = vsub.s32 0, %v2126
        %v2128 = vrot.slane %v1782, %v2127
        %v2129 = vlaneseq
        %v2130 = vshrl.u32 %v2129, 7
        %v2131 = vsub.s32 0, %v2130
        %v2132 = vrot.slane %v1783, %v2131
        %v2133 = vlaneseq
        %v2134 = vshrl.u32 %v2133, 7
        %v2135 = vsub.s32 0, %v2134
        %v2136 = vrot.slane %v1784, %v2135
        %v2137 = vlaneseq
        %v2138 = vshrl.u32 %v2137, 7
        %v2139 = vsub.s32 0, %v2138
        %v2140 = vrot.slane %v1785, %v2139
        %v2141 = vlaneseq
        %v2142 = vshrl.u32 %v2141, 7
        %v2143 = vsub.s32 0, %v2142
        %v2144 = vrot.slane %v1786, %v2143
        %v2145 = vlaneseq
        %v2146 = vshrl.u32 %v2145, 7
        %v2147 = vsub.s32 0, %v2146
        %v2148 = vrot.slane %v1787, %v2147
        %v2149 = vlaneseq
        %v2150 = vshrl.u32 %v2149, 7
        %v2151 = vsub.s32 0, %v2150
        %v2152 = vrot.slane %v1788, %v2151
        %v2153 = vlaneseq
        %v2154 = vshrl.u32 %v2153, 7
        %v2155 = vsub.s32 0, %v2154
        %v2156 = vrot.slane %v1789, %v2155
        %v2157 = vlaneseq
        %v2158 = vshrl.u32 %v2157, 7
        %v2159 = vsub.s32 0, %v2158
        %v2160 = vrot.slane %v1790, %v2159
        %v2161 = vlaneseq
        %v2162 = vshrl.u32 %v2161, 7
        %v2163 = vsub.s32 0, %v2162
        %v2164 = vrot.slane %v1791, %v2163
        %v2165 = vlaneseq
        %v2166 = vshrl.u32 %v2165, 7
        %v2167 = vsub.s32 0, %v2166
        %v2168 = vrot.slane %v1792, %v2167
        %v2169 = vlaneseq
        %v2170 = vshrl.u32 %v2169, 7
        %v2171 = vsub.s32 0, %v2170
        %v2172 = vrot.slane %v1793, %v2171
        %v2173 = vlaneseq
        %v2174 = vshrl.u32 %v2173, 7
        %v2175 = vsub.s32 0, %v2174
        %v2176 = vrot.slane %v1794, %v2175
        %v2177 = vlaneseq
        %v2178 = vshrl.u32 %v2177, 7
        %v2179 = vsub.s32 0, %v2178
        %v2180 = vrot.slane %v1795, %v2179
        %v2181 = vlaneseq
        %v2182 = vshrl.u32 %v2181, 7
        %v2183 = vsub.s32 0, %v2182
        %v2184 = vrot.slane %v1796, %v2183
        %v2185 = vlaneseq
        %v2186 = vshrl.u32 %v2185, 7
        %v2187 = vsub.s32 0, %v2186
        %v2188 = vrot.slane %v1797, %v2187
        %v2189 = vlaneseq
        %v2190 = vshrl.u32 %v2189, 7
        %v2191 = vsub.s32 0, %v2190
        %v2192 = vrot.slane %v1798, %v2191
        %v2193 = vlaneseq
        %v2194 = vshrl.u32 %v2193, 7
        %v2195 = vsub.s32 0, %v2194
        %v2196 = vrot.slane %v1799, %v2195
        %v2197 = vlaneseq
        %v2198 = vshrl.u32 %v2197, 7
        %v2199 = vsub.s32 0, %v2198
        %v2200 = vrot.slane %v1800, %v2199
        %v2201 = vlaneseq
        %v2202 = vshrl.u32 %v2201, 7
        %v2203 = vsub.s32 0, %v2202
        %v2204 = vrot.slane %v1801, %v2203
        %v2205 = vlaneseq
        %v2206 = vshrl.u32 %v2205, 7
        %v2207 = vsub.s32 0, %v2206
        %v2208 = vrot.slane %v1802, %v2207
        %v2209 = vlaneseq
        %v2210 = vshrl.u32 %v2209, 7
        %v2211 = vsub.s32 0, %v2210
        %v2212 = vrot.slane %v1803, %v2211
        %v2213 = vlaneseq
        %v2214 = vshrl.u32 %v2213, 7
        %v2215 = vsub.s32 0, %v2214
        %v2216 = vrot.slane %v1804, %v2215
        %v2217 = vlaneseq
        %v2218 = vshrl.u32 %v2217, 7
        %v2219 = vsub.s32 0, %v2218
        %v2220 = vrot.slane %v1805, %v2219
        %v2221 = vlaneseq
        %v2222 = vshrl.u32 %v2221, 7
        %v2223 = vsub.s32 0, %v2222
        %v2224 = vrot.slane %v1806, %v2223
        %v2225 = vlaneseq
        %v2226 = vshrl.u32 %v2225, 7
        %v2227 = vsub.s32 0, %v2226
        %v2228 = vrot.slane %v1807, %v2227
        %v2229 = vlaneseq
        %v2230 = vshrl.u32 %v2229, 7
        %v2231 = vsub.s32 0, %v2230
        %v2232 = vrot.slane %v1808, %v2231
        %v2233 = vlaneseq
        %v2234 = vshrl.u32 %v2233, 7
        %v2235 = vsub.s32 0, %v2234
        %v2236 = vrot.slane %v1809, %v2235
        %v2237 = vlaneseq
        %v2238 = vshrl.u32 %v2237, 7
        %v2239 = vsub.s32 0, %v2238
        %v2240 = vrot.slane %v1810, %v2239
        %v2241 = vlaneseq
        %v2242 = vshrl.u32 %v2241, 7
        %v2243 = vsub.s32 0, %v2242
        %v2244 = vrot.slane %v1811, %v2243
        %v2245 = vlaneseq
        %v2246 = vshrl.u32 %v2245, 7
        %v2247 = vsub.s32 0, %v2246
        %v2248 = vrot.slane %v1812, %v2247
        %v2249 = vlaneseq
        %v2250 = vshrl.u32 %v2249, 7
        %v2251 = vsub.s32 0, %v2250
        %v2252 = vrot.slane %v1813, %v2251
        %v2253 = vlaneseq
        %v2254 = vshrl.u32 %v2253, 7
        %v2255 = vsub.s32 0, %v2254
        %v2256 = vrot.slane %v1814, %v2255
        %v2257 = vlaneseq
        %v2258 = vshrl.u32 %v2257, 7
        %v2259 = vsub.s32 0, %v2258
        %v2260 = vrot.slane %v1815, %v2259
        %v2261 = vlaneseq
        %v2262 = vshrl.u32 %v2261, 7
        %v2263 = vsub.s32 0, %v2262
        %v2264 = vrot.slane %v1816, %v2263
        %v2265 = vlaneseq
        %v2266 = vshrl.u32 %v2265, 7
        %v2267 = vsub.s32 0, %v2266
        %v2268 = vrot.slane %v1817, %v2267
        %v2269 = vlaneseq
        %v2270 = vshrl.u32 %v2269, 7
        %v2271 = vsub.s32 0, %v2270
        %v2272 = vrot.slane %v1818, %v2271
        %v2273 = vlaneseq
        %v2274 = vshrl.u32 %v2273, 7
        %v2275 = vsub.s32 0, %v2274
        %v2276 = vrot.slane %v1819, %v2275
        %v2277 = vlaneseq
        %v2278 = vshrl.u32 %v2277, 7
        %v2279 = vsub.s32 0, %v2278
        %v2280 = vrot.slane %v1820, %v2279
        %v2281 = vlaneseq
        %v2282 = vshrl.u32 %v2281, 7
        %v2283 = vsub.s32 0, %v2282
        %v2284 = vrot.slane %v1821, %v2283
        %v2285 = vlaneseq
        %v2286 = vshrl.u32 %v2285, 7
        %v2287 = vsub.s32 0, %v2286
        %v2288 = vrot.slane %v1822, %v2287
        %v2289 = vlaneseq
        %v2290 = vshrl.u32 %v2289, 7
        %v2291 = vsub.s32 0, %v2290
        %v2292 = vrot.slane %v1823, %v2291
        %v2293 = vlaneseq
        %v2294 = vshrl.u32 %v2293, 7
        %v2295 = vsub.s32 0, %v2294
        %v2296 = vrot.slane %v1824, %v2295
        %v2297 = vlaneseq
        %v2298 = vshrl.u32 %v2297, 7
        %v2299 = vsub.s32 0, %v2298
        %v2300 = vrot.slane %v1825, %v2299
        %v2301 = vlaneseq
        %v2302 = vshrl.u32 %v2301, 7
        %v2303 = vsub.s32 0, %v2302
        %v2304 = vrot.slane %v1826, %v2303
        %v2305 = vlaneseq
        %v2306 = vshrl.u32 %v2305, 7
        %v2307 = vsub.s32 0, %v2306
        %v2308 = vrot.slane %v1827, %v2307
        %v2309 = vlaneseq
        %v2310 = vshrl.u32 %v2309, 7
        %v2311 = vsub.s32 0, %v2310
        %v2312 = vrot.slane %v1828, %v2311
        %v2313 = vlaneseq
        %v2314 = vshrl.u32 %v2313, 7
        %v2315 = vsub.s32 0, %v2314
        %v2316 = vrot.slane %v1829, %v2315
        %v2317 = vlaneseq
        %v2318 = vshrl.u32 %v2317, 7
        %v2319 = vsub.s32 0, %v2318
        %v2320 = vrot.slane %v1830, %v2319
        %v2321 = vlaneseq
        %v2322 = vshrl.u32 %v2321, 7
        %v2323 = vsub.s32 0, %v2322
        %v2324 = vrot.slane %v1831, %v2323
        %v2325 = vlaneseq
        %v2326 = vshrl.u32 %v2325, 7
        %v2327 = vsub.s32 0, %v2326
        %v2328 = vrot.slane %v1832, %v2327
        %v2329 = vlaneseq
        %v2330 = vshrl.u32 %v2329, 7
        %v2331 = vsub.s32 0, %v2330
        %v2332 = vrot.slane %v1833, %v2331
        %v2333 = vlaneseq
        %v2334 = vshrl.u32 %v2333, 7
        %v2335 = vsub.s32 0, %v2334
        %v2336 = vrot.slane %v1834, %v2335
        %v2337 = vlaneseq
        %v2338 = vshrl.u32 %v2337, 7
        %v2339 = vsub.s32 0, %v2338
        %v2340 = vrot.slane %v1835, %v2339
        %v2341 = vlaneseq
        %v2342 = vshrl.u32 %v2341, 7
        %v2343 = vsub.s32 0, %v2342
        %v2344 = vrot.slane %v1836, %v2343
        %v2345 = vlaneseq
        %v2346 = vshrl.u32 %v2345, 7
        %v2347 = vsub.s32 0, %v2346
        %v2348 = vrot.slane %v1837, %v2347
        %v2349 = vlaneseq
        %v2350 = vshrl.u32 %v2349, 7
        %v2351 = vsub.s32 0, %v2350
        %v2352 = vrot.slane %v1838, %v2351
        %v2353 = vlaneseq
        %v2354 = vshrl.u32 %v2353, 7
        %v2355 = vsub.s32 0, %v2354
        %v2356 = vrot.slane %v1839, %v2355
        %v2357 = vlaneseq
        %v2358 = vshrl.u32 %v2357, 7
        %v2359 = vsub.s32 0, %v2358
        %v2360 = vrot.slane %v1840, %v2359
        %v2361 = vlaneseq
        %v2362 = vshrl.u32 %v2361, 7
        %v2363 = vsub.s32 0, %v2362
        %v2364 = vrot.slane %v1841, %v2363
        %v2365 = vlaneseq
        %v2366 = vshrl.u32 %v2365, 7
        %v2367 = vsub.s32 0, %v2366
        %v2368 = vrot.slane %v1842, %v2367
        %v2369 = vlaneseq
        %v2370 = vshrl.u32 %v2369, 7
        %v2371 = vsub.s32 0, %v2370
        %v2372 = vrot.slane %v1843, %v2371
        %v2373 = vlaneseq
        %v2374 = vshrl.u32 %v2373, 7
        %v2375 = vsub.s32 0, %v2374
        %v2376 = vrot.slane %v1844, %v2375
        %v2377 = vlaneseq
        %v2378 = vshrl.u32 %v2377, 7
        %v2379 = vsub.s32 0, %v2378
        %v2380 = vrot.slane %v1845, %v2379
        %v2381 = vlaneseq
        %v2382 = vshrl.u32 %v2381, 7
        %v2383 = vsub.s32 0, %v2382
        %v2384 = vrot.slane %v1846, %v2383
        %v2385 = vlaneseq
        %v2386 = vshrl.u32 %v2385, 7
        %v2387 = vsub.s32 0, %v2386
        %v2388 = vrot.slane %v1847, %v2387
        %v2389 = vlaneseq
        %v2390 = vshrl.u32 %v2389, 7
        %v2391 = vsub.s32 0, %v2390
        %v2392 = vrot.slane %v1848, %v2391
        %v2393 = vlaneseq
        %v2394 = vshrl.u32 %v2393, 7
        %v2395 = vsub.s32 0, %v2394
        %v2396 = vrot.slane %v1849, %v2395
        %v2397 = vlaneseq
        %v2398 = vshrl.u32 %v2397, 7
        %v2399 = vsub.s32 0, %v2398
        %v2400 = vrot.slane %v1850, %v2399
        %v2401 = vlaneseq
        %v2402 = vshrl.u32 %v2401, 7
        %v2403 = vsub.s32 0, %v2402
        %v2404 = vrot.slane %v1851, %v2403
        %v2405 = vlaneseq
        %v2406 = vshrl.u32 %v2405, 7
        %v2407 = vsub.s32 0, %v2406
        %v2408 = vrot.slane %v1852, %v2407
        %v2409 = vlaneseq
        %v2410 = vshrl.u32 %v2409, 7
        %v2411 = vsub.s32 0, %v2410
        %v2412 = vrot.slane %v1853, %v2411
        %v2413 = vlaneseq
        %v2414 = vshrl.u32 %v2413, 7
        %v2415 = vsub.s32 0, %v2414
        %v2416 = vrot.slane %v1854, %v2415
        %v2417 = vlaneseq
        %v2418 = vshrl.u32 %v2417, 7
        %v2419 = vsub.s32 0, %v2418
        %v2420 = vrot.slane %v1855, %v2419
        %v2421 = vlaneseq
        %v2422 = vshrl.u32 %v2421, 7
        %v2423 = vsub.s32 0, %v2422
        %v2424 = vrot.slane %v1856, %v2423
        %v2425 = vlaneseq
        %v2426 = vshrl.u32 %v2425, 7
        %v2427 = vsub.s32 0, %v2426
        %v2428 = vrot.slane %v1857, %v2427
        %v2429 = vlaneseq
        %v2430 = vshrl.u32 %v2429, 7
        %v2431 = vsub.s32 0, %v2430
        %v2432 = vrot.slane %v1858, %v2431
        %v2433 = vlaneseq
        %v2434 = vshrl.u32 %v2433, 7
        %v2435 = vsub.s32 0, %v2434
        %v2436 = vrot.slane %v1859, %v2435
        %v2437 = vlaneseq
        %v2438 = vshrl.u32 %v2437, 7
        %v2439 = vsub.s32 0, %v2438
        %v2440 = vrot.slane %v1860, %v2439
        %v2441 = vlaneseq
        %v2442 = vshrl.u32 %v2441, 7
        %v2443 = vsub.s32 0, %v2442
        %v2444 = vrot.slane %v1861, %v2443
        %v2445 = vlaneseq
        %v2446 = vshrl.u32 %v2445, 7
        %v2447 = vsub.s32 0, %v2446
        %v2448 = vrot.slane %v1862, %v2447
        %v2449 = vlaneseq
        %v2450 = vshrl.u32 %v2449, 7
        %v2451 = vsub.s32 0, %v2450
        %v2452 = vrot.slane %v1863, %v2451
        %v2453 = vlaneseq
        %v2454 = vshrl.u32 %v2453, 7
        %v2455 = vsub.s32 0, %v2454
        %v2456 = vrot.slane %v1864, %v2455
        %v2457 = vlaneseq
        %v2458 = vshrl.u32 %v2457, 7
        %v2459 = vsub.s32 0, %v2458
        %v2460 = vrot.slane %v1865, %v2459
        %v2461 = vlaneseq
        %v2462 = vshrl.u32 %v2461, 7
        %v2463 = vsub.s32 0, %v2462
        %v2464 = vrot.slane %v1866, %v2463
        %v2465 = vlaneseq
        %v2466 = vshrl.u32 %v2465, 7
        %v2467 = vsub.s32 0, %v2466
        %v2468 = vrot.slane %v1867, %v2467
        %v2469 = vlaneseq
        %v2470 = vshrl.u32 %v2469, 7
        %v2471 = vsub.s32 0, %v2470
        %v2472 = vrot.slane %v1868, %v2471
        %v2473 = vlaneseq
        %v2474 = vshrl.u32 %v2473, 7
        %v2475 = vsub.s32 0, %v2474
        %v2476 = vrot.slane %v1869, %v2475
        %v2477 = vlaneseq
        %v2478 = vshrl.u32 %v2477, 7
        %v2479 = vsub.s32 0, %v2478
        %v2480 = vrot.slane %v1870, %v2479
        %v2481 = vlaneseq
        %v2482 = vshrl.u32 %v2481, 7
        %v2483 = vsub.s32 0, %v2482
        %v2484 = vrot.slane %v1871, %v2483
        %v2485 = vlaneseq
        %v2486 = vshrl.u32 %v2485, 7
        %v2487 = vsub.s32 0, %v2486
        %v2488 = vrot.slane %v1872, %v2487
        %v2489 = vlaneseq
        %v2490 = vshrl.u32 %v2489, 7
        %v2491 = vsub.s32 0, %v2490
        %v2492 = vrot.slane %v1873, %v2491
        %v2493 = vlaneseq
        %v2494 = vshrl.u32 %v2493, 7
        %v2495 = vsub.s32 0, %v2494
        %v2496 = vrot.slane %v1874, %v2495
        %v2497 = vlaneseq
        %v2498 = vshrl.u32 %v2497, 7
        %v2499 = vsub.s32 0, %v2498
        %v2500 = vrot.slane %v1875, %v2499
        %v2501 = vlaneseq
        %v2502 = vshrl.u32 %v2501, 7
        %v2503 = vsub.s32 0, %v2502
        %v2504 = vrot.slane %v1876, %v2503
        %v2505 = vlaneseq
        %v2506 = vshrl.u32 %v2505, 7
        %v2507 = vsub.s32 0, %v2506
        %v2508 = vrot.slane %v1877, %v2507
        %v2509 = vlaneseq
        %v2510 = vshrl.u32 %v2509, 7
        %v2511 = vsub.s32 0, %v2510
        %v2512 = vrot.slane %v1878, %v2511
        %v2513 = vlaneseq
        %v2514 = vshrl.u32 %v2513, 7
        %v2515 = vsub.s32 0, %v2514
        %v2516 = vrot.slane %v1879, %v2515
        %v2517 = vlaneseq
        %v2518 = vshrl.u32 %v2517, 7
        %v2519 = vsub.s32 0, %v2518
        %v2520 = vrot.slane %v1880, %v2519
        %2521 = vset.pattern.permute.xlu0 0
        %2522 = vperm.xlu0 %2521, %v2012
        %v2523 = vpop.permute.xlu0 %2522
        %2525 = vset.pattern.permute.xlu0 0
        %2526 = vperm.xlu0 %2525, %v2016
        %v2527 = vpop.permute.xlu0 %2526
        %2529 = vset.pattern.permute.xlu0 0
        %2530 = vperm.xlu0 %2529, %v2020
        %v2531 = vpop.permute.xlu0 %2530
        %2533 = vset.pattern.permute.xlu0 0
        %2534 = vperm.xlu0 %2533, %v2024
        %v2535 = vpop.permute.xlu0 %2534
        %2537 = vset.pattern.permute.xlu0 0
        %2538 = vperm.xlu0 %2537, %v2028
        %v2539 = vpop.permute.xlu0 %2538
        %2541 = vset.pattern.permute.xlu0 0
        %2542 = vperm.xlu0 %2541, %v2032
        %v2543 = vpop.permute.xlu0 %2542
        %2545 = vset.pattern.permute.xlu0 0
        %2546 = vperm.xlu0 %2545, %v2036
        %v2547 = vpop.permute.xlu0 %2546
        %2549 = vset.pattern.permute.xlu0 0
        %2550 = vperm.xlu0 %2549, %v2040
        %v2551 = vpop.permute.xlu0 %2550
        %2553 = vset.pattern.permute.xlu0 0
        %2554 = vperm.xlu0 %2553, %v2044
        %v2555 = vpop.permute.xlu0 %2554
        %2557 = vset.pattern.permute.xlu0 0
        %2558 = vperm.xlu0 %2557, %v2048
        %v2559 = vpop.permute.xlu0 %2558
        %2561 = vset.pattern.permute.xlu0 0
        %2562 = vperm.xlu0 %2561, %v2052
        %v2563 = vpop.permute.xlu0 %2562
        %2565 = vset.pattern.permute.xlu0 0
        %2566 = vperm.xlu0 %2565, %v2056
        %v2567 = vpop.permute.xlu0 %2566
        %2569 = vset.pattern.permute.xlu0 0
        %2570 = vperm.xlu0 %2569, %v2060
        %v2571 = vpop.permute.xlu0 %2570
        %2573 = vset.pattern.permute.xlu0 0
        %2574 = vperm.xlu0 %2573, %v2064
        %v2575 = vpop.permute.xlu0 %2574
        %2577 = vset.pattern.permute.xlu0 0
        %2578 = vperm.xlu0 %2577, %v2068
        %v2579 = vpop.permute.xlu0 %2578
        %2581 = vset.pattern.permute.xlu0 0
        %2582 = vperm.xlu0 %2581, %v2072
        %v2583 = vpop.permute.xlu0 %2582
        %2585 = vset.pattern.permute.xlu0 0
        %2586 = vperm.xlu0 %2585, %v2076
        %v2587 = vpop.permute.xlu0 %2586
        %2589 = vset.pattern.permute.xlu0 0
        %2590 = vperm.xlu0 %2589, %v2080
        %v2591 = vpop.permute.xlu0 %2590
        %2593 = vset.pattern.permute.xlu0 0
        %2594 = vperm.xlu0 %2593, %v2084
        %v2595 = vpop.permute.xlu0 %2594
        %2597 = vset.pattern.permute.xlu0 0
        %2598 = vperm.xlu0 %2597, %v2088
        %v2599 = vpop.permute.xlu0 %2598
        %2601 = vset.pattern.permute.xlu0 0
        %2602 = vperm.xlu0 %2601, %v2092
        %v2603 = vpop.permute.xlu0 %2602
        %2605 = vset.pattern.permute.xlu0 0
        %2606 = vperm.xlu0 %2605, %v2096
        %v2607 = vpop.permute.xlu0 %2606
        %2609 = vset.pattern.permute.xlu0 0
        %2610 = vperm.xlu0 %2609, %v2100
        %v2611 = vpop.permute.xlu0 %2610
        %2613 = vset.pattern.permute.xlu0 0
        %2614 = vperm.xlu0 %2613, %v2104
        %v2615 = vpop.permute.xlu0 %2614
        %2617 = vset.pattern.permute.xlu0 0
        %2618 = vperm.xlu0 %2617, %v2108
        %v2619 = vpop.permute.xlu0 %2618
        %2621 = vset.pattern.permute.xlu0 0
        %2622 = vperm.xlu0 %2621, %v2112
        %v2623 = vpop.permute.xlu0 %2622
        %2625 = vset.pattern.permute.xlu0 0
        %2626 = vperm.xlu0 %2625, %v2116
        %v2627 = vpop.permute.xlu0 %2626
        %2629 = vset.pattern.permute.xlu0 0
        %2630 = vperm.xlu0 %2629, %v2120
        %v2631 = vpop.permute.xlu0 %2630
        %2633 = vset.pattern.permute.xlu0 0
        %2634 = vperm.xlu0 %2633, %v2124
        %v2635 = vpop.permute.xlu0 %2634
        %2637 = vset.pattern.permute.xlu0 0
        %2638 = vperm.xlu0 %2637, %v2128
        %v2639 = vpop.permute.xlu0 %2638
        %2641 = vset.pattern.permute.xlu0 0
        %2642 = vperm.xlu0 %2641, %v2132
        %v2643 = vpop.permute.xlu0 %2642
        %2645 = vset.pattern.permute.xlu0 0
        %2646 = vperm.xlu0 %2645, %v2136
        %v2647 = vpop.permute.xlu0 %2646
        %2649 = vset.pattern.permute.xlu0 0
        %2650 = vperm.xlu0 %2649, %v2140
        %v2651 = vpop.permute.xlu0 %2650
        %2653 = vset.pattern.permute.xlu0 0
        %2654 = vperm.xlu0 %2653, %v2144
        %v2655 = vpop.permute.xlu0 %2654
        %2657 = vset.pattern.permute.xlu0 0
        %2658 = vperm.xlu0 %2657, %v2148
        %v2659 = vpop.permute.xlu0 %2658
        %2661 = vset.pattern.permute.xlu0 0
        %2662 = vperm.xlu0 %2661, %v2152
        %v2663 = vpop.permute.xlu0 %2662
        %2665 = vset.pattern.permute.xlu0 0
        %2666 = vperm.xlu0 %2665, %v2156
        %v2667 = vpop.permute.xlu0 %2666
        %2669 = vset.pattern.permute.xlu0 0
        %2670 = vperm.xlu0 %2669, %v2160
        %v2671 = vpop.permute.xlu0 %2670
        %2673 = vset.pattern.permute.xlu0 0
        %2674 = vperm.xlu0 %2673, %v2164
        %v2675 = vpop.permute.xlu0 %2674
        %2677 = vset.pattern.permute.xlu0 0
        %2678 = vperm.xlu0 %2677, %v2168
        %v2679 = vpop.permute.xlu0 %2678
        %2681 = vset.pattern.permute.xlu0 0
        %2682 = vperm.xlu0 %2681, %v2172
        %v2683 = vpop.permute.xlu0 %2682
        %2685 = vset.pattern.permute.xlu0 0
        %2686 = vperm.xlu0 %2685, %v2176
        %v2687 = vpop.permute.xlu0 %2686
        %2689 = vset.pattern.permute.xlu0 0
        %2690 = vperm.xlu0 %2689, %v2180
        %v2691 = vpop.permute.xlu0 %2690
        %2693 = vset.pattern.permute.xlu0 0
        %2694 = vperm.xlu0 %2693, %v2184
        %v2695 = vpop.permute.xlu0 %2694
        %2697 = vset.pattern.permute.xlu0 0
        %2698 = vperm.xlu0 %2697, %v2188
        %v2699 = vpop.permute.xlu0 %2698
        %2701 = vset.pattern.permute.xlu0 0
        %2702 = vperm.xlu0 %2701, %v2192
        %v2703 = vpop.permute.xlu0 %2702
        %2705 = vset.pattern.permute.xlu0 0
        %2706 = vperm.xlu0 %2705, %v2196
        %v2707 = vpop.permute.xlu0 %2706
        %2709 = vset.pattern.permute.xlu0 0
        %2710 = vperm.xlu0 %2709, %v2200
        %v2711 = vpop.permute.xlu0 %2710
        %2713 = vset.pattern.permute.xlu0 0
        %2714 = vperm.xlu0 %2713, %v2204
        %v2715 = vpop.permute.xlu0 %2714
        %2717 = vset.pattern.permute.xlu0 0
        %2718 = vperm.xlu0 %2717, %v2208
        %v2719 = vpop.permute.xlu0 %2718
        %2721 = vset.pattern.permute.xlu0 0
        %2722 = vperm.xlu0 %2721, %v2212
        %v2723 = vpop.permute.xlu0 %2722
        %2725 = vset.pattern.permute.xlu0 0
        %2726 = vperm.xlu0 %2725, %v2216
        %v2727 = vpop.permute.xlu0 %2726
        %2729 = vset.pattern.permute.xlu0 0
        %2730 = vperm.xlu0 %2729, %v2220
        %v2731 = vpop.permute.xlu0 %2730
        %2733 = vset.pattern.permute.xlu0 0
        %2734 = vperm.xlu0 %2733, %v2224
        %v2735 = vpop.permute.xlu0 %2734
        %2737 = vset.pattern.permute.xlu0 0
        %2738 = vperm.xlu0 %2737, %v2228
        %v2739 = vpop.permute.xlu0 %2738
        %2741 = vset.pattern.permute.xlu0 0
        %2742 = vperm.xlu0 %2741, %v2232
        %v2743 = vpop.permute.xlu0 %2742
        %2745 = vset.pattern.permute.xlu0 0
        %2746 = vperm.xlu0 %2745, %v2236
        %v2747 = vpop.permute.xlu0 %2746
        %2749 = vset.pattern.permute.xlu0 0
        %2750 = vperm.xlu0 %2749, %v2240
        %v2751 = vpop.permute.xlu0 %2750
        %2753 = vset.pattern.permute.xlu0 0
        %2754 = vperm.xlu0 %2753, %v2244
        %v2755 = vpop.permute.xlu0 %2754
        %2757 = vset.pattern.permute.xlu0 0
        %2758 = vperm.xlu0 %2757, %v2248
        %v2759 = vpop.permute.xlu0 %2758
        %2761 = vset.pattern.permute.xlu0 0
        %2762 = vperm.xlu0 %2761, %v2252
        %v2763 = vpop.permute.xlu0 %2762
        %2765 = vset.pattern.permute.xlu0 0
        %2766 = vperm.xlu0 %2765, %v2256
        %v2767 = vpop.permute.xlu0 %2766
        %2769 = vset.pattern.permute.xlu0 0
        %2770 = vperm.xlu0 %2769, %v2260
        %v2771 = vpop.permute.xlu0 %2770
        %2773 = vset.pattern.permute.xlu0 0
        %2774 = vperm.xlu0 %2773, %v2264
        %v2775 = vpop.permute.xlu0 %2774
        %2777 = vset.pattern.permute.xlu0 0
        %2778 = vperm.xlu0 %2777, %v2268
        %v2779 = vpop.permute.xlu0 %2778
        %2781 = vset.pattern.permute.xlu0 0
        %2782 = vperm.xlu0 %2781, %v2272
        %v2783 = vpop.permute.xlu0 %2782
        %2785 = vset.pattern.permute.xlu0 0
        %2786 = vperm.xlu0 %2785, %v2276
        %v2787 = vpop.permute.xlu0 %2786
        %2789 = vset.pattern.permute.xlu0 0
        %2790 = vperm.xlu0 %2789, %v2280
        %v2791 = vpop.permute.xlu0 %2790
        %2793 = vset.pattern.permute.xlu0 0
        %2794 = vperm.xlu0 %2793, %v2284
        %v2795 = vpop.permute.xlu0 %2794
        %2797 = vset.pattern.permute.xlu0 0
        %2798 = vperm.xlu0 %2797, %v2288
        %v2799 = vpop.permute.xlu0 %2798
        %2801 = vset.pattern.permute.xlu0 0
        %2802 = vperm.xlu0 %2801, %v2292
        %v2803 = vpop.permute.xlu0 %2802
        %2805 = vset.pattern.permute.xlu0 0
        %2806 = vperm.xlu0 %2805, %v2296
        %v2807 = vpop.permute.xlu0 %2806
        %2809 = vset.pattern.permute.xlu0 0
        %2810 = vperm.xlu0 %2809, %v2300
        %v2811 = vpop.permute.xlu0 %2810
        %2813 = vset.pattern.permute.xlu0 0
        %2814 = vperm.xlu0 %2813, %v2304
        %v2815 = vpop.permute.xlu0 %2814
        %2817 = vset.pattern.permute.xlu0 0
        %2818 = vperm.xlu0 %2817, %v2308
        %v2819 = vpop.permute.xlu0 %2818
        %2821 = vset.pattern.permute.xlu0 0
        %2822 = vperm.xlu0 %2821, %v2312
        %v2823 = vpop.permute.xlu0 %2822
        %2825 = vset.pattern.permute.xlu0 0
        %2826 = vperm.xlu0 %2825, %v2316
        %v2827 = vpop.permute.xlu0 %2826
        %2829 = vset.pattern.permute.xlu0 0
        %2830 = vperm.xlu0 %2829, %v2320
        %v2831 = vpop.permute.xlu0 %2830
        %2833 = vset.pattern.permute.xlu0 0
        %2834 = vperm.xlu0 %2833, %v2324
        %v2835 = vpop.permute.xlu0 %2834
        %2837 = vset.pattern.permute.xlu0 0
        %2838 = vperm.xlu0 %2837, %v2328
        %v2839 = vpop.permute.xlu0 %2838
        %2841 = vset.pattern.permute.xlu0 0
        %2842 = vperm.xlu0 %2841, %v2332
        %v2843 = vpop.permute.xlu0 %2842
        %2845 = vset.pattern.permute.xlu0 0
        %2846 = vperm.xlu0 %2845, %v2336
        %v2847 = vpop.permute.xlu0 %2846
        %2849 = vset.pattern.permute.xlu0 0
        %2850 = vperm.xlu0 %2849, %v2340
        %v2851 = vpop.permute.xlu0 %2850
        %2853 = vset.pattern.permute.xlu0 0
        %2854 = vperm.xlu0 %2853, %v2344
        %v2855 = vpop.permute.xlu0 %2854
        %2857 = vset.pattern.permute.xlu0 0
        %2858 = vperm.xlu0 %2857, %v2348
        %v2859 = vpop.permute.xlu0 %2858
        %2861 = vset.pattern.permute.xlu0 0
        %2862 = vperm.xlu0 %2861, %v2352
        %v2863 = vpop.permute.xlu0 %2862
        %2865 = vset.pattern.permute.xlu0 0
        %2866 = vperm.xlu0 %2865, %v2356
        %v2867 = vpop.permute.xlu0 %2866
        %2869 = vset.pattern.permute.xlu0 0
        %2870 = vperm.xlu0 %2869, %v2360
        %v2871 = vpop.permute.xlu0 %2870
        %2873 = vset.pattern.permute.xlu0 0
        %2874 = vperm.xlu0 %2873, %v2364
        %v2875 = vpop.permute.xlu0 %2874
        %2877 = vset.pattern.permute.xlu0 0
        %2878 = vperm.xlu0 %2877, %v2368
        %v2879 = vpop.permute.xlu0 %2878
        %2881 = vset.pattern.permute.xlu0 0
        %2882 = vperm.xlu0 %2881, %v2372
        %v2883 = vpop.permute.xlu0 %2882
        %2885 = vset.pattern.permute.xlu0 0
        %2886 = vperm.xlu0 %2885, %v2376
        %v2887 = vpop.permute.xlu0 %2886
        %2889 = vset.pattern.permute.xlu0 0
        %2890 = vperm.xlu0 %2889, %v2380
        %v2891 = vpop.permute.xlu0 %2890
        %2893 = vset.pattern.permute.xlu0 0
        %2894 = vperm.xlu0 %2893, %v2384
        %v2895 = vpop.permute.xlu0 %2894
        %2897 = vset.pattern.permute.xlu0 0
        %2898 = vperm.xlu0 %2897, %v2388
        %v2899 = vpop.permute.xlu0 %2898
        %2901 = vset.pattern.permute.xlu0 0
        %2902 = vperm.xlu0 %2901, %v2392
        %v2903 = vpop.permute.xlu0 %2902
        %2905 = vset.pattern.permute.xlu0 0
        %2906 = vperm.xlu0 %2905, %v2396
        %v2907 = vpop.permute.xlu0 %2906
        %2909 = vset.pattern.permute.xlu0 0
        %2910 = vperm.xlu0 %2909, %v2400
        %v2911 = vpop.permute.xlu0 %2910
        %2913 = vset.pattern.permute.xlu0 0
        %2914 = vperm.xlu0 %2913, %v2404
        %v2915 = vpop.permute.xlu0 %2914
        %2917 = vset.pattern.permute.xlu0 0
        %2918 = vperm.xlu0 %2917, %v2408
        %v2919 = vpop.permute.xlu0 %2918
        %2921 = vset.pattern.permute.xlu0 0
        %2922 = vperm.xlu0 %2921, %v2412
        %v2923 = vpop.permute.xlu0 %2922
        %2925 = vset.pattern.permute.xlu0 0
        %2926 = vperm.xlu0 %2925, %v2416
        %v2927 = vpop.permute.xlu0 %2926
        %2929 = vset.pattern.permute.xlu0 0
        %2930 = vperm.xlu0 %2929, %v2420
        %v2931 = vpop.permute.xlu0 %2930
        %2933 = vset.pattern.permute.xlu0 0
        %2934 = vperm.xlu0 %2933, %v2424
        %v2935 = vpop.permute.xlu0 %2934
        %2937 = vset.pattern.permute.xlu0 0
        %2938 = vperm.xlu0 %2937, %v2428
        %v2939 = vpop.permute.xlu0 %2938
        %2941 = vset.pattern.permute.xlu0 0
        %2942 = vperm.xlu0 %2941, %v2432
        %v2943 = vpop.permute.xlu0 %2942
        %2945 = vset.pattern.permute.xlu0 0
        %2946 = vperm.xlu0 %2945, %v2436
        %v2947 = vpop.permute.xlu0 %2946
        %2949 = vset.pattern.permute.xlu0 0
        %2950 = vperm.xlu0 %2949, %v2440
        %v2951 = vpop.permute.xlu0 %2950
        %2953 = vset.pattern.permute.xlu0 0
        %2954 = vperm.xlu0 %2953, %v2444
        %v2955 = vpop.permute.xlu0 %2954
        %2957 = vset.pattern.permute.xlu0 0
        %2958 = vperm.xlu0 %2957, %v2448
        %v2959 = vpop.permute.xlu0 %2958
        %2961 = vset.pattern.permute.xlu0 0
        %2962 = vperm.xlu0 %2961, %v2452
        %v2963 = vpop.permute.xlu0 %2962
        %2965 = vset.pattern.permute.xlu0 0
        %2966 = vperm.xlu0 %2965, %v2456
        %v2967 = vpop.permute.xlu0 %2966
        %2969 = vset.pattern.permute.xlu0 0
        %2970 = vperm.xlu0 %2969, %v2460
        %v2971 = vpop.permute.xlu0 %2970
        %2973 = vset.pattern.permute.xlu0 0
        %2974 = vperm.xlu0 %2973, %v2464
        %v2975 = vpop.permute.xlu0 %2974
        %2977 = vset.pattern.permute.xlu0 0
        %2978 = vperm.xlu0 %2977, %v2468
        %v2979 = vpop.permute.xlu0 %2978
        %2981 = vset.pattern.permute.xlu0 0
        %2982 = vperm.xlu0 %2981, %v2472
        %v2983 = vpop.permute.xlu0 %2982
        %2985 = vset.pattern.permute.xlu0 0
        %2986 = vperm.xlu0 %2985, %v2476
        %v2987 = vpop.permute.xlu0 %2986
        %2989 = vset.pattern.permute.xlu0 0
        %2990 = vperm.xlu0 %2989, %v2480
        %v2991 = vpop.permute.xlu0 %2990
        %2993 = vset.pattern.permute.xlu0 0
        %2994 = vperm.xlu0 %2993, %v2484
        %v2995 = vpop.permute.xlu0 %2994
        %2997 = vset.pattern.permute.xlu0 0
        %2998 = vperm.xlu0 %2997, %v2488
        %v2999 = vpop.permute.xlu0 %2998
        %3001 = vset.pattern.permute.xlu0 0
        %3002 = vperm.xlu0 %3001, %v2492
        %v3003 = vpop.permute.xlu0 %3002
        %3005 = vset.pattern.permute.xlu0 0
        %3006 = vperm.xlu0 %3005, %v2496
        %v3007 = vpop.permute.xlu0 %3006
        %3009 = vset.pattern.permute.xlu0 0
        %3010 = vperm.xlu0 %3009, %v2500
        %v3011 = vpop.permute.xlu0 %3010
        %3013 = vset.pattern.permute.xlu0 0
        %3014 = vperm.xlu0 %3013, %v2504
        %v3015 = vpop.permute.xlu0 %3014
        %3017 = vset.pattern.permute.xlu0 0
        %3018 = vperm.xlu0 %3017, %v2508
        %v3019 = vpop.permute.xlu0 %3018
        %3021 = vset.pattern.permute.xlu0 0
        %3022 = vperm.xlu0 %3021, %v2512
        %v3023 = vpop.permute.xlu0 %3022
        %3025 = vset.pattern.permute.xlu0 0
        %3026 = vperm.xlu0 %3025, %v2516
        %v3027 = vpop.permute.xlu0 %3026
        %3029 = vset.pattern.permute.xlu0 0
        %3030 = vperm.xlu0 %3029, %v2520
        %v3031 = vpop.permute.xlu0 %3030
        %v3033 = vmul.f32 %v2523, %v1625
        %v3034 = vmul.f32 %v2527, %v1626
        %v3035 = vmul.f32 %v2531, %v1627
        %v3036 = vmul.f32 %v2535, %v1628
        %v3037 = vmul.f32 %v2539, %v1629
        %v3038 = vmul.f32 %v2543, %v1630
        %v3039 = vmul.f32 %v2547, %v1631
        %v3040 = vmul.f32 %v2551, %v1632
        %v3041 = vmul.f32 %v2555, %v1633
        %v3042 = vmul.f32 %v2559, %v1634
        %v3043 = vmul.f32 %v2563, %v1635
        %v3044 = vmul.f32 %v2567, %v1636
        %v3045 = vmul.f32 %v2571, %v1637
        %v3046 = vmul.f32 %v2575, %v1638
        %v3047 = vmul.f32 %v2579, %v1639
        %v3048 = vmul.f32 %v2583, %v1640
        %v3049 = vmul.f32 %v2587, %v1641
        %v3050 = vmul.f32 %v2591, %v1642
        %v3051 = vmul.f32 %v2595, %v1643
        %v3052 = vmul.f32 %v2599, %v1644
        %v3053 = vmul.f32 %v2603, %v1645
        %v3054 = vmul.f32 %v2607, %v1646
        %v3055 = vmul.f32 %v2611, %v1647
        %v3056 = vmul.f32 %v2615, %v1648
        %v3057 = vmul.f32 %v2619, %v1649
        %v3058 = vmul.f32 %v2623, %v1650
        %v3059 = vmul.f32 %v2627, %v1651
        %v3060 = vmul.f32 %v2631, %v1652
        %v3061 = vmul.f32 %v2635, %v1653
        %v3062 = vmul.f32 %v2639, %v1654
        %v3063 = vmul.f32 %v2643, %v1655
        %v3064 = vmul.f32 %v2647, %v1656
        %v3065 = vmul.f32 %v2651, %v1657
        %v3066 = vmul.f32 %v2655, %v1658
        %v3067 = vmul.f32 %v2659, %v1659
        %v3068 = vmul.f32 %v2663, %v1660
        %v3069 = vmul.f32 %v2667, %v1661
        %v3070 = vmul.f32 %v2671, %v1662
        %v3071 = vmul.f32 %v2675, %v1663
        %v3072 = vmul.f32 %v2679, %v1664
        %v3073 = vmul.f32 %v2683, %v1665
        %v3074 = vmul.f32 %v2687, %v1666
        %v3075 = vmul.f32 %v2691, %v1667
        %v3076 = vmul.f32 %v2695, %v1668
        %v3077 = vmul.f32 %v2699, %v1669
        %v3078 = vmul.f32 %v2703, %v1670
        %v3079 = vmul.f32 %v2707, %v1671
        %v3080 = vmul.f32 %v2711, %v1672
        %v3081 = vmul.f32 %v2715, %v1673
        %v3082 = vmul.f32 %v2719, %v1674
        %v3083 = vmul.f32 %v2723, %v1675
        %v3084 = vmul.f32 %v2727, %v1676
        %v3085 = vmul.f32 %v2731, %v1677
        %v3086 = vmul.f32 %v2735, %v1678
        %v3087 = vmul.f32 %v2739, %v1679
        %v3088 = vmul.f32 %v2743, %v1680
        %v3089 = vmul.f32 %v2747, %v1681
        %v3090 = vmul.f32 %v2751, %v1682
        %v3091 = vmul.f32 %v2755, %v1683
        %v3092 = vmul.f32 %v2759, %v1684
        %v3093 = vmul.f32 %v2763, %v1685
        %v3094 = vmul.f32 %v2767, %v1686
        %v3095 = vmul.f32 %v2771, %v1687
        %v3096 = vmul.f32 %v2775, %v1688
        %v3097 = vmul.f32 %v2779, %v1689
        %v3098 = vmul.f32 %v2783, %v1690
        %v3099 = vmul.f32 %v2787, %v1691
        %v3100 = vmul.f32 %v2791, %v1692
        %v3101 = vmul.f32 %v2795, %v1693
        %v3102 = vmul.f32 %v2799, %v1694
        %v3103 = vmul.f32 %v2803, %v1695
        %v3104 = vmul.f32 %v2807, %v1696
        %v3105 = vmul.f32 %v2811, %v1697
        %v3106 = vmul.f32 %v2815, %v1698
        %v3107 = vmul.f32 %v2819, %v1699
        %v3108 = vmul.f32 %v2823, %v1700
        %v3109 = vmul.f32 %v2827, %v1701
        %v3110 = vmul.f32 %v2831, %v1702
        %v3111 = vmul.f32 %v2835, %v1703
        %v3112 = vmul.f32 %v2839, %v1704
        %v3113 = vmul.f32 %v2843, %v1705
        %v3114 = vmul.f32 %v2847, %v1706
        %v3115 = vmul.f32 %v2851, %v1707
        %v3116 = vmul.f32 %v2855, %v1708
        %v3117 = vmul.f32 %v2859, %v1709
        %v3118 = vmul.f32 %v2863, %v1710
        %v3119 = vmul.f32 %v2867, %v1711
        %v3120 = vmul.f32 %v2871, %v1712
        %v3121 = vmul.f32 %v2875, %v1713
        %v3122 = vmul.f32 %v2879, %v1714
        %v3123 = vmul.f32 %v2883, %v1715
        %v3124 = vmul.f32 %v2887, %v1716
        %v3125 = vmul.f32 %v2891, %v1717
        %v3126 = vmul.f32 %v2895, %v1718
        %v3127 = vmul.f32 %v2899, %v1719
        %v3128 = vmul.f32 %v2903, %v1720
        %v3129 = vmul.f32 %v2907, %v1721
        %v3130 = vmul.f32 %v2911, %v1722
        %v3131 = vmul.f32 %v2915, %v1723
        %v3132 = vmul.f32 %v2919, %v1724
        %v3133 = vmul.f32 %v2923, %v1725
        %v3134 = vmul.f32 %v2927, %v1726
        %v3135 = vmul.f32 %v2931, %v1727
        %v3136 = vmul.f32 %v2935, %v1728
        %v3137 = vmul.f32 %v2939, %v1729
        %v3138 = vmul.f32 %v2943, %v1730
        %v3139 = vmul.f32 %v2947, %v1731
        %v3140 = vmul.f32 %v2951, %v1732
        %v3141 = vmul.f32 %v2955, %v1733
        %v3142 = vmul.f32 %v2959, %v1734
        %v3143 = vmul.f32 %v2963, %v1735
        %v3144 = vmul.f32 %v2967, %v1736
        %v3145 = vmul.f32 %v2971, %v1737
        %v3146 = vmul.f32 %v2975, %v1738
        %v3147 = vmul.f32 %v2979, %v1739
        %v3148 = vmul.f32 %v2983, %v1740
        %v3149 = vmul.f32 %v2987, %v1741
        %v3150 = vmul.f32 %v2991, %v1742
        %v3151 = vmul.f32 %v2995, %v1743
        %v3152 = vmul.f32 %v2999, %v1744
        %v3153 = vmul.f32 %v3003, %v1745
        %v3154 = vmul.f32 %v3007, %v1746
        %v3155 = vmul.f32 %v3011, %v1747
        %v3156 = vmul.f32 %v3015, %v1748
        %v3157 = vmul.f32 %v3019, %v1749
        %v3158 = vmul.f32 %v3023, %v1750
        %v3159 = vmul.f32 %v3027, %v1751
        %v3160 = vmul.f32 %v3031, %v1752
        %v3161 = vld [vmem:[%s2] sm:$0x1]
        %v3162 = vld [vmem:[%s2 + $0x1] sm:$0x1]
        %v3163 = vld [vmem:[%s2 + $0x2] sm:$0x1]
        %v3164 = vld [vmem:[%s2 + $0x3] sm:$0x1]
        %v3165 = vld [vmem:[%s2 + $0x4] sm:$0x1]
        %v3166 = vld [vmem:[%s2 + $0x5] sm:$0x1]
        %v3167 = vld [vmem:[%s2 + $0x6] sm:$0x1]
        %v3168 = vld [vmem:[%s2 + $0x7] sm:$0x1]
        %v3169 = vld [vmem:[%s2 + $0x8] sm:$0x1]
        %v3170 = vld [vmem:[%s2 + $0x9] sm:$0x1]
        %v3171 = vld [vmem:[%s2 + $0xa] sm:$0x1]
        %v3172 = vld [vmem:[%s2 + $0xb] sm:$0x1]
        %v3173 = vld [vmem:[%s2 + $0xc] sm:$0x1]
        %v3174 = vld [vmem:[%s2 + $0xd] sm:$0x1]
        %v3175 = vld [vmem:[%s2 + $0xe] sm:$0x1]
        %v3176 = vld [vmem:[%s2 + $0xf] sm:$0x1]
        %v3177 = vld [vmem:[%s2 + $0x10] sm:$0x1]
        %v3178 = vld [vmem:[%s2 + $0x11] sm:$0x1]
        %v3179 = vld [vmem:[%s2 + $0x12] sm:$0x1]
        %v3180 = vld [vmem:[%s2 + $0x13] sm:$0x1]
        %v3181 = vld [vmem:[%s2 + $0x14] sm:$0x1]
        %v3182 = vld [vmem:[%s2 + $0x15] sm:$0x1]
        %v3183 = vld [vmem:[%s2 + $0x16] sm:$0x1]
        %v3184 = vld [vmem:[%s2 + $0x17] sm:$0x1]
        %v3185 = vld [vmem:[%s2 + $0x18] sm:$0x1]
        %v3186 = vld [vmem:[%s2 + $0x19] sm:$0x1]
        %v3187 = vld [vmem:[%s2 + $0x1a] sm:$0x1]
        %v3188 = vld [vmem:[%s2 + $0x1b] sm:$0x1]
        %v3189 = vld [vmem:[%s2 + $0x1c] sm:$0x1]
        %v3190 = vld [vmem:[%s2 + $0x1d] sm:$0x1]
        %v3191 = vld [vmem:[%s2 + $0x1e] sm:$0x1]
        %v3192 = vld [vmem:[%s2 + $0x1f] sm:$0x1]
        %v3193 = vld [vmem:[%s2 + $0x20] sm:$0x1]
        %v3194 = vld [vmem:[%s2 + $0x21] sm:$0x1]
        %v3195 = vld [vmem:[%s2 + $0x22] sm:$0x1]
        %v3196 = vld [vmem:[%s2 + $0x23] sm:$0x1]
        %v3197 = vld [vmem:[%s2 + $0x24] sm:$0x1]
        %v3198 = vld [vmem:[%s2 + $0x25] sm:$0x1]
        %v3199 = vld [vmem:[%s2 + $0x26] sm:$0x1]
        %v3200 = vld [vmem:[%s2 + $0x27] sm:$0x1]
        %v3201 = vld [vmem:[%s2 + $0x28] sm:$0x1]
        %v3202 = vld [vmem:[%s2 + $0x29] sm:$0x1]
        %v3203 = vld [vmem:[%s2 + $0x2a] sm:$0x1]
        %v3204 = vld [vmem:[%s2 + $0x2b] sm:$0x1]
        %v3205 = vld [vmem:[%s2 + $0x2c] sm:$0x1]
        %v3206 = vld [vmem:[%s2 + $0x2d] sm:$0x1]
        %v3207 = vld [vmem:[%s2 + $0x2e] sm:$0x1]
        %v3208 = vld [vmem:[%s2 + $0x2f] sm:$0x1]
        %v3209 = vld [vmem:[%s2 + $0x30] sm:$0x1]
        %v3210 = vld [vmem:[%s2 + $0x31] sm:$0x1]
        %v3211 = vld [vmem:[%s2 + $0x32] sm:$0x1]
        %v3212 = vld [vmem:[%s2 + $0x33] sm:$0x1]
        %v3213 = vld [vmem:[%s2 + $0x34] sm:$0x1]
        %v3214 = vld [vmem:[%s2 + $0x35] sm:$0x1]
        %v3215 = vld [vmem:[%s2 + $0x36] sm:$0x1]
        %v3216 = vld [vmem:[%s2 + $0x37] sm:$0x1]
        %v3217 = vld [vmem:[%s2 + $0x38] sm:$0x1]
        %v3218 = vld [vmem:[%s2 + $0x39] sm:$0x1]
        %v3219 = vld [vmem:[%s2 + $0x3a] sm:$0x1]
        %v3220 = vld [vmem:[%s2 + $0x3b] sm:$0x1]
        %v3221 = vld [vmem:[%s2 + $0x3c] sm:$0x1]
        %v3222 = vld [vmem:[%s2 + $0x3d] sm:$0x1]
        %v3223 = vld [vmem:[%s2 + $0x3e] sm:$0x1]
        %v3224 = vld [vmem:[%s2 + $0x3f] sm:$0x1]
        %v3225 = vld [vmem:[%s2 + $0x40] sm:$0x1]
        %v3226 = vld [vmem:[%s2 + $0x41] sm:$0x1]
        %v3227 = vld [vmem:[%s2 + $0x42] sm:$0x1]
        %v3228 = vld [vmem:[%s2 + $0x43] sm:$0x1]
        %v3229 = vld [vmem:[%s2 + $0x44] sm:$0x1]
        %v3230 = vld [vmem:[%s2 + $0x45] sm:$0x1]
        %v3231 = vld [vmem:[%s2 + $0x46] sm:$0x1]
        %v3232 = vld [vmem:[%s2 + $0x47] sm:$0x1]
        %v3233 = vld [vmem:[%s2 + $0x48] sm:$0x1]
        %v3234 = vld [vmem:[%s2 + $0x49] sm:$0x1]
        %v3235 = vld [vmem:[%s2 + $0x4a] sm:$0x1]
        %v3236 = vld [vmem:[%s2 + $0x4b] sm:$0x1]
        %v3237 = vld [vmem:[%s2 + $0x4c] sm:$0x1]
        %v3238 = vld [vmem:[%s2 + $0x4d] sm:$0x1]
        %v3239 = vld [vmem:[%s2 + $0x4e] sm:$0x1]
        %v3240 = vld [vmem:[%s2 + $0x4f] sm:$0x1]
        %v3241 = vld [vmem:[%s2 + $0x50] sm:$0x1]
        %v3242 = vld [vmem:[%s2 + $0x51] sm:$0x1]
        %v3243 = vld [vmem:[%s2 + $0x52] sm:$0x1]
        %v3244 = vld [vmem:[%s2 + $0x53] sm:$0x1]
        %v3245 = vld [vmem:[%s2 + $0x54] sm:$0x1]
        %v3246 = vld [vmem:[%s2 + $0x55] sm:$0x1]
        %v3247 = vld [vmem:[%s2 + $0x56] sm:$0x1]
        %v3248 = vld [vmem:[%s2 + $0x57] sm:$0x1]
        %v3249 = vld [vmem:[%s2 + $0x58] sm:$0x1]
        %v3250 = vld [vmem:[%s2 + $0x59] sm:$0x1]
        %v3251 = vld [vmem:[%s2 + $0x5a] sm:$0x1]
        %v3252 = vld [vmem:[%s2 + $0x5b] sm:$0x1]
        %v3253 = vld [vmem:[%s2 + $0x5c] sm:$0x1]
        %v3254 = vld [vmem:[%s2 + $0x5d] sm:$0x1]
        %v3255 = vld [vmem:[%s2 + $0x5e] sm:$0x1]
        %v3256 = vld [vmem:[%s2 + $0x5f] sm:$0x1]
        %v3257 = vld [vmem:[%s2 + $0x60] sm:$0x1]
        %v3258 = vld [vmem:[%s2 + $0x61] sm:$0x1]
        %v3259 = vld [vmem:[%s2 + $0x62] sm:$0x1]
        %v3260 = vld [vmem:[%s2 + $0x63] sm:$0x1]
        %v3261 = vld [vmem:[%s2 + $0x64] sm:$0x1]
        %v3262 = vld [vmem:[%s2 + $0x65] sm:$0x1]
        %v3263 = vld [vmem:[%s2 + $0x66] sm:$0x1]
        %v3264 = vld [vmem:[%s2 + $0x67] sm:$0x1]
        %v3265 = vld [vmem:[%s2 + $0x68] sm:$0x1]
        %v3266 = vld [vmem:[%s2 + $0x69] sm:$0x1]
        %v3267 = vld [vmem:[%s2 + $0x6a] sm:$0x1]
        %v3268 = vld [vmem:[%s2 + $0x6b] sm:$0x1]
        %v3269 = vld [vmem:[%s2 + $0x6c] sm:$0x1]
        %v3270 = vld [vmem:[%s2 + $0x6d] sm:$0x1]
        %v3271 = vld [vmem:[%s2 + $0x6e] sm:$0x1]
        %v3272 = vld [vmem:[%s2 + $0x6f] sm:$0x1]
        %v3273 = vld [vmem:[%s2 + $0x70] sm:$0x1]
        %v3274 = vld [vmem:[%s2 + $0x71] sm:$0x1]
        %v3275 = vld [vmem:[%s2 + $0x72] sm:$0x1]
        %v3276 = vld [vmem:[%s2 + $0x73] sm:$0x1]
        %v3277 = vld [vmem:[%s2 + $0x74] sm:$0x1]
        %v3278 = vld [vmem:[%s2 + $0x75] sm:$0x1]
        %v3279 = vld [vmem:[%s2 + $0x76] sm:$0x1]
        %v3280 = vld [vmem:[%s2 + $0x77] sm:$0x1]
        %v3281 = vld [vmem:[%s2 + $0x78] sm:$0x1]
        %v3282 = vld [vmem:[%s2 + $0x79] sm:$0x1]
        %v3283 = vld [vmem:[%s2 + $0x7a] sm:$0x1]
        %v3284 = vld [vmem:[%s2 + $0x7b] sm:$0x1]
        %v3285 = vld [vmem:[%s2 + $0x7c] sm:$0x1]
        %v3286 = vld [vmem:[%s2 + $0x7d] sm:$0x1]
        %v3287 = vld [vmem:[%s2 + $0x7e] sm:$0x1]
        %v3288 = vld [vmem:[%s2 + $0x7f] sm:$0x1]
        %v3417 = vlaneseq
        %v3418 = vshrl.u32 %v3417, 7
        %v3419 = vsub.s32 0, %v3418
        %v3420 = vrot.slane %v3161, %v3419
        %v3421 = vlaneseq
        %v3422 = vshrl.u32 %v3421, 7
        %v3423 = vsub.s32 0, %v3422
        %v3424 = vrot.slane %v3162, %v3423
        %v3425 = vlaneseq
        %v3426 = vshrl.u32 %v3425, 7
        %v3427 = vsub.s32 0, %v3426
        %v3428 = vrot.slane %v3163, %v3427
        %v3429 = vlaneseq
        %v3430 = vshrl.u32 %v3429, 7
        %v3431 = vsub.s32 0, %v3430
        %v3432 = vrot.slane %v3164, %v3431
        %v3433 = vlaneseq
        %v3434 = vshrl.u32 %v3433, 7
        %v3435 = vsub.s32 0, %v3434
        %v3436 = vrot.slane %v3165, %v3435
        %v3437 = vlaneseq
        %v3438 = vshrl.u32 %v3437, 7
        %v3439 = vsub.s32 0, %v3438
        %v3440 = vrot.slane %v3166, %v3439
        %v3441 = vlaneseq
        %v3442 = vshrl.u32 %v3441, 7
        %v3443 = vsub.s32 0, %v3442
        %v3444 = vrot.slane %v3167, %v3443
        %v3445 = vlaneseq
        %v3446 = vshrl.u32 %v3445, 7
        %v3447 = vsub.s32 0, %v3446
        %v3448 = vrot.slane %v3168, %v3447
        %v3449 = vlaneseq
        %v3450 = vshrl.u32 %v3449, 7
        %v3451 = vsub.s32 0, %v3450
        %v3452 = vrot.slane %v3169, %v3451
        %v3453 = vlaneseq
        %v3454 = vshrl.u32 %v3453, 7
        %v3455 = vsub.s32 0, %v3454
        %v3456 = vrot.slane %v3170, %v3455
        %v3457 = vlaneseq
        %v3458 = vshrl.u32 %v3457, 7
        %v3459 = vsub.s32 0, %v3458
        %v3460 = vrot.slane %v3171, %v3459
        %v3461 = vlaneseq
        %v3462 = vshrl.u32 %v3461, 7
        %v3463 = vsub.s32 0, %v3462
        %v3464 = vrot.slane %v3172, %v3463
        %v3465 = vlaneseq
        %v3466 = vshrl.u32 %v3465, 7
        %v3467 = vsub.s32 0, %v3466
        %v3468 = vrot.slane %v3173, %v3467
        %v3469 = vlaneseq
        %v3470 = vshrl.u32 %v3469, 7
        %v3471 = vsub.s32 0, %v3470
        %v3472 = vrot.slane %v3174, %v3471
        %v3473 = vlaneseq
        %v3474 = vshrl.u32 %v3473, 7
        %v3475 = vsub.s32 0, %v3474
        %v3476 = vrot.slane %v3175, %v3475
        %v3477 = vlaneseq
        %v3478 = vshrl.u32 %v3477, 7
        %v3479 = vsub.s32 0, %v3478
        %v3480 = vrot.slane %v3176, %v3479
        %v3481 = vlaneseq
        %v3482 = vshrl.u32 %v3481, 7
        %v3483 = vsub.s32 0, %v3482
        %v3484 = vrot.slane %v3177, %v3483
        %v3485 = vlaneseq
        %v3486 = vshrl.u32 %v3485, 7
        %v3487 = vsub.s32 0, %v3486
        %v3488 = vrot.slane %v3178, %v3487
        %v3489 = vlaneseq
        %v3490 = vshrl.u32 %v3489, 7
        %v3491 = vsub.s32 0, %v3490
        %v3492 = vrot.slane %v3179, %v3491
        %v3493 = vlaneseq
        %v3494 = vshrl.u32 %v3493, 7
        %v3495 = vsub.s32 0, %v3494
        %v3496 = vrot.slane %v3180, %v3495
        %v3497 = vlaneseq
        %v3498 = vshrl.u32 %v3497, 7
        %v3499 = vsub.s32 0, %v3498
        %v3500 = vrot.slane %v3181, %v3499
        %v3501 = vlaneseq
        %v3502 = vshrl.u32 %v3501, 7
        %v3503 = vsub.s32 0, %v3502
        %v3504 = vrot.slane %v3182, %v3503
        %v3505 = vlaneseq
        %v3506 = vshrl.u32 %v3505, 7
        %v3507 = vsub.s32 0, %v3506
        %v3508 = vrot.slane %v3183, %v3507
        %v3509 = vlaneseq
        %v3510 = vshrl.u32 %v3509, 7
        %v3511 = vsub.s32 0, %v3510
        %v3512 = vrot.slane %v3184, %v3511
        %v3513 = vlaneseq
        %v3514 = vshrl.u32 %v3513, 7
        %v3515 = vsub.s32 0, %v3514
        %v3516 = vrot.slane %v3185, %v3515
        %v3517 = vlaneseq
        %v3518 = vshrl.u32 %v3517, 7
        %v3519 = vsub.s32 0, %v3518
        %v3520 = vrot.slane %v3186, %v3519
        %v3521 = vlaneseq
        %v3522 = vshrl.u32 %v3521, 7
        %v3523 = vsub.s32 0, %v3522
        %v3524 = vrot.slane %v3187, %v3523
        %v3525 = vlaneseq
        %v3526 = vshrl.u32 %v3525, 7
        %v3527 = vsub.s32 0, %v3526
        %v3528 = vrot.slane %v3188, %v3527
        %v3529 = vlaneseq
        %v3530 = vshrl.u32 %v3529, 7
        %v3531 = vsub.s32 0, %v3530
        %v3532 = vrot.slane %v3189, %v3531
        %v3533 = vlaneseq
        %v3534 = vshrl.u32 %v3533, 7
        %v3535 = vsub.s32 0, %v3534
        %v3536 = vrot.slane %v3190, %v3535
        %v3537 = vlaneseq
        %v3538 = vshrl.u32 %v3537, 7
        %v3539 = vsub.s32 0, %v3538
        %v3540 = vrot.slane %v3191, %v3539
        %v3541 = vlaneseq
        %v3542 = vshrl.u32 %v3541, 7
        %v3543 = vsub.s32 0, %v3542
        %v3544 = vrot.slane %v3192, %v3543
        %v3545 = vlaneseq
        %v3546 = vshrl.u32 %v3545, 7
        %v3547 = vsub.s32 0, %v3546
        %v3548 = vrot.slane %v3193, %v3547
        %v3549 = vlaneseq
        %v3550 = vshrl.u32 %v3549, 7
        %v3551 = vsub.s32 0, %v3550
        %v3552 = vrot.slane %v3194, %v3551
        %v3553 = vlaneseq
        %v3554 = vshrl.u32 %v3553, 7
        %v3555 = vsub.s32 0, %v3554
        %v3556 = vrot.slane %v3195, %v3555
        %v3557 = vlaneseq
        %v3558 = vshrl.u32 %v3557, 7
        %v3559 = vsub.s32 0, %v3558
        %v3560 = vrot.slane %v3196, %v3559
        %v3561 = vlaneseq
        %v3562 = vshrl.u32 %v3561, 7
        %v3563 = vsub.s32 0, %v3562
        %v3564 = vrot.slane %v3197, %v3563
        %v3565 = vlaneseq
        %v3566 = vshrl.u32 %v3565, 7
        %v3567 = vsub.s32 0, %v3566
        %v3568 = vrot.slane %v3198, %v3567
        %v3569 = vlaneseq
        %v3570 = vshrl.u32 %v3569, 7
        %v3571 = vsub.s32 0, %v3570
        %v3572 = vrot.slane %v3199, %v3571
        %v3573 = vlaneseq
        %v3574 = vshrl.u32 %v3573, 7
        %v3575 = vsub.s32 0, %v3574
        %v3576 = vrot.slane %v3200, %v3575
        %v3577 = vlaneseq
        %v3578 = vshrl.u32 %v3577, 7
        %v3579 = vsub.s32 0, %v3578
        %v3580 = vrot.slane %v3201, %v3579
        %v3581 = vlaneseq
        %v3582 = vshrl.u32 %v3581, 7
        %v3583 = vsub.s32 0, %v3582
        %v3584 = vrot.slane %v3202, %v3583
        %v3585 = vlaneseq
        %v3586 = vshrl.u32 %v3585, 7
        %v3587 = vsub.s32 0, %v3586
        %v3588 = vrot.slane %v3203, %v3587
        %v3589 = vlaneseq
        %v3590 = vshrl.u32 %v3589, 7
        %v3591 = vsub.s32 0, %v3590
        %v3592 = vrot.slane %v3204, %v3591
        %v3593 = vlaneseq
        %v3594 = vshrl.u32 %v3593, 7
        %v3595 = vsub.s32 0, %v3594
        %v3596 = vrot.slane %v3205, %v3595
        %v3597 = vlaneseq
        %v3598 = vshrl.u32 %v3597, 7
        %v3599 = vsub.s32 0, %v3598
        %v3600 = vrot.slane %v3206, %v3599
        %v3601 = vlaneseq
        %v3602 = vshrl.u32 %v3601, 7
        %v3603 = vsub.s32 0, %v3602
        %v3604 = vrot.slane %v3207, %v3603
        %v3605 = vlaneseq
        %v3606 = vshrl.u32 %v3605, 7
        %v3607 = vsub.s32 0, %v3606
        %v3608 = vrot.slane %v3208, %v3607
        %v3609 = vlaneseq
        %v3610 = vshrl.u32 %v3609, 7
        %v3611 = vsub.s32 0, %v3610
        %v3612 = vrot.slane %v3209, %v3611
        %v3613 = vlaneseq
        %v3614 = vshrl.u32 %v3613, 7
        %v3615 = vsub.s32 0, %v3614
        %v3616 = vrot.slane %v3210, %v3615
        %v3617 = vlaneseq
        %v3618 = vshrl.u32 %v3617, 7
        %v3619 = vsub.s32 0, %v3618
        %v3620 = vrot.slane %v3211, %v3619
        %v3621 = vlaneseq
        %v3622 = vshrl.u32 %v3621, 7
        %v3623 = vsub.s32 0, %v3622
        %v3624 = vrot.slane %v3212, %v3623
        %v3625 = vlaneseq
        %v3626 = vshrl.u32 %v3625, 7
        %v3627 = vsub.s32 0, %v3626
        %v3628 = vrot.slane %v3213, %v3627
        %v3629 = vlaneseq
        %v3630 = vshrl.u32 %v3629, 7
        %v3631 = vsub.s32 0, %v3630
        %v3632 = vrot.slane %v3214, %v3631
        %v3633 = vlaneseq
        %v3634 = vshrl.u32 %v3633, 7
        %v3635 = vsub.s32 0, %v3634
        %v3636 = vrot.slane %v3215, %v3635
        %v3637 = vlaneseq
        %v3638 = vshrl.u32 %v3637, 7
        %v3639 = vsub.s32 0, %v3638
        %v3640 = vrot.slane %v3216, %v3639
        %v3641 = vlaneseq
        %v3642 = vshrl.u32 %v3641, 7
        %v3643 = vsub.s32 0, %v3642
        %v3644 = vrot.slane %v3217, %v3643
        %v3645 = vlaneseq
        %v3646 = vshrl.u32 %v3645, 7
        %v3647 = vsub.s32 0, %v3646
        %v3648 = vrot.slane %v3218, %v3647
        %v3649 = vlaneseq
        %v3650 = vshrl.u32 %v3649, 7
        %v3651 = vsub.s32 0, %v3650
        %v3652 = vrot.slane %v3219, %v3651
        %v3653 = vlaneseq
        %v3654 = vshrl.u32 %v3653, 7
        %v3655 = vsub.s32 0, %v3654
        %v3656 = vrot.slane %v3220, %v3655
        %v3657 = vlaneseq
        %v3658 = vshrl.u32 %v3657, 7
        %v3659 = vsub.s32 0, %v3658
        %v3660 = vrot.slane %v3221, %v3659
        %v3661 = vlaneseq
        %v3662 = vshrl.u32 %v3661, 7
        %v3663 = vsub.s32 0, %v3662
        %v3664 = vrot.slane %v3222, %v3663
        %v3665 = vlaneseq
        %v3666 = vshrl.u32 %v3665, 7
        %v3667 = vsub.s32 0, %v3666
        %v3668 = vrot.slane %v3223, %v3667
        %v3669 = vlaneseq
        %v3670 = vshrl.u32 %v3669, 7
        %v3671 = vsub.s32 0, %v3670
        %v3672 = vrot.slane %v3224, %v3671
        %v3673 = vlaneseq
        %v3674 = vshrl.u32 %v3673, 7
        %v3675 = vsub.s32 0, %v3674
        %v3676 = vrot.slane %v3225, %v3675
        %v3677 = vlaneseq
        %v3678 = vshrl.u32 %v3677, 7
        %v3679 = vsub.s32 0, %v3678
        %v3680 = vrot.slane %v3226, %v3679
        %v3681 = vlaneseq
        %v3682 = vshrl.u32 %v3681, 7
        %v3683 = vsub.s32 0, %v3682
        %v3684 = vrot.slane %v3227, %v3683
        %v3685 = vlaneseq
        %v3686 = vshrl.u32 %v3685, 7
        %v3687 = vsub.s32 0, %v3686
        %v3688 = vrot.slane %v3228, %v3687
        %v3689 = vlaneseq
        %v3690 = vshrl.u32 %v3689, 7
        %v3691 = vsub.s32 0, %v3690
        %v3692 = vrot.slane %v3229, %v3691
        %v3693 = vlaneseq
        %v3694 = vshrl.u32 %v3693, 7
        %v3695 = vsub.s32 0, %v3694
        %v3696 = vrot.slane %v3230, %v3695
        %v3697 = vlaneseq
        %v3698 = vshrl.u32 %v3697, 7
        %v3699 = vsub.s32 0, %v3698
        %v3700 = vrot.slane %v3231, %v3699
        %v3701 = vlaneseq
        %v3702 = vshrl.u32 %v3701, 7
        %v3703 = vsub.s32 0, %v3702
        %v3704 = vrot.slane %v3232, %v3703
        %v3705 = vlaneseq
        %v3706 = vshrl.u32 %v3705, 7
        %v3707 = vsub.s32 0, %v3706
        %v3708 = vrot.slane %v3233, %v3707
        %v3709 = vlaneseq
        %v3710 = vshrl.u32 %v3709, 7
        %v3711 = vsub.s32 0, %v3710
        %v3712 = vrot.slane %v3234, %v3711
        %v3713 = vlaneseq
        %v3714 = vshrl.u32 %v3713, 7
        %v3715 = vsub.s32 0, %v3714
        %v3716 = vrot.slane %v3235, %v3715
        %v3717 = vlaneseq
        %v3718 = vshrl.u32 %v3717, 7
        %v3719 = vsub.s32 0, %v3718
        %v3720 = vrot.slane %v3236, %v3719
        %v3721 = vlaneseq
        %v3722 = vshrl.u32 %v3721, 7
        %v3723 = vsub.s32 0, %v3722
        %v3724 = vrot.slane %v3237, %v3723
        %v3725 = vlaneseq
        %v3726 = vshrl.u32 %v3725, 7
        %v3727 = vsub.s32 0, %v3726
        %v3728 = vrot.slane %v3238, %v3727
        %v3729 = vlaneseq
        %v3730 = vshrl.u32 %v3729, 7
        %v3731 = vsub.s32 0, %v3730
        %v3732 = vrot.slane %v3239, %v3731
        %v3733 = vlaneseq
        %v3734 = vshrl.u32 %v3733, 7
        %v3735 = vsub.s32 0, %v3734
        %v3736 = vrot.slane %v3240, %v3735
        %v3737 = vlaneseq
        %v3738 = vshrl.u32 %v3737, 7
        %v3739 = vsub.s32 0, %v3738
        %v3740 = vrot.slane %v3241, %v3739
        %v3741 = vlaneseq
        %v3742 = vshrl.u32 %v3741, 7
        %v3743 = vsub.s32 0, %v3742
        %v3744 = vrot.slane %v3242, %v3743
        %v3745 = vlaneseq
        %v3746 = vshrl.u32 %v3745, 7
        %v3747 = vsub.s32 0, %v3746
        %v3748 = vrot.slane %v3243, %v3747
        %v3749 = vlaneseq
        %v3750 = vshrl.u32 %v3749, 7
        %v3751 = vsub.s32 0, %v3750
        %v3752 = vrot.slane %v3244, %v3751
        %v3753 = vlaneseq
        %v3754 = vshrl.u32 %v3753, 7
        %v3755 = vsub.s32 0, %v3754
        %v3756 = vrot.slane %v3245, %v3755
        %v3757 = vlaneseq
        %v3758 = vshrl.u32 %v3757, 7
        %v3759 = vsub.s32 0, %v3758
        %v3760 = vrot.slane %v3246, %v3759
        %v3761 = vlaneseq
        %v3762 = vshrl.u32 %v3761, 7
        %v3763 = vsub.s32 0, %v3762
        %v3764 = vrot.slane %v3247, %v3763
        %v3765 = vlaneseq
        %v3766 = vshrl.u32 %v3765, 7
        %v3767 = vsub.s32 0, %v3766
        %v3768 = vrot.slane %v3248, %v3767
        %v3769 = vlaneseq
        %v3770 = vshrl.u32 %v3769, 7
        %v3771 = vsub.s32 0, %v3770
        %v3772 = vrot.slane %v3249, %v3771
        %v3773 = vlaneseq
        %v3774 = vshrl.u32 %v3773, 7
        %v3775 = vsub.s32 0, %v3774
        %v3776 = vrot.slane %v3250, %v3775
        %v3777 = vlaneseq
        %v3778 = vshrl.u32 %v3777, 7
        %v3779 = vsub.s32 0, %v3778
        %v3780 = vrot.slane %v3251, %v3779
        %v3781 = vlaneseq
        %v3782 = vshrl.u32 %v3781, 7
        %v3783 = vsub.s32 0, %v3782
        %v3784 = vrot.slane %v3252, %v3783
        %v3785 = vlaneseq
        %v3786 = vshrl.u32 %v3785, 7
        %v3787 = vsub.s32 0, %v3786
        %v3788 = vrot.slane %v3253, %v3787
        %v3789 = vlaneseq
        %v3790 = vshrl.u32 %v3789, 7
        %v3791 = vsub.s32 0, %v3790
        %v3792 = vrot.slane %v3254, %v3791
        %v3793 = vlaneseq
        %v3794 = vshrl.u32 %v3793, 7
        %v3795 = vsub.s32 0, %v3794
        %v3796 = vrot.slane %v3255, %v3795
        %v3797 = vlaneseq
        %v3798 = vshrl.u32 %v3797, 7
        %v3799 = vsub.s32 0, %v3798
        %v3800 = vrot.slane %v3256, %v3799
        %v3801 = vlaneseq
        %v3802 = vshrl.u32 %v3801, 7
        %v3803 = vsub.s32 0, %v3802
        %v3804 = vrot.slane %v3257, %v3803
        %v3805 = vlaneseq
        %v3806 = vshrl.u32 %v3805, 7
        %v3807 = vsub.s32 0, %v3806
        %v3808 = vrot.slane %v3258, %v3807
        %v3809 = vlaneseq
        %v3810 = vshrl.u32 %v3809, 7
        %v3811 = vsub.s32 0, %v3810
        %v3812 = vrot.slane %v3259, %v3811
        %v3813 = vlaneseq
        %v3814 = vshrl.u32 %v3813, 7
        %v3815 = vsub.s32 0, %v3814
        %v3816 = vrot.slane %v3260, %v3815
        %v3817 = vlaneseq
        %v3818 = vshrl.u32 %v3817, 7
        %v3819 = vsub.s32 0, %v3818
        %v3820 = vrot.slane %v3261, %v3819
        %v3821 = vlaneseq
        %v3822 = vshrl.u32 %v3821, 7
        %v3823 = vsub.s32 0, %v3822
        %v3824 = vrot.slane %v3262, %v3823
        %v3825 = vlaneseq
        %v3826 = vshrl.u32 %v3825, 7
        %v3827 = vsub.s32 0, %v3826
        %v3828 = vrot.slane %v3263, %v3827
        %v3829 = vlaneseq
        %v3830 = vshrl.u32 %v3829, 7
        %v3831 = vsub.s32 0, %v3830
        %v3832 = vrot.slane %v3264, %v3831
        %v3833 = vlaneseq
        %v3834 = vshrl.u32 %v3833, 7
        %v3835 = vsub.s32 0, %v3834
        %v3836 = vrot.slane %v3265, %v3835
        %v3837 = vlaneseq
        %v3838 = vshrl.u32 %v3837, 7
        %v3839 = vsub.s32 0, %v3838
        %v3840 = vrot.slane %v3266, %v3839
        %v3841 = vlaneseq
        %v3842 = vshrl.u32 %v3841, 7
        %v3843 = vsub.s32 0, %v3842
        %v3844 = vrot.slane %v3267, %v3843
        %v3845 = vlaneseq
        %v3846 = vshrl.u32 %v3845, 7
        %v3847 = vsub.s32 0, %v3846
        %v3848 = vrot.slane %v3268, %v3847
        %v3849 = vlaneseq
        %v3850 = vshrl.u32 %v3849, 7
        %v3851 = vsub.s32 0, %v3850
        %v3852 = vrot.slane %v3269, %v3851
        %v3853 = vlaneseq
        %v3854 = vshrl.u32 %v3853, 7
        %v3855 = vsub.s32 0, %v3854
        %v3856 = vrot.slane %v3270, %v3855
        %v3857 = vlaneseq
        %v3858 = vshrl.u32 %v3857, 7
        %v3859 = vsub.s32 0, %v3858
        %v3860 = vrot.slane %v3271, %v3859
        %v3861 = vlaneseq
        %v3862 = vshrl.u32 %v3861, 7
        %v3863 = vsub.s32 0, %v3862
        %v3864 = vrot.slane %v3272, %v3863
        %v3865 = vlaneseq
        %v3866 = vshrl.u32 %v3865, 7
        %v3867 = vsub.s32 0, %v3866
        %v3868 = vrot.slane %v3273, %v3867
        %v3869 = vlaneseq
        %v3870 = vshrl.u32 %v3869, 7
        %v3871 = vsub.s32 0, %v3870
        %v3872 = vrot.slane %v3274, %v3871
        %v3873 = vlaneseq
        %v3874 = vshrl.u32 %v3873, 7
        %v3875 = vsub.s32 0, %v3874
        %v3876 = vrot.slane %v3275, %v3875
        %v3877 = vlaneseq
        %v3878 = vshrl.u32 %v3877, 7
        %v3879 = vsub.s32 0, %v3878
        %v3880 = vrot.slane %v3276, %v3879
        %v3881 = vlaneseq
        %v3882 = vshrl.u32 %v3881, 7
        %v3883 = vsub.s32 0, %v3882
        %v3884 = vrot.slane %v3277, %v3883
        %v3885 = vlaneseq
        %v3886 = vshrl.u32 %v3885, 7
        %v3887 = vsub.s32 0, %v3886
        %v3888 = vrot.slane %v3278, %v3887
        %v3889 = vlaneseq
        %v3890 = vshrl.u32 %v3889, 7
        %v3891 = vsub.s32 0, %v3890
        %v3892 = vrot.slane %v3279, %v3891
        %v3893 = vlaneseq
        %v3894 = vshrl.u32 %v3893, 7
        %v3895 = vsub.s32 0, %v3894
        %v3896 = vrot.slane %v3280, %v3895
        %v3897 = vlaneseq
        %v3898 = vshrl.u32 %v3897, 7
        %v3899 = vsub.s32 0, %v3898
        %v3900 = vrot.slane %v3281, %v3899
        %v3901 = vlaneseq
        %v3902 = vshrl.u32 %v3901, 7
        %v3903 = vsub.s32 0, %v3902
        %v3904 = vrot.slane %v3282, %v3903
        %v3905 = vlaneseq
        %v3906 = vshrl.u32 %v3905, 7
        %v3907 = vsub.s32 0, %v3906
        %v3908 = vrot.slane %v3283, %v3907
        %v3909 = vlaneseq
        %v3910 = vshrl.u32 %v3909, 7
        %v3911 = vsub.s32 0, %v3910
        %v3912 = vrot.slane %v3284, %v3911
        %v3913 = vlaneseq
        %v3914 = vshrl.u32 %v3913, 7
        %v3915 = vsub.s32 0, %v3914
        %v3916 = vrot.slane %v3285, %v3915
        %v3917 = vlaneseq
        %v3918 = vshrl.u32 %v3917, 7
        %v3919 = vsub.s32 0, %v3918
        %v3920 = vrot.slane %v3286, %v3919
        %v3921 = vlaneseq
        %v3922 = vshrl.u32 %v3921, 7
        %v3923 = vsub.s32 0, %v3922
        %v3924 = vrot.slane %v3287, %v3923
        %v3925 = vlaneseq
        %v3926 = vshrl.u32 %v3925, 7
        %v3927 = vsub.s32 0, %v3926
        %v3928 = vrot.slane %v3288, %v3927
        %3929 = vset.pattern.permute.xlu0 0
        %3930 = vperm.xlu0 %3929, %v3420
        %v3931 = vpop.permute.xlu0 %3930
        %3933 = vset.pattern.permute.xlu0 0
        %3934 = vperm.xlu0 %3933, %v3424
        %v3935 = vpop.permute.xlu0 %3934
        %3937 = vset.pattern.permute.xlu0 0
        %3938 = vperm.xlu0 %3937, %v3428
        %v3939 = vpop.permute.xlu0 %3938
        %3941 = vset.pattern.permute.xlu0 0
        %3942 = vperm.xlu0 %3941, %v3432
        %v3943 = vpop.permute.xlu0 %3942
        %3945 = vset.pattern.permute.xlu0 0
        %3946 = vperm.xlu0 %3945, %v3436
        %v3947 = vpop.permute.xlu0 %3946
        %3949 = vset.pattern.permute.xlu0 0
        %3950 = vperm.xlu0 %3949, %v3440
        %v3951 = vpop.permute.xlu0 %3950
        %3953 = vset.pattern.permute.xlu0 0
        %3954 = vperm.xlu0 %3953, %v3444
        %v3955 = vpop.permute.xlu0 %3954
        %3957 = vset.pattern.permute.xlu0 0
        %3958 = vperm.xlu0 %3957, %v3448
        %v3959 = vpop.permute.xlu0 %3958
        %3961 = vset.pattern.permute.xlu0 0
        %3962 = vperm.xlu0 %3961, %v3452
        %v3963 = vpop.permute.xlu0 %3962
        %3965 = vset.pattern.permute.xlu0 0
        %3966 = vperm.xlu0 %3965, %v3456
        %v3967 = vpop.permute.xlu0 %3966
        %3969 = vset.pattern.permute.xlu0 0
        %3970 = vperm.xlu0 %3969, %v3460
        %v3971 = vpop.permute.xlu0 %3970
        %3973 = vset.pattern.permute.xlu0 0
        %3974 = vperm.xlu0 %3973, %v3464
        %v3975 = vpop.permute.xlu0 %3974
        %3977 = vset.pattern.permute.xlu0 0
        %3978 = vperm.xlu0 %3977, %v3468
        %v3979 = vpop.permute.xlu0 %3978
        %3981 = vset.pattern.permute.xlu0 0
        %3982 = vperm.xlu0 %3981, %v3472
        %v3983 = vpop.permute.xlu0 %3982
        %3985 = vset.pattern.permute.xlu0 0
        %3986 = vperm.xlu0 %3985, %v3476
        %v3987 = vpop.permute.xlu0 %3986
        %3989 = vset.pattern.permute.xlu0 0
        %3990 = vperm.xlu0 %3989, %v3480
        %v3991 = vpop.permute.xlu0 %3990
        %3993 = vset.pattern.permute.xlu0 0
        %3994 = vperm.xlu0 %3993, %v3484
        %v3995 = vpop.permute.xlu0 %3994
        %3997 = vset.pattern.permute.xlu0 0
        %3998 = vperm.xlu0 %3997, %v3488
        %v3999 = vpop.permute.xlu0 %3998
        %4001 = vset.pattern.permute.xlu0 0
        %4002 = vperm.xlu0 %4001, %v3492
        %v4003 = vpop.permute.xlu0 %4002
        %4005 = vset.pattern.permute.xlu0 0
        %4006 = vperm.xlu0 %4005, %v3496
        %v4007 = vpop.permute.xlu0 %4006
        %4009 = vset.pattern.permute.xlu0 0
        %4010 = vperm.xlu0 %4009, %v3500
        %v4011 = vpop.permute.xlu0 %4010
        %4013 = vset.pattern.permute.xlu0 0
        %4014 = vperm.xlu0 %4013, %v3504
        %v4015 = vpop.permute.xlu0 %4014
        %4017 = vset.pattern.permute.xlu0 0
        %4018 = vperm.xlu0 %4017, %v3508
        %v4019 = vpop.permute.xlu0 %4018
        %4021 = vset.pattern.permute.xlu0 0
        %4022 = vperm.xlu0 %4021, %v3512
        %v4023 = vpop.permute.xlu0 %4022
        %4025 = vset.pattern.permute.xlu0 0
        %4026 = vperm.xlu0 %4025, %v3516
        %v4027 = vpop.permute.xlu0 %4026
        %4029 = vset.pattern.permute.xlu0 0
        %4030 = vperm.xlu0 %4029, %v3520
        %v4031 = vpop.permute.xlu0 %4030
        %4033 = vset.pattern.permute.xlu0 0
        %4034 = vperm.xlu0 %4033, %v3524
        %v4035 = vpop.permute.xlu0 %4034
        %4037 = vset.pattern.permute.xlu0 0
        %4038 = vperm.xlu0 %4037, %v3528
        %v4039 = vpop.permute.xlu0 %4038
        %4041 = vset.pattern.permute.xlu0 0
        %4042 = vperm.xlu0 %4041, %v3532
        %v4043 = vpop.permute.xlu0 %4042
        %4045 = vset.pattern.permute.xlu0 0
        %4046 = vperm.xlu0 %4045, %v3536
        %v4047 = vpop.permute.xlu0 %4046
        %4049 = vset.pattern.permute.xlu0 0
        %4050 = vperm.xlu0 %4049, %v3540
        %v4051 = vpop.permute.xlu0 %4050
        %4053 = vset.pattern.permute.xlu0 0
        %4054 = vperm.xlu0 %4053, %v3544
        %v4055 = vpop.permute.xlu0 %4054
        %4057 = vset.pattern.permute.xlu0 0
        %4058 = vperm.xlu0 %4057, %v3548
        %v4059 = vpop.permute.xlu0 %4058
        %4061 = vset.pattern.permute.xlu0 0
        %4062 = vperm.xlu0 %4061, %v3552
        %v4063 = vpop.permute.xlu0 %4062
        %4065 = vset.pattern.permute.xlu0 0
        %4066 = vperm.xlu0 %4065, %v3556
        %v4067 = vpop.permute.xlu0 %4066
        %4069 = vset.pattern.permute.xlu0 0
        %4070 = vperm.xlu0 %4069, %v3560
        %v4071 = vpop.permute.xlu0 %4070
        %4073 = vset.pattern.permute.xlu0 0
        %4074 = vperm.xlu0 %4073, %v3564
        %v4075 = vpop.permute.xlu0 %4074
        %4077 = vset.pattern.permute.xlu0 0
        %4078 = vperm.xlu0 %4077, %v3568
        %v4079 = vpop.permute.xlu0 %4078
        %4081 = vset.pattern.permute.xlu0 0
        %4082 = vperm.xlu0 %4081, %v3572
        %v4083 = vpop.permute.xlu0 %4082
        %4085 = vset.pattern.permute.xlu0 0
        %4086 = vperm.xlu0 %4085, %v3576
        %v4087 = vpop.permute.xlu0 %4086
        %4089 = vset.pattern.permute.xlu0 0
        %4090 = vperm.xlu0 %4089, %v3580
        %v4091 = vpop.permute.xlu0 %4090
        %4093 = vset.pattern.permute.xlu0 0
        %4094 = vperm.xlu0 %4093, %v3584
        %v4095 = vpop.permute.xlu0 %4094
        %4097 = vset.pattern.permute.xlu0 0
        %4098 = vperm.xlu0 %4097, %v3588
        %v4099 = vpop.permute.xlu0 %4098
        %4101 = vset.pattern.permute.xlu0 0
        %4102 = vperm.xlu0 %4101, %v3592
        %v4103 = vpop.permute.xlu0 %4102
        %4105 = vset.pattern.permute.xlu0 0
        %4106 = vperm.xlu0 %4105, %v3596
        %v4107 = vpop.permute.xlu0 %4106
        %4109 = vset.pattern.permute.xlu0 0
        %4110 = vperm.xlu0 %4109, %v3600
        %v4111 = vpop.permute.xlu0 %4110
        %4113 = vset.pattern.permute.xlu0 0
        %4114 = vperm.xlu0 %4113, %v3604
        %v4115 = vpop.permute.xlu0 %4114
        %4117 = vset.pattern.permute.xlu0 0
        %4118 = vperm.xlu0 %4117, %v3608
        %v4119 = vpop.permute.xlu0 %4118
        %4121 = vset.pattern.permute.xlu0 0
        %4122 = vperm.xlu0 %4121, %v3612
        %v4123 = vpop.permute.xlu0 %4122
        %4125 = vset.pattern.permute.xlu0 0
        %4126 = vperm.xlu0 %4125, %v3616
        %v4127 = vpop.permute.xlu0 %4126
        %4129 = vset.pattern.permute.xlu0 0
        %4130 = vperm.xlu0 %4129, %v3620
        %v4131 = vpop.permute.xlu0 %4130
        %4133 = vset.pattern.permute.xlu0 0
        %4134 = vperm.xlu0 %4133, %v3624
        %v4135 = vpop.permute.xlu0 %4134
        %4137 = vset.pattern.permute.xlu0 0
        %4138 = vperm.xlu0 %4137, %v3628
        %v4139 = vpop.permute.xlu0 %4138
        %4141 = vset.pattern.permute.xlu0 0
        %4142 = vperm.xlu0 %4141, %v3632
        %v4143 = vpop.permute.xlu0 %4142
        %4145 = vset.pattern.permute.xlu0 0
        %4146 = vperm.xlu0 %4145, %v3636
        %v4147 = vpop.permute.xlu0 %4146
        %4149 = vset.pattern.permute.xlu0 0
        %4150 = vperm.xlu0 %4149, %v3640
        %v4151 = vpop.permute.xlu0 %4150
        %4153 = vset.pattern.permute.xlu0 0
        %4154 = vperm.xlu0 %4153, %v3644
        %v4155 = vpop.permute.xlu0 %4154
        %4157 = vset.pattern.permute.xlu0 0
        %4158 = vperm.xlu0 %4157, %v3648
        %v4159 = vpop.permute.xlu0 %4158
        %4161 = vset.pattern.permute.xlu0 0
        %4162 = vperm.xlu0 %4161, %v3652
        %v4163 = vpop.permute.xlu0 %4162
        %4165 = vset.pattern.permute.xlu0 0
        %4166 = vperm.xlu0 %4165, %v3656
        %v4167 = vpop.permute.xlu0 %4166
        %4169 = vset.pattern.permute.xlu0 0
        %4170 = vperm.xlu0 %4169, %v3660
        %v4171 = vpop.permute.xlu0 %4170
        %4173 = vset.pattern.permute.xlu0 0
        %4174 = vperm.xlu0 %4173, %v3664
        %v4175 = vpop.permute.xlu0 %4174
        %4177 = vset.pattern.permute.xlu0 0
        %4178 = vperm.xlu0 %4177, %v3668
        %v4179 = vpop.permute.xlu0 %4178
        %4181 = vset.pattern.permute.xlu0 0
        %4182 = vperm.xlu0 %4181, %v3672
        %v4183 = vpop.permute.xlu0 %4182
        %4185 = vset.pattern.permute.xlu0 0
        %4186 = vperm.xlu0 %4185, %v3676
        %v4187 = vpop.permute.xlu0 %4186
        %4189 = vset.pattern.permute.xlu0 0
        %4190 = vperm.xlu0 %4189, %v3680
        %v4191 = vpop.permute.xlu0 %4190
        %4193 = vset.pattern.permute.xlu0 0
        %4194 = vperm.xlu0 %4193, %v3684
        %v4195 = vpop.permute.xlu0 %4194
        %4197 = vset.pattern.permute.xlu0 0
        %4198 = vperm.xlu0 %4197, %v3688
        %v4199 = vpop.permute.xlu0 %4198
        %4201 = vset.pattern.permute.xlu0 0
        %4202 = vperm.xlu0 %4201, %v3692
        %v4203 = vpop.permute.xlu0 %4202
        %4205 = vset.pattern.permute.xlu0 0
        %4206 = vperm.xlu0 %4205, %v3696
        %v4207 = vpop.permute.xlu0 %4206
        %4209 = vset.pattern.permute.xlu0 0
        %4210 = vperm.xlu0 %4209, %v3700
        %v4211 = vpop.permute.xlu0 %4210
        %4213 = vset.pattern.permute.xlu0 0
        %4214 = vperm.xlu0 %4213, %v3704
        %v4215 = vpop.permute.xlu0 %4214
        %4217 = vset.pattern.permute.xlu0 0
        %4218 = vperm.xlu0 %4217, %v3708
        %v4219 = vpop.permute.xlu0 %4218
        %4221 = vset.pattern.permute.xlu0 0
        %4222 = vperm.xlu0 %4221, %v3712
        %v4223 = vpop.permute.xlu0 %4222
        %4225 = vset.pattern.permute.xlu0 0
        %4226 = vperm.xlu0 %4225, %v3716
        %v4227 = vpop.permute.xlu0 %4226
        %4229 = vset.pattern.permute.xlu0 0
        %4230 = vperm.xlu0 %4229, %v3720
        %v4231 = vpop.permute.xlu0 %4230
        %4233 = vset.pattern.permute.xlu0 0
        %4234 = vperm.xlu0 %4233, %v3724
        %v4235 = vpop.permute.xlu0 %4234
        %4237 = vset.pattern.permute.xlu0 0
        %4238 = vperm.xlu0 %4237, %v3728
        %v4239 = vpop.permute.xlu0 %4238
        %4241 = vset.pattern.permute.xlu0 0
        %4242 = vperm.xlu0 %4241, %v3732
        %v4243 = vpop.permute.xlu0 %4242
        %4245 = vset.pattern.permute.xlu0 0
        %4246 = vperm.xlu0 %4245, %v3736
        %v4247 = vpop.permute.xlu0 %4246
        %4249 = vset.pattern.permute.xlu0 0
        %4250 = vperm.xlu0 %4249, %v3740
        %v4251 = vpop.permute.xlu0 %4250
        %4253 = vset.pattern.permute.xlu0 0
        %4254 = vperm.xlu0 %4253, %v3744
        %v4255 = vpop.permute.xlu0 %4254
        %4257 = vset.pattern.permute.xlu0 0
        %4258 = vperm.xlu0 %4257, %v3748
        %v4259 = vpop.permute.xlu0 %4258
        %4261 = vset.pattern.permute.xlu0 0
        %4262 = vperm.xlu0 %4261, %v3752
        %v4263 = vpop.permute.xlu0 %4262
        %4265 = vset.pattern.permute.xlu0 0
        %4266 = vperm.xlu0 %4265, %v3756
        %v4267 = vpop.permute.xlu0 %4266
        %4269 = vset.pattern.permute.xlu0 0
        %4270 = vperm.xlu0 %4269, %v3760
        %v4271 = vpop.permute.xlu0 %4270
        %4273 = vset.pattern.permute.xlu0 0
        %4274 = vperm.xlu0 %4273, %v3764
        %v4275 = vpop.permute.xlu0 %4274
        %4277 = vset.pattern.permute.xlu0 0
        %4278 = vperm.xlu0 %4277, %v3768
        %v4279 = vpop.permute.xlu0 %4278
        %4281 = vset.pattern.permute.xlu0 0
        %4282 = vperm.xlu0 %4281, %v3772
        %v4283 = vpop.permute.xlu0 %4282
        %4285 = vset.pattern.permute.xlu0 0
        %4286 = vperm.xlu0 %4285, %v3776
        %v4287 = vpop.permute.xlu0 %4286
        %4289 = vset.pattern.permute.xlu0 0
        %4290 = vperm.xlu0 %4289, %v3780
        %v4291 = vpop.permute.xlu0 %4290
        %4293 = vset.pattern.permute.xlu0 0
        %4294 = vperm.xlu0 %4293, %v3784
        %v4295 = vpop.permute.xlu0 %4294
        %4297 = vset.pattern.permute.xlu0 0
        %4298 = vperm.xlu0 %4297, %v3788
        %v4299 = vpop.permute.xlu0 %4298
        %4301 = vset.pattern.permute.xlu0 0
        %4302 = vperm.xlu0 %4301, %v3792
        %v4303 = vpop.permute.xlu0 %4302
        %4305 = vset.pattern.permute.xlu0 0
        %4306 = vperm.xlu0 %4305, %v3796
        %v4307 = vpop.permute.xlu0 %4306
        %4309 = vset.pattern.permute.xlu0 0
        %4310 = vperm.xlu0 %4309, %v3800
        %v4311 = vpop.permute.xlu0 %4310
        %4313 = vset.pattern.permute.xlu0 0
        %4314 = vperm.xlu0 %4313, %v3804
        %v4315 = vpop.permute.xlu0 %4314
        %4317 = vset.pattern.permute.xlu0 0
        %4318 = vperm.xlu0 %4317, %v3808
        %v4319 = vpop.permute.xlu0 %4318
        %4321 = vset.pattern.permute.xlu0 0
        %4322 = vperm.xlu0 %4321, %v3812
        %v4323 = vpop.permute.xlu0 %4322
        %4325 = vset.pattern.permute.xlu0 0
        %4326 = vperm.xlu0 %4325, %v3816
        %v4327 = vpop.permute.xlu0 %4326
        %4329 = vset.pattern.permute.xlu0 0
        %4330 = vperm.xlu0 %4329, %v3820
        %v4331 = vpop.permute.xlu0 %4330
        %4333 = vset.pattern.permute.xlu0 0
        %4334 = vperm.xlu0 %4333, %v3824
        %v4335 = vpop.permute.xlu0 %4334
        %4337 = vset.pattern.permute.xlu0 0
        %4338 = vperm.xlu0 %4337, %v3828
        %v4339 = vpop.permute.xlu0 %4338
        %4341 = vset.pattern.permute.xlu0 0
        %4342 = vperm.xlu0 %4341, %v3832
        %v4343 = vpop.permute.xlu0 %4342
        %4345 = vset.pattern.permute.xlu0 0
        %4346 = vperm.xlu0 %4345, %v3836
        %v4347 = vpop.permute.xlu0 %4346
        %4349 = vset.pattern.permute.xlu0 0
        %4350 = vperm.xlu0 %4349, %v3840
        %v4351 = vpop.permute.xlu0 %4350
        %4353 = vset.pattern.permute.xlu0 0
        %4354 = vperm.xlu0 %4353, %v3844
        %v4355 = vpop.permute.xlu0 %4354
        %4357 = vset.pattern.permute.xlu0 0
        %4358 = vperm.xlu0 %4357, %v3848
        %v4359 = vpop.permute.xlu0 %4358
        %4361 = vset.pattern.permute.xlu0 0
        %4362 = vperm.xlu0 %4361, %v3852
        %v4363 = vpop.permute.xlu0 %4362
        %4365 = vset.pattern.permute.xlu0 0
        %4366 = vperm.xlu0 %4365, %v3856
        %v4367 = vpop.permute.xlu0 %4366
        %4369 = vset.pattern.permute.xlu0 0
        %4370 = vperm.xlu0 %4369, %v3860
        %v4371 = vpop.permute.xlu0 %4370
        %4373 = vset.pattern.permute.xlu0 0
        %4374 = vperm.xlu0 %4373, %v3864
        %v4375 = vpop.permute.xlu0 %4374
        %4377 = vset.pattern.permute.xlu0 0
        %4378 = vperm.xlu0 %4377, %v3868
        %v4379 = vpop.permute.xlu0 %4378
        %4381 = vset.pattern.permute.xlu0 0
        %4382 = vperm.xlu0 %4381, %v3872
        %v4383 = vpop.permute.xlu0 %4382
        %4385 = vset.pattern.permute.xlu0 0
        %4386 = vperm.xlu0 %4385, %v3876
        %v4387 = vpop.permute.xlu0 %4386
        %4389 = vset.pattern.permute.xlu0 0
        %4390 = vperm.xlu0 %4389, %v3880
        %v4391 = vpop.permute.xlu0 %4390
        %4393 = vset.pattern.permute.xlu0 0
        %4394 = vperm.xlu0 %4393, %v3884
        %v4395 = vpop.permute.xlu0 %4394
        %4397 = vset.pattern.permute.xlu0 0
        %4398 = vperm.xlu0 %4397, %v3888
        %v4399 = vpop.permute.xlu0 %4398
        %4401 = vset.pattern.permute.xlu0 0
        %4402 = vperm.xlu0 %4401, %v3892
        %v4403 = vpop.permute.xlu0 %4402
        %4405 = vset.pattern.permute.xlu0 0
        %4406 = vperm.xlu0 %4405, %v3896
        %v4407 = vpop.permute.xlu0 %4406
        %4409 = vset.pattern.permute.xlu0 0
        %4410 = vperm.xlu0 %4409, %v3900
        %v4411 = vpop.permute.xlu0 %4410
        %4413 = vset.pattern.permute.xlu0 0
        %4414 = vperm.xlu0 %4413, %v3904
        %v4415 = vpop.permute.xlu0 %4414
        %4417 = vset.pattern.permute.xlu0 0
        %4418 = vperm.xlu0 %4417, %v3908
        %v4419 = vpop.permute.xlu0 %4418
        %4421 = vset.pattern.permute.xlu0 0
        %4422 = vperm.xlu0 %4421, %v3912
        %v4423 = vpop.permute.xlu0 %4422
        %4425 = vset.pattern.permute.xlu0 0
        %4426 = vperm.xlu0 %4425, %v3916
        %v4427 = vpop.permute.xlu0 %4426
        %4429 = vset.pattern.permute.xlu0 0
        %4430 = vperm.xlu0 %4429, %v3920
        %v4431 = vpop.permute.xlu0 %4430
        %4433 = vset.pattern.permute.xlu0 0
        %4434 = vperm.xlu0 %4433, %v3924
        %v4435 = vpop.permute.xlu0 %4434
        %4437 = vset.pattern.permute.xlu0 0
        %4438 = vperm.xlu0 %4437, %v3928
        %v4439 = vpop.permute.xlu0 %4438
        %v4441 = vadd.f32 %v3033, %v3931
        %v4442 = vadd.f32 %v3034, %v3935
        %v4443 = vadd.f32 %v3035, %v3939
        %v4444 = vadd.f32 %v3036, %v3943
        %v4445 = vadd.f32 %v3037, %v3947
        %v4446 = vadd.f32 %v3038, %v3951
        %v4447 = vadd.f32 %v3039, %v3955
        %v4448 = vadd.f32 %v3040, %v3959
        %v4449 = vadd.f32 %v3041, %v3963
        %v4450 = vadd.f32 %v3042, %v3967
        %v4451 = vadd.f32 %v3043, %v3971
        %v4452 = vadd.f32 %v3044, %v3975
        %v4453 = vadd.f32 %v3045, %v3979
        %v4454 = vadd.f32 %v3046, %v3983
        %v4455 = vadd.f32 %v3047, %v3987
        %v4456 = vadd.f32 %v3048, %v3991
        %v4457 = vadd.f32 %v3049, %v3995
        %v4458 = vadd.f32 %v3050, %v3999
        %v4459 = vadd.f32 %v3051, %v4003
        %v4460 = vadd.f32 %v3052, %v4007
        %v4461 = vadd.f32 %v3053, %v4011
        %v4462 = vadd.f32 %v3054, %v4015
        %v4463 = vadd.f32 %v3055, %v4019
        %v4464 = vadd.f32 %v3056, %v4023
        %v4465 = vadd.f32 %v3057, %v4027
        %v4466 = vadd.f32 %v3058, %v4031
        %v4467 = vadd.f32 %v3059, %v4035
        %v4468 = vadd.f32 %v3060, %v4039
        %v4469 = vadd.f32 %v3061, %v4043
        %v4470 = vadd.f32 %v3062, %v4047
        %v4471 = vadd.f32 %v3063, %v4051
        %v4472 = vadd.f32 %v3064, %v4055
        %v4473 = vadd.f32 %v3065, %v4059
        %v4474 = vadd.f32 %v3066, %v4063
        %v4475 = vadd.f32 %v3067, %v4067
        %v4476 = vadd.f32 %v3068, %v4071
        %v4477 = vadd.f32 %v3069, %v4075
        %v4478 = vadd.f32 %v3070, %v4079
        %v4479 = vadd.f32 %v3071, %v4083
        %v4480 = vadd.f32 %v3072, %v4087
        %v4481 = vadd.f32 %v3073, %v4091
        %v4482 = vadd.f32 %v3074, %v4095
        %v4483 = vadd.f32 %v3075, %v4099
        %v4484 = vadd.f32 %v3076, %v4103
        %v4485 = vadd.f32 %v3077, %v4107
        %v4486 = vadd.f32 %v3078, %v4111
        %v4487 = vadd.f32 %v3079, %v4115
        %v4488 = vadd.f32 %v3080, %v4119
        %v4489 = vadd.f32 %v3081, %v4123
        %v4490 = vadd.f32 %v3082, %v4127
        %v4491 = vadd.f32 %v3083, %v4131
        %v4492 = vadd.f32 %v3084, %v4135
        %v4493 = vadd.f32 %v3085, %v4139
        %v4494 = vadd.f32 %v3086, %v4143
        %v4495 = vadd.f32 %v3087, %v4147
        %v4496 = vadd.f32 %v3088, %v4151
        %v4497 = vadd.f32 %v3089, %v4155
        %v4498 = vadd.f32 %v3090, %v4159
        %v4499 = vadd.f32 %v3091, %v4163
        %v4500 = vadd.f32 %v3092, %v4167
        %v4501 = vadd.f32 %v3093, %v4171
        %v4502 = vadd.f32 %v3094, %v4175
        %v4503 = vadd.f32 %v3095, %v4179
        %v4504 = vadd.f32 %v3096, %v4183
        %v4505 = vadd.f32 %v3097, %v4187
        %v4506 = vadd.f32 %v3098, %v4191
        %v4507 = vadd.f32 %v3099, %v4195
        %v4508 = vadd.f32 %v3100, %v4199
        %v4509 = vadd.f32 %v3101, %v4203
        %v4510 = vadd.f32 %v3102, %v4207
        %v4511 = vadd.f32 %v3103, %v4211
        %v4512 = vadd.f32 %v3104, %v4215
        %v4513 = vadd.f32 %v3105, %v4219
        %v4514 = vadd.f32 %v3106, %v4223
        %v4515 = vadd.f32 %v3107, %v4227
        %v4516 = vadd.f32 %v3108, %v4231
        %v4517 = vadd.f32 %v3109, %v4235
        %v4518 = vadd.f32 %v3110, %v4239
        %v4519 = vadd.f32 %v3111, %v4243
        %v4520 = vadd.f32 %v3112, %v4247
        %v4521 = vadd.f32 %v3113, %v4251
        %v4522 = vadd.f32 %v3114, %v4255
        %v4523 = vadd.f32 %v3115, %v4259
        %v4524 = vadd.f32 %v3116, %v4263
        %v4525 = vadd.f32 %v3117, %v4267
        %v4526 = vadd.f32 %v3118, %v4271
        %v4527 = vadd.f32 %v3119, %v4275
        %v4528 = vadd.f32 %v3120, %v4279
        %v4529 = vadd.f32 %v3121, %v4283
        %v4530 = vadd.f32 %v3122, %v4287
        %v4531 = vadd.f32 %v3123, %v4291
        %v4532 = vadd.f32 %v3124, %v4295
        %v4533 = vadd.f32 %v3125, %v4299
        %v4534 = vadd.f32 %v3126, %v4303
        %v4535 = vadd.f32 %v3127, %v4307
        %v4536 = vadd.f32 %v3128, %v4311
        %v4537 = vadd.f32 %v3129, %v4315
        %v4538 = vadd.f32 %v3130, %v4319
        %v4539 = vadd.f32 %v3131, %v4323
        %v4540 = vadd.f32 %v3132, %v4327
        %v4541 = vadd.f32 %v3133, %v4331
        %v4542 = vadd.f32 %v3134, %v4335
        %v4543 = vadd.f32 %v3135, %v4339
        %v4544 = vadd.f32 %v3136, %v4343
        %v4545 = vadd.f32 %v3137, %v4347
        %v4546 = vadd.f32 %v3138, %v4351
        %v4547 = vadd.f32 %v3139, %v4355
        %v4548 = vadd.f32 %v3140, %v4359
        %v4549 = vadd.f32 %v3141, %v4363
        %v4550 = vadd.f32 %v3142, %v4367
        %v4551 = vadd.f32 %v3143, %v4371
        %v4552 = vadd.f32 %v3144, %v4375
        %v4553 = vadd.f32 %v3145, %v4379
        %v4554 = vadd.f32 %v3146, %v4383
        %v4555 = vadd.f32 %v3147, %v4387
        %v4556 = vadd.f32 %v3148, %v4391
        %v4557 = vadd.f32 %v3149, %v4395
        %v4558 = vadd.f32 %v3150, %v4399
        %v4559 = vadd.f32 %v3151, %v4403
        %v4560 = vadd.f32 %v3152, %v4407
        %v4561 = vadd.f32 %v3153, %v4411
        %v4562 = vadd.f32 %v3154, %v4415
        %v4563 = vadd.f32 %v3155, %v4419
        %v4564 = vadd.f32 %v3156, %v4423
        %v4565 = vadd.f32 %v3157, %v4427
        %v4566 = vadd.f32 %v3158, %v4431
        %v4567 = vadd.f32 %v3159, %v4435
        %v4568 = vadd.f32 %v3160, %v4439
        %4569 = vst.msk [vmem:[%s724] sm:$0xff] %vm853, %v4441
        %4570 = vst.msk [vmem:[%s724 + $0x8] sm:$0xff] %vm853, %v4442
        %4571 = vst.msk [vmem:[%s724 + $0x10] sm:$0xff] %vm853, %v4443
        %4572 = vst.msk [vmem:[%s724 + $0x18] sm:$0xff] %vm853, %v4444
        %4573 = vst.msk [vmem:[%s724 + $0x20] sm:$0xff] %vm853, %v4445
        %4574 = vst.msk [vmem:[%s724 + $0x28] sm:$0xff] %vm853, %v4446
        %4575 = vst.msk [vmem:[%s724 + $0x30] sm:$0xff] %vm853, %v4447
        %4576 = vst.msk [vmem:[%s724 + $0x38] sm:$0xff] %vm853, %v4448
        %4577 = vst.msk [vmem:[%s724 + $0x40] sm:$0xff] %vm853, %v4449
        %4578 = vst.msk [vmem:[%s724 + $0x48] sm:$0xff] %vm853, %v4450
        %4579 = vst.msk [vmem:[%s724 + $0x50] sm:$0xff] %vm853, %v4451
        %4580 = vst.msk [vmem:[%s724 + $0x58] sm:$0xff] %vm853, %v4452
        %4581 = vst.msk [vmem:[%s724 + $0x60] sm:$0xff] %vm853, %v4453
        %4582 = vst.msk [vmem:[%s724 + $0x68] sm:$0xff] %vm853, %v4454
        %4583 = vst.msk [vmem:[%s724 + $0x70] sm:$0xff] %vm853, %v4455
        %4584 = vst.msk [vmem:[%s724 + $0x78] sm:$0xff] %vm853, %v4456
        %4585 = vst.msk [vmem:[%s724 + $0x80] sm:$0xff] %vm853, %v4457
        %4586 = vst.msk [vmem:[%s724 + $0x88] sm:$0xff] %vm853, %v4458
        %4587 = vst.msk [vmem:[%s724 + $0x90] sm:$0xff] %vm853, %v4459
        %4588 = vst.msk [vmem:[%s724 + $0x98] sm:$0xff] %vm853, %v4460
        %4589 = vst.msk [vmem:[%s724 + $0xa0] sm:$0xff] %vm853, %v4461
        %4590 = vst.msk [vmem:[%s724 + $0xa8] sm:$0xff] %vm853, %v4462
        %4591 = vst.msk [vmem:[%s724 + $0xb0] sm:$0xff] %vm853, %v4463
        %4592 = vst.msk [vmem:[%s724 + $0xb8] sm:$0xff] %vm853, %v4464
        %4593 = vst.msk [vmem:[%s724 + $0xc0] sm:$0xff] %vm853, %v4465
        %4594 = vst.msk [vmem:[%s724 + $0xc8] sm:$0xff] %vm853, %v4466
        %4595 = vst.msk [vmem:[%s724 + $0xd0] sm:$0xff] %vm853, %v4467
        %4596 = vst.msk [vmem:[%s724 + $0xd8] sm:$0xff] %vm853, %v4468
        %4597 = vst.msk [vmem:[%s724 + $0xe0] sm:$0xff] %vm853, %v4469
        %4598 = vst.msk [vmem:[%s724 + $0xe8] sm:$0xff] %vm853, %v4470
        %4599 = vst.msk [vmem:[%s724 + $0xf0] sm:$0xff] %vm853, %v4471
        %4600 = vst.msk [vmem:[%s724 + $0xf8] sm:$0xff] %vm853, %v4472
        %4601 = vst.msk [vmem:[%s724 + $0x100] sm:$0xff] %vm853, %v4473
        %4602 = vst.msk [vmem:[%s724 + $0x108] sm:$0xff] %vm853, %v4474
        %4603 = vst.msk [vmem:[%s724 + $0x110] sm:$0xff] %vm853, %v4475
        %4604 = vst.msk [vmem:[%s724 + $0x118] sm:$0xff] %vm853, %v4476
        %4605 = vst.msk [vmem:[%s724 + $0x120] sm:$0xff] %vm853, %v4477
        %4606 = vst.msk [vmem:[%s724 + $0x128] sm:$0xff] %vm853, %v4478
        %4607 = vst.msk [vmem:[%s724 + $0x130] sm:$0xff] %vm853, %v4479
        %4608 = vst.msk [vmem:[%s724 + $0x138] sm:$0xff] %vm853, %v4480
        %4609 = vst.msk [vmem:[%s724 + $0x140] sm:$0xff] %vm853, %v4481
        %4610 = vst.msk [vmem:[%s724 + $0x148] sm:$0xff] %vm853, %v4482
        %4611 = vst.msk [vmem:[%s724 + $0x150] sm:$0xff] %vm853, %v4483
        %4612 = vst.msk [vmem:[%s724 + $0x158] sm:$0xff] %vm853, %v4484
        %4613 = vst.msk [vmem:[%s724 + $0x160] sm:$0xff] %vm853, %v4485
        %4614 = vst.msk [vmem:[%s724 + $0x168] sm:$0xff] %vm853, %v4486
        %4615 = vst.msk [vmem:[%s724 + $0x170] sm:$0xff] %vm853, %v4487
        %4616 = vst.msk [vmem:[%s724 + $0x178] sm:$0xff] %vm853, %v4488
        %4617 = vst.msk [vmem:[%s724 + $0x180] sm:$0xff] %vm853, %v4489
        %4618 = vst.msk [vmem:[%s724 + $0x188] sm:$0xff] %vm853, %v4490
        %4619 = vst.msk [vmem:[%s724 + $0x190] sm:$0xff] %vm853, %v4491
        %4620 = vst.msk [vmem:[%s724 + $0x198] sm:$0xff] %vm853, %v4492
        %4621 = vst.msk [vmem:[%s724 + $0x1a0] sm:$0xff] %vm853, %v4493
        %4622 = vst.msk [vmem:[%s724 + $0x1a8] sm:$0xff] %vm853, %v4494
        %4623 = vst.msk [vmem:[%s724 + $0x1b0] sm:$0xff] %vm853, %v4495
        %4624 = vst.msk [vmem:[%s724 + $0x1b8] sm:$0xff] %vm853, %v4496
        %4625 = vst.msk [vmem:[%s724 + $0x1c0] sm:$0xff] %vm853, %v4497
        %4626 = vst.msk [vmem:[%s724 + $0x1c8] sm:$0xff] %vm853, %v4498
        %4627 = vst.msk [vmem:[%s724 + $0x1d0] sm:$0xff] %vm853, %v4499
        %4628 = vst.msk [vmem:[%s724 + $0x1d8] sm:$0xff] %vm853, %v4500
        %4629 = vst.msk [vmem:[%s724 + $0x1e0] sm:$0xff] %vm853, %v4501
        %4630 = vst.msk [vmem:[%s724 + $0x1e8] sm:$0xff] %vm853, %v4502
        %4631 = vst.msk [vmem:[%s724 + $0x1f0] sm:$0xff] %vm853, %v4503
        %4632 = vst.msk [vmem:[%s724 + $0x1f8] sm:$0xff] %vm853, %v4504
        %4633 = vst.msk [vmem:[%s724 + $0x200] sm:$0xff] %vm853, %v4505
        %4634 = vst.msk [vmem:[%s724 + $0x208] sm:$0xff] %vm853, %v4506
        %4635 = vst.msk [vmem:[%s724 + $0x210] sm:$0xff] %vm853, %v4507
        %4636 = vst.msk [vmem:[%s724 + $0x218] sm:$0xff] %vm853, %v4508
        %4637 = vst.msk [vmem:[%s724 + $0x220] sm:$0xff] %vm853, %v4509
        %4638 = vst.msk [vmem:[%s724 + $0x228] sm:$0xff] %vm853, %v4510
        %4639 = vst.msk [vmem:[%s724 + $0x230] sm:$0xff] %vm853, %v4511
        %4640 = vst.msk [vmem:[%s724 + $0x238] sm:$0xff] %vm853, %v4512
        %4641 = vst.msk [vmem:[%s724 + $0x240] sm:$0xff] %vm853, %v4513
        %4642 = vst.msk [vmem:[%s724 + $0x248] sm:$0xff] %vm853, %v4514
        %4643 = vst.msk [vmem:[%s724 + $0x250] sm:$0xff] %vm853, %v4515
        %4644 = vst.msk [vmem:[%s724 + $0x258] sm:$0xff] %vm853, %v4516
        %4645 = vst.msk [vmem:[%s724 + $0x260] sm:$0xff] %vm853, %v4517
        %4646 = vst.msk [vmem:[%s724 + $0x268] sm:$0xff] %vm853, %v4518
        %4647 = vst.msk [vmem:[%s724 + $0x270] sm:$0xff] %vm853, %v4519
        %4648 = vst.msk [vmem:[%s724 + $0x278] sm:$0xff] %vm853, %v4520
        %4649 = vst.msk [vmem:[%s724 + $0x280] sm:$0xff] %vm853, %v4521
        %4650 = vst.msk [vmem:[%s724 + $0x288] sm:$0xff] %vm853, %v4522
        %4651 = vst.msk [vmem:[%s724 + $0x290] sm:$0xff] %vm853, %v4523
        %4652 = vst.msk [vmem:[%s724 + $0x298] sm:$0xff] %vm853, %v4524
        %4653 = vst.msk [vmem:[%s724 + $0x2a0] sm:$0xff] %vm853, %v4525
        %4654 = vst.msk [vmem:[%s724 + $0x2a8] sm:$0xff] %vm853, %v4526
        %4655 = vst.msk [vmem:[%s724 + $0x2b0] sm:$0xff] %vm853, %v4527
        %4656 = vst.msk [vmem:[%s724 + $0x2b8] sm:$0xff] %vm853, %v4528
        %4657 = vst.msk [vmem:[%s724 + $0x2c0] sm:$0xff] %vm853, %v4529
        %4658 = vst.msk [vmem:[%s724 + $0x2c8] sm:$0xff] %vm853, %v4530
        %4659 = vst.msk [vmem:[%s724 + $0x2d0] sm:$0xff] %vm853, %v4531
        %4660 = vst.msk [vmem:[%s724 + $0x2d8] sm:$0xff] %vm853, %v4532
        %4661 = vst.msk [vmem:[%s724 + $0x2e0] sm:$0xff] %vm853, %v4533
        %4662 = vst.msk [vmem:[%s724 + $0x2e8] sm:$0xff] %vm853, %v4534
        %4663 = vst.msk [vmem:[%s724 + $0x2f0] sm:$0xff] %vm853, %v4535
        %4664 = vst.msk [vmem:[%s724 + $0x2f8] sm:$0xff] %vm853, %v4536
        %4665 = vst.msk [vmem:[%s724 + $0x300] sm:$0xff] %vm853, %v4537
        %4666 = vst.msk [vmem:[%s724 + $0x308] sm:$0xff] %vm853, %v4538
        %4667 = vst.msk [vmem:[%s724 + $0x310] sm:$0xff] %vm853, %v4539
        %4668 = vst.msk [vmem:[%s724 + $0x318] sm:$0xff] %vm853, %v4540
        %4669 = vst.msk [vmem:[%s724 + $0x320] sm:$0xff] %vm853, %v4541
        %4670 = vst.msk [vmem:[%s724 + $0x328] sm:$0xff] %vm853, %v4542
        %4671 = vst.msk [vmem:[%s724 + $0x330] sm:$0xff] %vm853, %v4543
        %4672 = vst.msk [vmem:[%s724 + $0x338] sm:$0xff] %vm853, %v4544
        %4673 = vst.msk [vmem:[%s724 + $0x340] sm:$0xff] %vm853, %v4545
        %4674 = vst.msk [vmem:[%s724 + $0x348] sm:$0xff] %vm853, %v4546
        %4675 = vst.msk [vmem:[%s724 + $0x350] sm:$0xff] %vm853, %v4547
        %4676 = vst.msk [vmem:[%s724 + $0x358] sm:$0xff] %vm853, %v4548
        %4677 = vst.msk [vmem:[%s724 + $0x360] sm:$0xff] %vm853, %v4549
        %4678 = vst.msk [vmem:[%s724 + $0x368] sm:$0xff] %vm853, %v4550
        %4679 = vst.msk [vmem:[%s724 + $0x370] sm:$0xff] %vm853, %v4551
        %4680 = vst.msk [vmem:[%s724 + $0x378] sm:$0xff] %vm853, %v4552
        %4681 = vst.msk [vmem:[%s724 + $0x380] sm:$0xff] %vm853, %v4553
        %4682 = vst.msk [vmem:[%s724 + $0x388] sm:$0xff] %vm853, %v4554
        %4683 = vst.msk [vmem:[%s724 + $0x390] sm:$0xff] %vm853, %v4555
        %4684 = vst.msk [vmem:[%s724 + $0x398] sm:$0xff] %vm853, %v4556
        %4685 = vst.msk [vmem:[%s724 + $0x3a0] sm:$0xff] %vm853, %v4557
        %4686 = vst.msk [vmem:[%s724 + $0x3a8] sm:$0xff] %vm853, %v4558
        %4687 = vst.msk [vmem:[%s724 + $0x3b0] sm:$0xff] %vm853, %v4559
        %4688 = vst.msk [vmem:[%s724 + $0x3b8] sm:$0xff] %vm853, %v4560
        %4689 = vst.msk [vmem:[%s724 + $0x3c0] sm:$0xff] %vm853, %v4561
        %4690 = vst.msk [vmem:[%s724 + $0x3c8] sm:$0xff] %vm853, %v4562
        %4691 = vst.msk [vmem:[%s724 + $0x3d0] sm:$0xff] %vm853, %v4563
        %4692 = vst.msk [vmem:[%s724 + $0x3d8] sm:$0xff] %vm853, %v4564
        %4693 = vst.msk [vmem:[%s724 + $0x3e0] sm:$0xff] %vm853, %v4565
        %4694 = vst.msk [vmem:[%s724 + $0x3e8] sm:$0xff] %vm853, %v4566
        %4695 = vst.msk [vmem:[%s724 + $0x3f0] sm:$0xff] %vm853, %v4567
        %4696 = vst.msk [vmem:[%s724 + $0x3f8] sm:$0xff] %vm853, %v4568
        %s4697 = sand.u32 %s106, 1
        %s4698 = sand.u32 %s106, 1
        %s4699 = smul.addr %s4698, 1024
        %s4700 = scalar_lea.vmem [#allocation3], %s4699
        // Predicated region
        $region71: #{tpu_custom_call.1} parent=65 // pred_check
          %p4701 = pneg %p116
        $region72: #{tpu_custom_call.1} parent=65 // pred_check_branch
          %4703 = sbr.rel (%p4701) target = $region74
        $region73: #{tpu_custom_call.1} parent=65 // pred_region
          %s4704 = smul.addr %s18, 256
          %s4705 = sadd.s32 %s19, %s4704
          %s4706 = smul.addr %s4705, 8
          %s4707 = scalar_lea.vmem %s3, %s4706
          // Predicated region
          $region75: #{tpu_custom_call.1} parent=73 // pred_check
            _
          $region76: #{tpu_custom_call.1} parent=73 // pred_check_branch
            %4709 = sbr.rel (0) target = $region78
          $region77: #{tpu_custom_call.1} parent=73 // pred_region
            // Predicated region
            $region79: #{tpu_custom_call.1} parent=77 // pred_check
              _
            $region80: #{tpu_custom_call.1} parent=77 // pred_check_branch
              %4711 = sbr.rel (0) target = $region82
            $region81: #{tpu_custom_call.1} parent=77 // pred_region
              // Predicated region
              $region94: #{tpu_custom_call.1} parent=81 // pred_check
                _
              $region95: #{tpu_custom_call.1} parent=81 // pred_check_branch
                %4980 = sbr.rel (0) target = $region97
              $region96: #{tpu_custom_call.1} parent=81 // pred_region
                loop: start=0, step=1, limit=1
                $region98: #{tpu_custom_call.1} parent=96 // loop_pre_header
                  _
                $region99: #{tpu_custom_call.1} parent=96 // loop_header
                  %s4982 = sphi 0, %s4986
                  %p4983 = scmp.ge.s32.totalorder %s4982, 1
                  %s4987 = sphi %s4700, %s4700
                  %s4988 = sphi %s4707, %s4707
                $region100: #{tpu_custom_call.1} parent=96 // loop_header_branch
                  %4985 = sbr.rel (%p4983) target = $region104
                $region101: #{tpu_custom_call.1} parent=96 // loop_body
                  %v4989 = vld [vmem:[%s4987] sm:$0xff]
                  %4990 = vst [vmem:[%s4988] sm:$0xff] %v4989
                  %v4991 = vld [vmem:[%s4987 + $0x8] sm:$0xff]
                  %4992 = vst [vmem:[%s4988 + $0x10] sm:$0xff] %v4991
                  %v4993 = vld [vmem:[%s4987 + $0x10] sm:$0xff]
                  %4994 = vst [vmem:[%s4988 + $0x20] sm:$0xff] %v4993
                  %v4995 = vld [vmem:[%s4987 + $0x18] sm:$0xff]
                  %4996 = vst [vmem:[%s4988 + $0x30] sm:$0xff] %v4995
                  %v4997 = vld [vmem:[%s4987 + $0x20] sm:$0xff]
                  %4998 = vst [vmem:[%s4988 + $0x40] sm:$0xff] %v4997
                  %v4999 = vld [vmem:[%s4987 + $0x28] sm:$0xff]
                  %5000 = vst [vmem:[%s4988 + $0x50] sm:$0xff] %v4999
                  %v5001 = vld [vmem:[%s4987 + $0x30] sm:$0xff]
                  %5002 = vst [vmem:[%s4988 + $0x60] sm:$0xff] %v5001
                  %v5003 = vld [vmem:[%s4987 + $0x38] sm:$0xff]
                  %5004 = vst [vmem:[%s4988 + $0x70] sm:$0xff] %v5003
                  %v5005 = vld [vmem:[%s4987 + $0x40] sm:$0xff]
                  %5006 = vst [vmem:[%s4988 + $0x80] sm:$0xff] %v5005
                  %v5007 = vld [vmem:[%s4987 + $0x48] sm:$0xff]
                  %5008 = vst [vmem:[%s4988 + $0x90] sm:$0xff] %v5007
                  %v5009 = vld [vmem:[%s4987 + $0x50] sm:$0xff]
                  %5010 = vst [vmem:[%s4988 + $0xa0] sm:$0xff] %v5009
                  %v5011 = vld [vmem:[%s4987 + $0x58] sm:$0xff]
                  %5012 = vst [vmem:[%s4988 + $0xb0] sm:$0xff] %v5011
                  %v5013 = vld [vmem:[%s4987 + $0x60] sm:$0xff]
                  %5014 = vst [vmem:[%s4988 + $0xc0] sm:$0xff] %v5013
                  %v5015 = vld [vmem:[%s4987 + $0x68] sm:$0xff]
                  %5016 = vst [vmem:[%s4988 + $0xd0] sm:$0xff] %v5015
                  %v5017 = vld [vmem:[%s4987 + $0x70] sm:$0xff]
                  %5018 = vst [vmem:[%s4988 + $0xe0] sm:$0xff] %v5017
                  %v5019 = vld [vmem:[%s4987 + $0x78] sm:$0xff]
                  %5020 = vst [vmem:[%s4988 + $0xf0] sm:$0xff] %v5019
                  %v5021 = vld [vmem:[%s4987 + $0x80] sm:$0xff]
                  %5022 = vst [vmem:[%s4988 + $0x100] sm:$0xff] %v5021
                  %v5023 = vld [vmem:[%s4987 + $0x88] sm:$0xff]
                  %5024 = vst [vmem:[%s4988 + $0x110] sm:$0xff] %v5023
                  %v5025 = vld [vmem:[%s4987 + $0x90] sm:$0xff]
                  %5026 = vst [vmem:[%s4988 + $0x120] sm:$0xff] %v5025
                  %v5027 = vld [vmem:[%s4987 + $0x98] sm:$0xff]
                  %5028 = vst [vmem:[%s4988 + $0x130] sm:$0xff] %v5027
                  %v5029 = vld [vmem:[%s4987 + $0xa0] sm:$0xff]
                  %5030 = vst [vmem:[%s4988 + $0x140] sm:$0xff] %v5029
                  %v5031 = vld [vmem:[%s4987 + $0xa8] sm:$0xff]
                  %5032 = vst [vmem:[%s4988 + $0x150] sm:$0xff] %v5031
                  %v5033 = vld [vmem:[%s4987 + $0xb0] sm:$0xff]
                  %5034 = vst [vmem:[%s4988 + $0x160] sm:$0xff] %v5033
                  %v5035 = vld [vmem:[%s4987 + $0xb8] sm:$0xff]
                  %5036 = vst [vmem:[%s4988 + $0x170] sm:$0xff] %v5035
                  %v5037 = vld [vmem:[%s4987 + $0xc0] sm:$0xff]
                  %5038 = vst [vmem:[%s4988 + $0x180] sm:$0xff] %v5037
                  %v5039 = vld [vmem:[%s4987 + $0xc8] sm:$0xff]
                  %5040 = vst [vmem:[%s4988 + $0x190] sm:$0xff] %v5039
                  %v5041 = vld [vmem:[%s4987 + $0xd0] sm:$0xff]
                  %5042 = vst [vmem:[%s4988 + $0x1a0] sm:$0xff] %v5041
                  %v5043 = vld [vmem:[%s4987 + $0xd8] sm:$0xff]
                  %5044 = vst [vmem:[%s4988 + $0x1b0] sm:$0xff] %v5043
                  %v5045 = vld [vmem:[%s4987 + $0xe0] sm:$0xff]
                  %5046 = vst [vmem:[%s4988 + $0x1c0] sm:$0xff] %v5045
                  %v5047 = vld [vmem:[%s4987 + $0xe8] sm:$0xff]
                  %5048 = vst [vmem:[%s4988 + $0x1d0] sm:$0xff] %v5047
                  %v5049 = vld [vmem:[%s4987 + $0xf0] sm:$0xff]
                  %5050 = vst [vmem:[%s4988 + $0x1e0] sm:$0xff] %v5049
                  %v5051 = vld [vmem:[%s4987 + $0xf8] sm:$0xff]
                  %5052 = vst [vmem:[%s4988 + $0x1f0] sm:$0xff] %v5051
                  %v5053 = vld [vmem:[%s4987 + $0x100] sm:$0xff]
                  %5054 = vst [vmem:[%s4988 + $0x200] sm:$0xff] %v5053
                  %v5055 = vld [vmem:[%s4987 + $0x108] sm:$0xff]
                  %5056 = vst [vmem:[%s4988 + $0x210] sm:$0xff] %v5055
                  %v5057 = vld [vmem:[%s4987 + $0x110] sm:$0xff]
                  %5058 = vst [vmem:[%s4988 + $0x220] sm:$0xff] %v5057
                  %v5059 = vld [vmem:[%s4987 + $0x118] sm:$0xff]
                  %5060 = vst [vmem:[%s4988 + $0x230] sm:$0xff] %v5059
                  %v5061 = vld [vmem:[%s4987 + $0x120] sm:$0xff]
                  %5062 = vst [vmem:[%s4988 + $0x240] sm:$0xff] %v5061
                  %v5063 = vld [vmem:[%s4987 + $0x128] sm:$0xff]
                  %5064 = vst [vmem:[%s4988 + $0x250] sm:$0xff] %v5063
                  %v5065 = vld [vmem:[%s4987 + $0x130] sm:$0xff]
                  %5066 = vst [vmem:[%s4988 + $0x260] sm:$0xff] %v5065
                  %v5067 = vld [vmem:[%s4987 + $0x138] sm:$0xff]
                  %5068 = vst [vmem:[%s4988 + $0x270] sm:$0xff] %v5067
                  %v5069 = vld [vmem:[%s4987 + $0x140] sm:$0xff]
                  %5070 = vst [vmem:[%s4988 + $0x280] sm:$0xff] %v5069
                  %v5071 = vld [vmem:[%s4987 + $0x148] sm:$0xff]
                  %5072 = vst [vmem:[%s4988 + $0x290] sm:$0xff] %v5071
                  %v5073 = vld [vmem:[%s4987 + $0x150] sm:$0xff]
                  %5074 = vst [vmem:[%s4988 + $0x2a0] sm:$0xff] %v5073
                  %v5075 = vld [vmem:[%s4987 + $0x158] sm:$0xff]
                  %5076 = vst [vmem:[%s4988 + $0x2b0] sm:$0xff] %v5075
                  %v5077 = vld [vmem:[%s4987 + $0x160] sm:$0xff]
                  %5078 = vst [vmem:[%s4988 + $0x2c0] sm:$0xff] %v5077
                  %v5079 = vld [vmem:[%s4987 + $0x168] sm:$0xff]
                  %5080 = vst [vmem:[%s4988 + $0x2d0] sm:$0xff] %v5079
                  %v5081 = vld [vmem:[%s4987 + $0x170] sm:$0xff]
                  %5082 = vst [vmem:[%s4988 + $0x2e0] sm:$0xff] %v5081
                  %v5083 = vld [vmem:[%s4987 + $0x178] sm:$0xff]
                  %5084 = vst [vmem:[%s4988 + $0x2f0] sm:$0xff] %v5083
                  %v5085 = vld [vmem:[%s4987 + $0x180] sm:$0xff]
                  %5086 = vst [vmem:[%s4988 + $0x300] sm:$0xff] %v5085
                  %v5087 = vld [vmem:[%s4987 + $0x188] sm:$0xff]
                  %5088 = vst [vmem:[%s4988 + $0x310] sm:$0xff] %v5087
                  %v5089 = vld [vmem:[%s4987 + $0x190] sm:$0xff]
                  %5090 = vst [vmem:[%s4988 + $0x320] sm:$0xff] %v5089
                  %v5091 = vld [vmem:[%s4987 + $0x198] sm:$0xff]
                  %5092 = vst [vmem:[%s4988 + $0x330] sm:$0xff] %v5091
                  %v5093 = vld [vmem:[%s4987 + $0x1a0] sm:$0xff]
                  %5094 = vst [vmem:[%s4988 + $0x340] sm:$0xff] %v5093
                  %v5095 = vld [vmem:[%s4987 + $0x1a8] sm:$0xff]
                  %5096 = vst [vmem:[%s4988 + $0x350] sm:$0xff] %v5095
                  %v5097 = vld [vmem:[%s4987 + $0x1b0] sm:$0xff]
                  %5098 = vst [vmem:[%s4988 + $0x360] sm:$0xff] %v5097
                  %v5099 = vld [vmem:[%s4987 + $0x1b8] sm:$0xff]
                  %5100 = vst [vmem:[%s4988 + $0x370] sm:$0xff] %v5099
                  %v5101 = vld [vmem:[%s4987 + $0x1c0] sm:$0xff]
                  %5102 = vst [vmem:[%s4988 + $0x380] sm:$0xff] %v5101
                  %v5103 = vld [vmem:[%s4987 + $0x1c8] sm:$0xff]
                  %5104 = vst [vmem:[%s4988 + $0x390] sm:$0xff] %v5103
                  %v5105 = vld [vmem:[%s4987 + $0x1d0] sm:$0xff]
                  %5106 = vst [vmem:[%s4988 + $0x3a0] sm:$0xff] %v5105
                  %v5107 = vld [vmem:[%s4987 + $0x1d8] sm:$0xff]
                  %5108 = vst [vmem:[%s4988 + $0x3b0] sm:$0xff] %v5107
                  %v5109 = vld [vmem:[%s4987 + $0x1e0] sm:$0xff]
                  %5110 = vst [vmem:[%s4988 + $0x3c0] sm:$0xff] %v5109
                  %v5111 = vld [vmem:[%s4987 + $0x1e8] sm:$0xff]
                  %5112 = vst [vmem:[%s4988 + $0x3d0] sm:$0xff] %v5111
                  %v5113 = vld [vmem:[%s4987 + $0x1f0] sm:$0xff]
                  %5114 = vst [vmem:[%s4988 + $0x3e0] sm:$0xff] %v5113
                  %v5115 = vld [vmem:[%s4987 + $0x1f8] sm:$0xff]
                  %5116 = vst [vmem:[%s4988 + $0x3f0] sm:$0xff] %v5115
                  %v5117 = vld [vmem:[%s4987 + $0x200] sm:$0xff]
                  %5118 = vst [vmem:[%s4988 + $0x400] sm:$0xff] %v5117
                  %v5119 = vld [vmem:[%s4987 + $0x208] sm:$0xff]
                  %5120 = vst [vmem:[%s4988 + $0x410] sm:$0xff] %v5119
                  %v5121 = vld [vmem:[%s4987 + $0x210] sm:$0xff]
                  %5122 = vst [vmem:[%s4988 + $0x420] sm:$0xff] %v5121
                  %v5123 = vld [vmem:[%s4987 + $0x218] sm:$0xff]
                  %5124 = vst [vmem:[%s4988 + $0x430] sm:$0xff] %v5123
                  %v5125 = vld [vmem:[%s4987 + $0x220] sm:$0xff]
                  %5126 = vst [vmem:[%s4988 + $0x440] sm:$0xff] %v5125
                  %v5127 = vld [vmem:[%s4987 + $0x228] sm:$0xff]
                  %5128 = vst [vmem:[%s4988 + $0x450] sm:$0xff] %v5127
                  %v5129 = vld [vmem:[%s4987 + $0x230] sm:$0xff]
                  %5130 = vst [vmem:[%s4988 + $0x460] sm:$0xff] %v5129
                  %v5131 = vld [vmem:[%s4987 + $0x238] sm:$0xff]
                  %5132 = vst [vmem:[%s4988 + $0x470] sm:$0xff] %v5131
                  %v5133 = vld [vmem:[%s4987 + $0x240] sm:$0xff]
                  %5134 = vst [vmem:[%s4988 + $0x480] sm:$0xff] %v5133
                  %v5135 = vld [vmem:[%s4987 + $0x248] sm:$0xff]
                  %5136 = vst [vmem:[%s4988 + $0x490] sm:$0xff] %v5135
                  %v5137 = vld [vmem:[%s4987 + $0x250] sm:$0xff]
                  %5138 = vst [vmem:[%s4988 + $0x4a0] sm:$0xff] %v5137
                  %v5139 = vld [vmem:[%s4987 + $0x258] sm:$0xff]
                  %5140 = vst [vmem:[%s4988 + $0x4b0] sm:$0xff] %v5139
                  %v5141 = vld [vmem:[%s4987 + $0x260] sm:$0xff]
                  %5142 = vst [vmem:[%s4988 + $0x4c0] sm:$0xff] %v5141
                  %v5143 = vld [vmem:[%s4987 + $0x268] sm:$0xff]
                  %5144 = vst [vmem:[%s4988 + $0x4d0] sm:$0xff] %v5143
                  %v5145 = vld [vmem:[%s4987 + $0x270] sm:$0xff]
                  %5146 = vst [vmem:[%s4988 + $0x4e0] sm:$0xff] %v5145
                  %v5147 = vld [vmem:[%s4987 + $0x278] sm:$0xff]
                  %5148 = vst [vmem:[%s4988 + $0x4f0] sm:$0xff] %v5147
                  %v5149 = vld [vmem:[%s4987 + $0x280] sm:$0xff]
                  %5150 = vst [vmem:[%s4988 + $0x500] sm:$0xff] %v5149
                  %v5151 = vld [vmem:[%s4987 + $0x288] sm:$0xff]
                  %5152 = vst [vmem:[%s4988 + $0x510] sm:$0xff] %v5151
                  %v5153 = vld [vmem:[%s4987 + $0x290] sm:$0xff]
                  %5154 = vst [vmem:[%s4988 + $0x520] sm:$0xff] %v5153
                  %v5155 = vld [vmem:[%s4987 + $0x298] sm:$0xff]
                  %5156 = vst [vmem:[%s4988 + $0x530] sm:$0xff] %v5155
                  %v5157 = vld [vmem:[%s4987 + $0x2a0] sm:$0xff]
                  %5158 = vst [vmem:[%s4988 + $0x540] sm:$0xff] %v5157
                  %v5159 = vld [vmem:[%s4987 + $0x2a8] sm:$0xff]
                  %5160 = vst [vmem:[%s4988 + $0x550] sm:$0xff] %v5159
                  %v5161 = vld [vmem:[%s4987 + $0x2b0] sm:$0xff]
                  %5162 = vst [vmem:[%s4988 + $0x560] sm:$0xff] %v5161
                  %v5163 = vld [vmem:[%s4987 + $0x2b8] sm:$0xff]
                  %5164 = vst [vmem:[%s4988 + $0x570] sm:$0xff] %v5163
                  %v5165 = vld [vmem:[%s4987 + $0x2c0] sm:$0xff]
                  %5166 = vst [vmem:[%s4988 + $0x580] sm:$0xff] %v5165
                  %v5167 = vld [vmem:[%s4987 + $0x2c8] sm:$0xff]
                  %5168 = vst [vmem:[%s4988 + $0x590] sm:$0xff] %v5167
                  %v5169 = vld [vmem:[%s4987 + $0x2d0] sm:$0xff]
                  %5170 = vst [vmem:[%s4988 + $0x5a0] sm:$0xff] %v5169
                  %v5171 = vld [vmem:[%s4987 + $0x2d8] sm:$0xff]
                  %5172 = vst [vmem:[%s4988 + $0x5b0] sm:$0xff] %v5171
                  %v5173 = vld [vmem:[%s4987 + $0x2e0] sm:$0xff]
                  %5174 = vst [vmem:[%s4988 + $0x5c0] sm:$0xff] %v5173
                  %v5175 = vld [vmem:[%s4987 + $0x2e8] sm:$0xff]
                  %5176 = vst [vmem:[%s4988 + $0x5d0] sm:$0xff] %v5175
                  %v5177 = vld [vmem:[%s4987 + $0x2f0] sm:$0xff]
                  %5178 = vst [vmem:[%s4988 + $0x5e0] sm:$0xff] %v5177
                  %v5179 = vld [vmem:[%s4987 + $0x2f8] sm:$0xff]
                  %5180 = vst [vmem:[%s4988 + $0x5f0] sm:$0xff] %v5179
                  %v5181 = vld [vmem:[%s4987 + $0x300] sm:$0xff]
                  %5182 = vst [vmem:[%s4988 + $0x600] sm:$0xff] %v5181
                  %v5183 = vld [vmem:[%s4987 + $0x308] sm:$0xff]
                  %5184 = vst [vmem:[%s4988 + $0x610] sm:$0xff] %v5183
                  %v5185 = vld [vmem:[%s4987 + $0x310] sm:$0xff]
                  %5186 = vst [vmem:[%s4988 + $0x620] sm:$0xff] %v5185
                  %v5187 = vld [vmem:[%s4987 + $0x318] sm:$0xff]
                  %5188 = vst [vmem:[%s4988 + $0x630] sm:$0xff] %v5187
                  %v5189 = vld [vmem:[%s4987 + $0x320] sm:$0xff]
                  %5190 = vst [vmem:[%s4988 + $0x640] sm:$0xff] %v5189
                  %v5191 = vld [vmem:[%s4987 + $0x328] sm:$0xff]
                  %5192 = vst [vmem:[%s4988 + $0x650] sm:$0xff] %v5191
                  %v5193 = vld [vmem:[%s4987 + $0x330] sm:$0xff]
                  %5194 = vst [vmem:[%s4988 + $0x660] sm:$0xff] %v5193
                  %v5195 = vld [vmem:[%s4987 + $0x338] sm:$0xff]
                  %5196 = vst [vmem:[%s4988 + $0x670] sm:$0xff] %v5195
                  %v5197 = vld [vmem:[%s4987 + $0x340] sm:$0xff]
                  %5198 = vst [vmem:[%s4988 + $0x680] sm:$0xff] %v5197
                  %v5199 = vld [vmem:[%s4987 + $0x348] sm:$0xff]
                  %5200 = vst [vmem:[%s4988 + $0x690] sm:$0xff] %v5199
                  %v5201 = vld [vmem:[%s4987 + $0x350] sm:$0xff]
                  %5202 = vst [vmem:[%s4988 + $0x6a0] sm:$0xff] %v5201
                  %v5203 = vld [vmem:[%s4987 + $0x358] sm:$0xff]
                  %5204 = vst [vmem:[%s4988 + $0x6b0] sm:$0xff] %v5203
                  %v5205 = vld [vmem:[%s4987 + $0x360] sm:$0xff]
                  %5206 = vst [vmem:[%s4988 + $0x6c0] sm:$0xff] %v5205
                  %v5207 = vld [vmem:[%s4987 + $0x368] sm:$0xff]
                  %5208 = vst [vmem:[%s4988 + $0x6d0] sm:$0xff] %v5207
                  %v5209 = vld [vmem:[%s4987 + $0x370] sm:$0xff]
                  %5210 = vst [vmem:[%s4988 + $0x6e0] sm:$0xff] %v5209
                  %v5211 = vld [vmem:[%s4987 + $0x378] sm:$0xff]
                  %5212 = vst [vmem:[%s4988 + $0x6f0] sm:$0xff] %v5211
                  %v5213 = vld [vmem:[%s4987 + $0x380] sm:$0xff]
                  %5214 = vst [vmem:[%s4988 + $0x700] sm:$0xff] %v5213
                  %v5215 = vld [vmem:[%s4987 + $0x388] sm:$0xff]
                  %5216 = vst [vmem:[%s4988 + $0x710] sm:$0xff] %v5215
                  %v5217 = vld [vmem:[%s4987 + $0x390] sm:$0xff]
                  %5218 = vst [vmem:[%s4988 + $0x720] sm:$0xff] %v5217
                  %v5219 = vld [vmem:[%s4987 + $0x398] sm:$0xff]
                  %5220 = vst [vmem:[%s4988 + $0x730] sm:$0xff] %v5219
                  %v5221 = vld [vmem:[%s4987 + $0x3a0] sm:$0xff]
                  %5222 = vst [vmem:[%s4988 + $0x740] sm:$0xff] %v5221
                  %v5223 = vld [vmem:[%s4987 + $0x3a8] sm:$0xff]
                  %5224 = vst [vmem:[%s4988 + $0x750] sm:$0xff] %v5223
                  %v5225 = vld [vmem:[%s4987 + $0x3b0] sm:$0xff]
                  %5226 = vst [vmem:[%s4988 + $0x760] sm:$0xff] %v5225
                  %v5227 = vld [vmem:[%s4987 + $0x3b8] sm:$0xff]
                  %5228 = vst [vmem:[%s4988 + $0x770] sm:$0xff] %v5227
                  %v5229 = vld [vmem:[%s4987 + $0x3c0] sm:$0xff]
                  %5230 = vst [vmem:[%s4988 + $0x780] sm:$0xff] %v5229
                  %v5231 = vld [vmem:[%s4987 + $0x3c8] sm:$0xff]
                  %5232 = vst [vmem:[%s4988 + $0x790] sm:$0xff] %v5231
                  %v5233 = vld [vmem:[%s4987 + $0x3d0] sm:$0xff]
                  %5234 = vst [vmem:[%s4988 + $0x7a0] sm:$0xff] %v5233
                  %v5235 = vld [vmem:[%s4987 + $0x3d8] sm:$0xff]
                  %5236 = vst [vmem:[%s4988 + $0x7b0] sm:$0xff] %v5235
                  %v5237 = vld [vmem:[%s4987 + $0x3e0] sm:$0xff]
                  %5238 = vst [vmem:[%s4988 + $0x7c0] sm:$0xff] %v5237
                  %v5239 = vld [vmem:[%s4987 + $0x3e8] sm:$0xff]
                  %5240 = vst [vmem:[%s4988 + $0x7d0] sm:$0xff] %v5239
                  %v5241 = vld [vmem:[%s4987 + $0x3f0] sm:$0xff]
                  %5242 = vst [vmem:[%s4988 + $0x7e0] sm:$0xff] %v5241
                  %v5243 = vld [vmem:[%s4987 + $0x3f8] sm:$0xff]
                  %5244 = vst [vmem:[%s4988 + $0x7f0] sm:$0xff] %v5243
                $region102: #{tpu_custom_call.1} parent=96 // loop_footer
                  %s4986 = sadd.s32 1, %s4982
                $region103: #{tpu_custom_call.1} parent=96 // loop_footer_branch
                  %4981 = sbr.rel target = $region99
                $region104: #{tpu_custom_call.1} parent=96 // loop_exit
                  _
              $region97: #{tpu_custom_call.1} parent=81 // pred_fallthru
                _
              // Predicated region
              $region105: #{tpu_custom_call.1} parent=81 // pred_check
                _
              $region106: #{tpu_custom_call.1} parent=81 // pred_check_branch
                %5246 = sbr.rel target = $region108
              $region107: #{tpu_custom_call.1} parent=81 // pred_region
                _
              $region108: #{tpu_custom_call.1} parent=81 // pred_fallthru
                _
            $region82: #{tpu_custom_call.1} parent=77 // pred_fallthru
              _
            // Predicated region
            $region83: #{tpu_custom_call.1} parent=77 // pred_check
              _
            $region84: #{tpu_custom_call.1} parent=77 // pred_check_branch
              %4713 = sbr.rel target = $region86
            $region85: #{tpu_custom_call.1} parent=77 // pred_region
              loop: start=0, step=1, limit=1
              $region87: #{tpu_custom_call.1} parent=85 // loop_pre_header
                _
              $region88: #{tpu_custom_call.1} parent=85 // loop_header
                %s4716 = sphi 0, %s4720
                %p4717 = scmp.ge.s32.totalorder %s4716, 1
                %s4721 = sphi %s4700, %s4700
                %s4722 = sphi %s4707, %s4707
              $region89: #{tpu_custom_call.1} parent=85 // loop_header_branch
                %4719 = sbr.rel (%p4717) target = $region93
              $region90: #{tpu_custom_call.1} parent=85 // loop_body
                %v4723 = vld [vmem:[%s4721] sm:$0xff]
                %4724 = vst [vmem:[%s4722] sm:$0xff] %v4723
                %v4725 = vld [vmem:[%s4721 + $0x8] sm:$0xff]
                %4726 = vst [vmem:[%s4722 + $0x10] sm:$0xff] %v4725
                %v4727 = vld [vmem:[%s4721 + $0x10] sm:$0xff]
                %4728 = vst [vmem:[%s4722 + $0x20] sm:$0xff] %v4727
                %v4729 = vld [vmem:[%s4721 + $0x18] sm:$0xff]
                %4730 = vst [vmem:[%s4722 + $0x30] sm:$0xff] %v4729
                %v4731 = vld [vmem:[%s4721 + $0x20] sm:$0xff]
                %4732 = vst [vmem:[%s4722 + $0x40] sm:$0xff] %v4731
                %v4733 = vld [vmem:[%s4721 + $0x28] sm:$0xff]
                %4734 = vst [vmem:[%s4722 + $0x50] sm:$0xff] %v4733
                %v4735 = vld [vmem:[%s4721 + $0x30] sm:$0xff]
                %4736 = vst [vmem:[%s4722 + $0x60] sm:$0xff] %v4735
                %v4737 = vld [vmem:[%s4721 + $0x38] sm:$0xff]
                %4738 = vst [vmem:[%s4722 + $0x70] sm:$0xff] %v4737
                %v4739 = vld [vmem:[%s4721 + $0x40] sm:$0xff]
                %4740 = vst [vmem:[%s4722 + $0x80] sm:$0xff] %v4739
                %v4741 = vld [vmem:[%s4721 + $0x48] sm:$0xff]
                %4742 = vst [vmem:[%s4722 + $0x90] sm:$0xff] %v4741
                %v4743 = vld [vmem:[%s4721 + $0x50] sm:$0xff]
                %4744 = vst [vmem:[%s4722 + $0xa0] sm:$0xff] %v4743
                %v4745 = vld [vmem:[%s4721 + $0x58] sm:$0xff]
                %4746 = vst [vmem:[%s4722 + $0xb0] sm:$0xff] %v4745
                %v4747 = vld [vmem:[%s4721 + $0x60] sm:$0xff]
                %4748 = vst [vmem:[%s4722 + $0xc0] sm:$0xff] %v4747
                %v4749 = vld [vmem:[%s4721 + $0x68] sm:$0xff]
                %4750 = vst [vmem:[%s4722 + $0xd0] sm:$0xff] %v4749
                %v4751 = vld [vmem:[%s4721 + $0x70] sm:$0xff]
                %4752 = vst [vmem:[%s4722 + $0xe0] sm:$0xff] %v4751
                %v4753 = vld [vmem:[%s4721 + $0x78] sm:$0xff]
                %4754 = vst [vmem:[%s4722 + $0xf0] sm:$0xff] %v4753
                %v4755 = vld [vmem:[%s4721 + $0x80] sm:$0xff]
                %4756 = vst [vmem:[%s4722 + $0x100] sm:$0xff] %v4755
                %v4757 = vld [vmem:[%s4721 + $0x88] sm:$0xff]
                %4758 = vst [vmem:[%s4722 + $0x110] sm:$0xff] %v4757
                %v4759 = vld [vmem:[%s4721 + $0x90] sm:$0xff]
                %4760 = vst [vmem:[%s4722 + $0x120] sm:$0xff] %v4759
                %v4761 = vld [vmem:[%s4721 + $0x98] sm:$0xff]
                %4762 = vst [vmem:[%s4722 + $0x130] sm:$0xff] %v4761
                %v4763 = vld [vmem:[%s4721 + $0xa0] sm:$0xff]
                %4764 = vst [vmem:[%s4722 + $0x140] sm:$0xff] %v4763
                %v4765 = vld [vmem:[%s4721 + $0xa8] sm:$0xff]
                %4766 = vst [vmem:[%s4722 + $0x150] sm:$0xff] %v4765
                %v4767 = vld [vmem:[%s4721 + $0xb0] sm:$0xff]
                %4768 = vst [vmem:[%s4722 + $0x160] sm:$0xff] %v4767
                %v4769 = vld [vmem:[%s4721 + $0xb8] sm:$0xff]
                %4770 = vst [vmem:[%s4722 + $0x170] sm:$0xff] %v4769
                %v4771 = vld [vmem:[%s4721 + $0xc0] sm:$0xff]
                %4772 = vst [vmem:[%s4722 + $0x180] sm:$0xff] %v4771
                %v4773 = vld [vmem:[%s4721 + $0xc8] sm:$0xff]
                %4774 = vst [vmem:[%s4722 + $0x190] sm:$0xff] %v4773
                %v4775 = vld [vmem:[%s4721 + $0xd0] sm:$0xff]
                %4776 = vst [vmem:[%s4722 + $0x1a0] sm:$0xff] %v4775
                %v4777 = vld [vmem:[%s4721 + $0xd8] sm:$0xff]
                %4778 = vst [vmem:[%s4722 + $0x1b0] sm:$0xff] %v4777
                %v4779 = vld [vmem:[%s4721 + $0xe0] sm:$0xff]
                %4780 = vst [vmem:[%s4722 + $0x1c0] sm:$0xff] %v4779
                %v4781 = vld [vmem:[%s4721 + $0xe8] sm:$0xff]
                %4782 = vst [vmem:[%s4722 + $0x1d0] sm:$0xff] %v4781
                %v4783 = vld [vmem:[%s4721 + $0xf0] sm:$0xff]
                %4784 = vst [vmem:[%s4722 + $0x1e0] sm:$0xff] %v4783
                %v4785 = vld [vmem:[%s4721 + $0xf8] sm:$0xff]
                %4786 = vst [vmem:[%s4722 + $0x1f0] sm:$0xff] %v4785
                %v4787 = vld [vmem:[%s4721 + $0x100] sm:$0xff]
                %4788 = vst [vmem:[%s4722 + $0x200] sm:$0xff] %v4787
                %v4789 = vld [vmem:[%s4721 + $0x108] sm:$0xff]
                %4790 = vst [vmem:[%s4722 + $0x210] sm:$0xff] %v4789
                %v4791 = vld [vmem:[%s4721 + $0x110] sm:$0xff]
                %4792 = vst [vmem:[%s4722 + $0x220] sm:$0xff] %v4791
                %v4793 = vld [vmem:[%s4721 + $0x118] sm:$0xff]
                %4794 = vst [vmem:[%s4722 + $0x230] sm:$0xff] %v4793
                %v4795 = vld [vmem:[%s4721 + $0x120] sm:$0xff]
                %4796 = vst [vmem:[%s4722 + $0x240] sm:$0xff] %v4795
                %v4797 = vld [vmem:[%s4721 + $0x128] sm:$0xff]
                %4798 = vst [vmem:[%s4722 + $0x250] sm:$0xff] %v4797
                %v4799 = vld [vmem:[%s4721 + $0x130] sm:$0xff]
                %4800 = vst [vmem:[%s4722 + $0x260] sm:$0xff] %v4799
                %v4801 = vld [vmem:[%s4721 + $0x138] sm:$0xff]
                %4802 = vst [vmem:[%s4722 + $0x270] sm:$0xff] %v4801
                %v4803 = vld [vmem:[%s4721 + $0x140] sm:$0xff]
                %4804 = vst [vmem:[%s4722 + $0x280] sm:$0xff] %v4803
                %v4805 = vld [vmem:[%s4721 + $0x148] sm:$0xff]
                %4806 = vst [vmem:[%s4722 + $0x290] sm:$0xff] %v4805
                %v4807 = vld [vmem:[%s4721 + $0x150] sm:$0xff]
                %4808 = vst [vmem:[%s4722 + $0x2a0] sm:$0xff] %v4807
                %v4809 = vld [vmem:[%s4721 + $0x158] sm:$0xff]
                %4810 = vst [vmem:[%s4722 + $0x2b0] sm:$0xff] %v4809
                %v4811 = vld [vmem:[%s4721 + $0x160] sm:$0xff]
                %4812 = vst [vmem:[%s4722 + $0x2c0] sm:$0xff] %v4811
                %v4813 = vld [vmem:[%s4721 + $0x168] sm:$0xff]
                %4814 = vst [vmem:[%s4722 + $0x2d0] sm:$0xff] %v4813
                %v4815 = vld [vmem:[%s4721 + $0x170] sm:$0xff]
                %4816 = vst [vmem:[%s4722 + $0x2e0] sm:$0xff] %v4815
                %v4817 = vld [vmem:[%s4721 + $0x178] sm:$0xff]
                %4818 = vst [vmem:[%s4722 + $0x2f0] sm:$0xff] %v4817
                %v4819 = vld [vmem:[%s4721 + $0x180] sm:$0xff]
                %4820 = vst [vmem:[%s4722 + $0x300] sm:$0xff] %v4819
                %v4821 = vld [vmem:[%s4721 + $0x188] sm:$0xff]
                %4822 = vst [vmem:[%s4722 + $0x310] sm:$0xff] %v4821
                %v4823 = vld [vmem:[%s4721 + $0x190] sm:$0xff]
                %4824 = vst [vmem:[%s4722 + $0x320] sm:$0xff] %v4823
                %v4825 = vld [vmem:[%s4721 + $0x198] sm:$0xff]
                %4826 = vst [vmem:[%s4722 + $0x330] sm:$0xff] %v4825
                %v4827 = vld [vmem:[%s4721 + $0x1a0] sm:$0xff]
                %4828 = vst [vmem:[%s4722 + $0x340] sm:$0xff] %v4827
                %v4829 = vld [vmem:[%s4721 + $0x1a8] sm:$0xff]
                %4830 = vst [vmem:[%s4722 + $0x350] sm:$0xff] %v4829
                %v4831 = vld [vmem:[%s4721 + $0x1b0] sm:$0xff]
                %4832 = vst [vmem:[%s4722 + $0x360] sm:$0xff] %v4831
                %v4833 = vld [vmem:[%s4721 + $0x1b8] sm:$0xff]
                %4834 = vst [vmem:[%s4722 + $0x370] sm:$0xff] %v4833
                %v4835 = vld [vmem:[%s4721 + $0x1c0] sm:$0xff]
                %4836 = vst [vmem:[%s4722 + $0x380] sm:$0xff] %v4835
                %v4837 = vld [vmem:[%s4721 + $0x1c8] sm:$0xff]
                %4838 = vst [vmem:[%s4722 + $0x390] sm:$0xff] %v4837
                %v4839 = vld [vmem:[%s4721 + $0x1d0] sm:$0xff]
                %4840 = vst [vmem:[%s4722 + $0x3a0] sm:$0xff] %v4839
                %v4841 = vld [vmem:[%s4721 + $0x1d8] sm:$0xff]
                %4842 = vst [vmem:[%s4722 + $0x3b0] sm:$0xff] %v4841
                %v4843 = vld [vmem:[%s4721 + $0x1e0] sm:$0xff]
                %4844 = vst [vmem:[%s4722 + $0x3c0] sm:$0xff] %v4843
                %v4845 = vld [vmem:[%s4721 + $0x1e8] sm:$0xff]
                %4846 = vst [vmem:[%s4722 + $0x3d0] sm:$0xff] %v4845
                %v4847 = vld [vmem:[%s4721 + $0x1f0] sm:$0xff]
                %4848 = vst [vmem:[%s4722 + $0x3e0] sm:$0xff] %v4847
                %v4849 = vld [vmem:[%s4721 + $0x1f8] sm:$0xff]
                %4850 = vst [vmem:[%s4722 + $0x3f0] sm:$0xff] %v4849
                %v4851 = vld [vmem:[%s4721 + $0x200] sm:$0xff]
                %4852 = vst [vmem:[%s4722 + $0x400] sm:$0xff] %v4851
                %v4853 = vld [vmem:[%s4721 + $0x208] sm:$0xff]
                %4854 = vst [vmem:[%s4722 + $0x410] sm:$0xff] %v4853
                %v4855 = vld [vmem:[%s4721 + $0x210] sm:$0xff]
                %4856 = vst [vmem:[%s4722 + $0x420] sm:$0xff] %v4855
                %v4857 = vld [vmem:[%s4721 + $0x218] sm:$0xff]
                %4858 = vst [vmem:[%s4722 + $0x430] sm:$0xff] %v4857
                %v4859 = vld [vmem:[%s4721 + $0x220] sm:$0xff]
                %4860 = vst [vmem:[%s4722 + $0x440] sm:$0xff] %v4859
                %v4861 = vld [vmem:[%s4721 + $0x228] sm:$0xff]
                %4862 = vst [vmem:[%s4722 + $0x450] sm:$0xff] %v4861
                %v4863 = vld [vmem:[%s4721 + $0x230] sm:$0xff]
                %4864 = vst [vmem:[%s4722 + $0x460] sm:$0xff] %v4863
                %v4865 = vld [vmem:[%s4721 + $0x238] sm:$0xff]
                %4866 = vst [vmem:[%s4722 + $0x470] sm:$0xff] %v4865
                %v4867 = vld [vmem:[%s4721 + $0x240] sm:$0xff]
                %4868 = vst [vmem:[%s4722 + $0x480] sm:$0xff] %v4867
                %v4869 = vld [vmem:[%s4721 + $0x248] sm:$0xff]
                %4870 = vst [vmem:[%s4722 + $0x490] sm:$0xff] %v4869
                %v4871 = vld [vmem:[%s4721 + $0x250] sm:$0xff]
                %4872 = vst [vmem:[%s4722 + $0x4a0] sm:$0xff] %v4871
                %v4873 = vld [vmem:[%s4721 + $0x258] sm:$0xff]
                %4874 = vst [vmem:[%s4722 + $0x4b0] sm:$0xff] %v4873
                %v4875 = vld [vmem:[%s4721 + $0x260] sm:$0xff]
                %4876 = vst [vmem:[%s4722 + $0x4c0] sm:$0xff] %v4875
                %v4877 = vld [vmem:[%s4721 + $0x268] sm:$0xff]
                %4878 = vst [vmem:[%s4722 + $0x4d0] sm:$0xff] %v4877
                %v4879 = vld [vmem:[%s4721 + $0x270] sm:$0xff]
                %4880 = vst [vmem:[%s4722 + $0x4e0] sm:$0xff] %v4879
                %v4881 = vld [vmem:[%s4721 + $0x278] sm:$0xff]
                %4882 = vst [vmem:[%s4722 + $0x4f0] sm:$0xff] %v4881
                %v4883 = vld [vmem:[%s4721 + $0x280] sm:$0xff]
                %4884 = vst [vmem:[%s4722 + $0x500] sm:$0xff] %v4883
                %v4885 = vld [vmem:[%s4721 + $0x288] sm:$0xff]
                %4886 = vst [vmem:[%s4722 + $0x510] sm:$0xff] %v4885
                %v4887 = vld [vmem:[%s4721 + $0x290] sm:$0xff]
                %4888 = vst [vmem:[%s4722 + $0x520] sm:$0xff] %v4887
                %v4889 = vld [vmem:[%s4721 + $0x298] sm:$0xff]
                %4890 = vst [vmem:[%s4722 + $0x530] sm:$0xff] %v4889
                %v4891 = vld [vmem:[%s4721 + $0x2a0] sm:$0xff]
                %4892 = vst [vmem:[%s4722 + $0x540] sm:$0xff] %v4891
                %v4893 = vld [vmem:[%s4721 + $0x2a8] sm:$0xff]
                %4894 = vst [vmem:[%s4722 + $0x550] sm:$0xff] %v4893
                %v4895 = vld [vmem:[%s4721 + $0x2b0] sm:$0xff]
                %4896 = vst [vmem:[%s4722 + $0x560] sm:$0xff] %v4895
                %v4897 = vld [vmem:[%s4721 + $0x2b8] sm:$0xff]
                %4898 = vst [vmem:[%s4722 + $0x570] sm:$0xff] %v4897
                %v4899 = vld [vmem:[%s4721 + $0x2c0] sm:$0xff]
                %4900 = vst [vmem:[%s4722 + $0x580] sm:$0xff] %v4899
                %v4901 = vld [vmem:[%s4721 + $0x2c8] sm:$0xff]
                %4902 = vst [vmem:[%s4722 + $0x590] sm:$0xff] %v4901
                %v4903 = vld [vmem:[%s4721 + $0x2d0] sm:$0xff]
                %4904 = vst [vmem:[%s4722 + $0x5a0] sm:$0xff] %v4903
                %v4905 = vld [vmem:[%s4721 + $0x2d8] sm:$0xff]
                %4906 = vst [vmem:[%s4722 + $0x5b0] sm:$0xff] %v4905
                %v4907 = vld [vmem:[%s4721 + $0x2e0] sm:$0xff]
                %4908 = vst [vmem:[%s4722 + $0x5c0] sm:$0xff] %v4907
                %v4909 = vld [vmem:[%s4721 + $0x2e8] sm:$0xff]
                %4910 = vst [vmem:[%s4722 + $0x5d0] sm:$0xff] %v4909
                %v4911 = vld [vmem:[%s4721 + $0x2f0] sm:$0xff]
                %4912 = vst [vmem:[%s4722 + $0x5e0] sm:$0xff] %v4911
                %v4913 = vld [vmem:[%s4721 + $0x2f8] sm:$0xff]
                %4914 = vst [vmem:[%s4722 + $0x5f0] sm:$0xff] %v4913
                %v4915 = vld [vmem:[%s4721 + $0x300] sm:$0xff]
                %4916 = vst [vmem:[%s4722 + $0x600] sm:$0xff] %v4915
                %v4917 = vld [vmem:[%s4721 + $0x308] sm:$0xff]
                %4918 = vst [vmem:[%s4722 + $0x610] sm:$0xff] %v4917
                %v4919 = vld [vmem:[%s4721 + $0x310] sm:$0xff]
                %4920 = vst [vmem:[%s4722 + $0x620] sm:$0xff] %v4919
                %v4921 = vld [vmem:[%s4721 + $0x318] sm:$0xff]
                %4922 = vst [vmem:[%s4722 + $0x630] sm:$0xff] %v4921
                %v4923 = vld [vmem:[%s4721 + $0x320] sm:$0xff]
                %4924 = vst [vmem:[%s4722 + $0x640] sm:$0xff] %v4923
                %v4925 = vld [vmem:[%s4721 + $0x328] sm:$0xff]
                %4926 = vst [vmem:[%s4722 + $0x650] sm:$0xff] %v4925
                %v4927 = vld [vmem:[%s4721 + $0x330] sm:$0xff]
                %4928 = vst [vmem:[%s4722 + $0x660] sm:$0xff] %v4927
                %v4929 = vld [vmem:[%s4721 + $0x338] sm:$0xff]
                %4930 = vst [vmem:[%s4722 + $0x670] sm:$0xff] %v4929
                %v4931 = vld [vmem:[%s4721 + $0x340] sm:$0xff]
                %4932 = vst [vmem:[%s4722 + $0x680] sm:$0xff] %v4931
                %v4933 = vld [vmem:[%s4721 + $0x348] sm:$0xff]
                %4934 = vst [vmem:[%s4722 + $0x690] sm:$0xff] %v4933
                %v4935 = vld [vmem:[%s4721 + $0x350] sm:$0xff]
                %4936 = vst [vmem:[%s4722 + $0x6a0] sm:$0xff] %v4935
                %v4937 = vld [vmem:[%s4721 + $0x358] sm:$0xff]
                %4938 = vst [vmem:[%s4722 + $0x6b0] sm:$0xff] %v4937
                %v4939 = vld [vmem:[%s4721 + $0x360] sm:$0xff]
                %4940 = vst [vmem:[%s4722 + $0x6c0] sm:$0xff] %v4939
                %v4941 = vld [vmem:[%s4721 + $0x368] sm:$0xff]
                %4942 = vst [vmem:[%s4722 + $0x6d0] sm:$0xff] %v4941
                %v4943 = vld [vmem:[%s4721 + $0x370] sm:$0xff]
                %4944 = vst [vmem:[%s4722 + $0x6e0] sm:$0xff] %v4943
                %v4945 = vld [vmem:[%s4721 + $0x378] sm:$0xff]
                %4946 = vst [vmem:[%s4722 + $0x6f0] sm:$0xff] %v4945
                %v4947 = vld [vmem:[%s4721 + $0x380] sm:$0xff]
                %4948 = vst [vmem:[%s4722 + $0x700] sm:$0xff] %v4947
                %v4949 = vld [vmem:[%s4721 + $0x388] sm:$0xff]
                %4950 = vst [vmem:[%s4722 + $0x710] sm:$0xff] %v4949
                %v4951 = vld [vmem:[%s4721 + $0x390] sm:$0xff]
                %4952 = vst [vmem:[%s4722 + $0x720] sm:$0xff] %v4951
                %v4953 = vld [vmem:[%s4721 + $0x398] sm:$0xff]
                %4954 = vst [vmem:[%s4722 + $0x730] sm:$0xff] %v4953
                %v4955 = vld [vmem:[%s4721 + $0x3a0] sm:$0xff]
                %4956 = vst [vmem:[%s4722 + $0x740] sm:$0xff] %v4955
                %v4957 = vld [vmem:[%s4721 + $0x3a8] sm:$0xff]
                %4958 = vst [vmem:[%s4722 + $0x750] sm:$0xff] %v4957
                %v4959 = vld [vmem:[%s4721 + $0x3b0] sm:$0xff]
                %4960 = vst [vmem:[%s4722 + $0x760] sm:$0xff] %v4959
                %v4961 = vld [vmem:[%s4721 + $0x3b8] sm:$0xff]
                %4962 = vst [vmem:[%s4722 + $0x770] sm:$0xff] %v4961
                %v4963 = vld [vmem:[%s4721 + $0x3c0] sm:$0xff]
                %4964 = vst [vmem:[%s4722 + $0x780] sm:$0xff] %v4963
                %v4965 = vld [vmem:[%s4721 + $0x3c8] sm:$0xff]
                %4966 = vst [vmem:[%s4722 + $0x790] sm:$0xff] %v4965
                %v4967 = vld [vmem:[%s4721 + $0x3d0] sm:$0xff]
                %4968 = vst [vmem:[%s4722 + $0x7a0] sm:$0xff] %v4967
                %v4969 = vld [vmem:[%s4721 + $0x3d8] sm:$0xff]
                %4970 = vst [vmem:[%s4722 + $0x7b0] sm:$0xff] %v4969
                %v4971 = vld [vmem:[%s4721 + $0x3e0] sm:$0xff]
                %4972 = vst [vmem:[%s4722 + $0x7c0] sm:$0xff] %v4971
                %v4973 = vld [vmem:[%s4721 + $0x3e8] sm:$0xff]
                %4974 = vst [vmem:[%s4722 + $0x7d0] sm:$0xff] %v4973
                %v4975 = vld [vmem:[%s4721 + $0x3f0] sm:$0xff]
                %4976 = vst [vmem:[%s4722 + $0x7e0] sm:$0xff] %v4975
                %v4977 = vld [vmem:[%s4721 + $0x3f8] sm:$0xff]
                %4978 = vst [vmem:[%s4722 + $0x7f0] sm:$0xff] %v4977
              $region91: #{tpu_custom_call.1} parent=85 // loop_footer
                %s4720 = sadd.s32 1, %s4716
              $region92: #{tpu_custom_call.1} parent=85 // loop_footer_branch
                %4715 = sbr.rel target = $region88
              $region93: #{tpu_custom_call.1} parent=85 // loop_exit
                _
            $region86: #{tpu_custom_call.1} parent=77 // pred_fallthru
              _
          $region78: #{tpu_custom_call.1} parent=73 // pred_fallthru
            _
          %5247 = vnop
        $region74: #{tpu_custom_call.1} parent=65 // pred_fallthru
          _
      $region66: #{tpu_custom_call.1} parent=5 // pred_fallthru
        _
      %p5248 = scmp.le.s32.totalorder 2, %s9
      // Predicated region
      $region109: #{tpu_custom_call.1} parent=5 // pred_check
        %p5249 = pneg %p5248
      $region110: #{tpu_custom_call.1} parent=5 // pred_check_branch
        %5251 = sbr.rel (%p5249) target = $region112
      $region111: #{tpu_custom_call.1} parent=5 // pred_region
        %s5252 = ssub.s32 %s9, 2
        // Predicated region
        $region113: #{tpu_custom_call.1} parent=111 // pred_check
          %p5253 = pneg %p122
        $region114: #{tpu_custom_call.1} parent=111 // pred_check_branch
          %5255 = sbr.rel (%p5253) target = $region116
        $region115: #{tpu_custom_call.1} parent=111 // pred_region
          %s5256 = sand.u32 %s107, 1
          %s5257 = sand.u32 %s107, 1
          %s5258 = smul.addr %s5257, 1024
          %s5259 = scalar_lea.vmem [#allocation3], %s5258
        $region116: #{tpu_custom_call.1} parent=111 // pred_fallthru
          _
      $region112: #{tpu_custom_call.1} parent=5 // pred_fallthru
        _
    $region6: #{tpu_custom_call.1} parent=1 // loop_footer
      %s13 = sadd.s32 1, %s9
    $region7: #{tpu_custom_call.1} parent=1 // loop_footer_branch
      %8 = sbr.rel target = $region3
    $region8: #{tpu_custom_call.1} parent=1 // loop_exit
      _

</llo_original>
